<compile_context>
chip_gen: v6e
topology: v6e:2x2x1
jax: 0.10.0
libtpu: 0.0.40
codegen_flags: <defaults>
</compile_context>

<pallas_src>
import functools

import jax
import jax.numpy as jnp
from jax.experimental import pallas as pl
from jax.experimental.pallas import tpu as pltpu

DTYPE = jnp.float32
PAD = 32  # all hidden widths (10/20/out_dim) padded to 32 rows (sublane multiple of 8)

# MLP architecture from the PyTorch module:
#   Linear(emb_dim,10) ReLU Linear(10,20) ReLU Linear(20,20) ReLU Linear(20,20) ReLU
#   Linear(20,20) ReLU Linear(20,20) ReLU Linear(20,out_dim)
def _layer_dims(emb_dim: int, out_dim: int):
    return [(emb_dim, 10), (10, 20), (20, 20), (20, 20), (20, 20), (20, 20), (20, out_dim)]


def _init_params(key, emb_dim: int, out_dim: int):
    """Deterministic init matching nn.Linear's default U(-1/sqrt(fan_in), 1/sqrt(fan_in))."""
    params = []
    for (fan_in, fan_out) in _layer_dims(emb_dim, out_dim):
        key, kw, kb = jax.random.split(key, 3)
        bound = 1.0 / (fan_in ** 0.5)
        w = jax.random.uniform(kw, (fan_in, fan_out), DTYPE, -bound, bound)
        b = jax.random.uniform(kb, (1, fan_out), DTYPE, -bound, bound)
        params.append((w, b))
    return params


def _pack_params(params):
    """Pack the 7 (W, b) pairs into three resident slabs.

    w0_slab[k] = column k of W0 (i.e. W0[k, :]) padded to (PAD, 1)   -> layer-0 VPU path
    w_slab[l-1] = W_l^T zero-padded to (PAD, PAD), l = 1..6          -> MXU layers
    b_slab[l]  = b_l  zero-padded to (PAD, 1)
    Zero padding keeps padded activation rows exactly zero through every ReLU, so no
    masking is needed between layers; the final layer slices to out_dim before the store.
    """
    n = len(params)
    emb_dim = params[0][0].shape[0]
    w0_slab = jnp.zeros((emb_dim, PAD, 1), DTYPE)
    w_slab = jnp.zeros((n - 1, PAD, PAD), DTYPE)
    b_slab = jnp.zeros((n, PAD, 1), DTYPE)

    w0, b0 = params[0]
    fan_out0 = w0.shape[1]
    for k in range(emb_dim):
        w0_slab = w0_slab.at[k, :fan_out0, 0].set(w0[k, :])
    b_slab = b_slab.at[0, :fan_out0, 0].set(b0.reshape(-1))

    for l in range(1, n):
        w, b = params[l]
        fan_in, fan_out = w.shape
        w_slab = w_slab.at[l - 1, :fan_out, :fan_in].set(w.T)
        b_slab = b_slab.at[l, :fan_out, 0].set(b.reshape(-1))
    return w0_slab, w_slab, b_slab


def _mlp_kernel(x_ref, w0_ref, w_ref, b_ref, o_ref, h_ref, *,
                emb_dim: int, out_dim: int, n_layers: int, gb: int, tn: int):
    """One grid step: (gb, emb_dim, tn) -> (gb, out_dim, tn).

    x_ref : (gb, emb_dim, tn)      w0_ref: (emb_dim, PAD, 1)
    w_ref : (L-1, PAD, PAD)        b_ref : (L, PAD, 1)
    o_ref : (gb, out_dim, tn)      h_ref : VMEM scratch (PAD, gb*tn)
    """
    # ---- Layer 0 (contraction over tiny emb_dim): per-group VPU broadcast FMAs.
    # w0_ref[k] is (PAD, 1) -> already lane-broadcast-ready; no cross-lane extracts.
    for g in range(gb):
        x = x_ref[g]                                 # (emb_dim, tn)
        h = w0_ref[0] * x[0:1, :]                    # (PAD, 1)*(1, tn) -> (PAD, tn)
        for k in range(1, emb_dim):
            h = h + w0_ref[k] * x[k:k + 1, :]
        # 128-aligned lane offset (tn is a multiple of 128 in the fast path).
        h_ref[:, g * tn:(g + 1) * tn] = jnp.maximum(h + b_ref[0], 0.0)

    # ---- Hidden layers: ONE wide weight-stationary MXU pass per layer,
    # (PAD, PAD) @ (PAD, gb*tn), f32 accumulation.
    h = h_ref[...]                                   # (PAD, gb*tn)
    for l in range(1, n_layers - 1):
        h = jnp.dot(w_ref[l - 1], h, preferred_element_type=jnp.float32) + b_ref[l]
        h = jnp.maximum(h, 0.0)

    # ---- Final layer (no ReLU); padded rows are zero, slice them off before the store.
    last = n_layers - 1
    out = jnp.dot(w_ref[last - 1], h, preferred_element_type=jnp.float32) + b_ref[last]

    # ---- Lane-dense per-group stores (last dim = tn, a multiple of 128 in the fast path).
    for g in range(gb):
        o_ref[g] = out[:out_dim, g * tn:(g + 1) * tn].astype(o_ref.dtype)


def _choose_tiling(g: int, t: int, max_width: int = 2048, min_steps: int = 2):
    """Pick (gb, tn): time tile tn (largest 128-multiple dividing T, else full T) and the
    number of batch-groups per step gb so the MXU lane width gb*tn is as wide as possible
    (<= max_width) while keeping >= min_steps grid steps (v7x has 2 TensorCores; extra
    steps are harmless on v5e/v6e)."""
    tn = t
    for cand in (1024, 512, 256, 128):
        if t % cand == 0:
            tn = cand
            break
    nt = t // tn
    divs = [d for d in range(1, g + 1) if g % d == 0 and d * tn <= max_width]
    if not divs:
        divs = [1]
    ok = [d for d in divs if (g // d) * nt >= min_steps]
    gb = max(ok) if ok else max(divs)
    return gb, tn


def predictor_forward(data: jnp.ndarray, w0_slab: jnp.ndarray, w_slab: jnp.ndarray,
                      b_slab: jnp.ndarray, out_dim: int) -> jnp.ndarray:
    """data: (B0, B1, emb_dim, T) -> (B0, B1, out_dim, T), matching the PyTorch forward
    (transpose -> pointwise MLP over emb_dim -> transpose back), with no HBM transposes."""
    b0, b1, emb_dim, t = data.shape
    g = b0 * b1
    x = data.reshape(g, emb_dim, t)                  # leading-dim merge: free
    gb, tn = _choose_tiling(g, t)
    n_layers, pad, _ = b_slab.shape

    kernel = functools.partial(
        _mlp_kernel, emb_dim=emb_dim, out_dim=out_dim, n_layers=n_layers, gb=gb, tn=tn)

    # Advisory cost estimate so XLA schedules this tiny kernel sensibly.
    flops = 2 * sum(fi * fo for fi, fo in _layer_dims(emb_dim, out_dim)) * g * t
    bytes_accessed = 4 * (x.size + g * out_dim * t + w0_slab.size + w_slab.size + b_slab.size)

    out = pl.pallas_call(
        kernel,
        out_shape=jax.ShapeDtypeStruct((g, out_dim, t), DTYPE),
        grid_spec=pltpu.PrefetchScalarGridSpec(
            num_scalar_prefetch=0,
            grid=(g // gb, t // tn),
            in_specs=[
                # activations: (gb, emb_dim, tn) blocks, lane-dense along time
                pl.BlockSpec((gb, emb_dim, tn), lambda i, j: (i, 0, j)),
                # packed params: constant index_map -> resident in VMEM across the grid
                # (pipeline_mode=pl.Buffered(1) would halve their footprint; skipped —
                #  the slabs total ~30 KB, negligible on every generation)
                pl.BlockSpec((emb_dim, pad, 1), lambda i, j: (0, 0, 0)),
                pl.BlockSpec((n_layers - 1, pad, pad), lambda i, j: (0, 0, 0)),
                pl.BlockSpec((n_layers, pad, 1), lambda i, j: (0, 0, 0)),
            ],
            out_specs=pl.BlockSpec((gb, out_dim, tn), lambda i, j: (i, 0, j)),
            # wide activation slab for the MXU layers, persists across the step
            scratch_shapes=[pltpu.VMEM((pad, gb * tn), jnp.float32)],
        ),
        compiler_params=pltpu.CompilerParams(
            dimension_semantics=("parallel", "parallel"),
        ),
        cost_estimate=pl.CostEstimate(
            flops=flops, transcendentals=0, bytes_accessed=bytes_accessed),
    )(x, w0_slab, w_slab, b_slab)

    return out.reshape(b0, b1, out_dim, t)           # leading-dim split: free


def _reference_forward(data, params):
    """Pure-JAX reference for correctness checking (mirrors the PyTorch forward)."""
    x = jnp.swapaxes(data, 2, 3)
    h = x
    n_layers = len(params)
    for idx, (w, b) in enumerate(params):
        h = h @ w + b
        if idx < n_layers - 1:
            h = jnp.maximum(h, 0.0)
    return jnp.swapaxes(h, 2, 3)


if __name__ == "__main__":
    out_dim = 5
    emb_dim = 3
    # (participants*grasp_phase, condition, inputs=emb_dim, time)
    B0, B1, T = 2, 4, 256   # -> gb=4, tn=256: grid=(2,1), two 1024-lane-wide MXU passes/layer

    key = jax.random.PRNGKey(0)
    kx, kp = jax.random.split(key)
    data = jax.random.normal(kx, (B0, B1, emb_dim, T), DTYPE)
    params = _init_params(kp, emb_dim, out_dim)
    w0_slab, w_slab, b_slab = _pack_params(params)

    out = predictor_forward(data, w0_slab, w_slab, b_slab, out_dim)
    out = jax.block_until_ready(out)

    ref = _reference_forward(data, params)
    assert out.shape == (B0, B1, out_dim, T), out.shape
    assert jnp.allclose(out, ref, atol=1e-4, rtol=1e-4), float(jnp.max(jnp.abs(out - ref)))

    print("KERNEL_OK")
</pallas_src>

<mosaic_0001>
module attributes {stable_mosaic.version = 11 : i64} {
  func.func @_mlp_kernel(%arg0: i32, %arg1: i32, %arg2: memref<4x3x256xf32, #tpu.memory_space<vmem>>, %arg3: memref<3x32x1xf32, #tpu.memory_space<vmem>>, %arg4: memref<6x32x32xf32, #tpu.memory_space<vmem>>, %arg5: memref<7x32x1xf32, #tpu.memory_space<vmem>>, %arg6: memref<4x5x256xf32, #tpu.memory_space<vmem>>, %arg7: memref<32x1024xf32, #tpu.memory_space<vmem>>) attributes {dimension_semantics = [#tpu.dimension_semantics<parallel>, #tpu.dimension_semantics<parallel>], iteration_bounds = array<i64: 2, 1>, scalar_prefetch = 0 : i64, scratch_operands = 1 : i64, tpu.core_type = #tpu.core_type<tc>, window_params = [{transform_indices = @transform_0, window_bounds = array<i64: 4, 3, 256>}, {pipeline_mode = #tpu.pipeline_mode<synchronous>, transform_indices = @transform_1, window_bounds = array<i64: 3, 32, 1>}, {pipeline_mode = #tpu.pipeline_mode<synchronous>, transform_indices = @transform_2, window_bounds = array<i64: 6, 32, 32>}, {pipeline_mode = #tpu.pipeline_mode<synchronous>, transform_indices = @transform_3, window_bounds = array<i64: 7, 32, 1>}, {transform_indices = @transform_4, window_bounds = array<i64: 4, 5, 256>}]} {
    %c0 = arith.constant 0 : index
    %c0_0 = arith.constant 0 : index
    %c0_1 = arith.constant 0 : index
    %0 = vector.load %arg2[%c0, %c0_0, %c0_1] : memref<4x3x256xf32, #tpu.memory_space<vmem>>, vector<1x3x256xf32>
    %1 = vector.shape_cast %0 : vector<1x3x256xf32> to vector<3x256xf32>
    %c0_2 = arith.constant 0 : index
    %c0_3 = arith.constant 0 : index
    %c0_4 = arith.constant 0 : index
    %2 = vector.load %arg3[%c0_2, %c0_3, %c0_4] : memref<3x32x1xf32, #tpu.memory_space<vmem>>, vector<1x32x1xf32>
    %3 = vector.shape_cast %2 : vector<1x32x1xf32> to vector<32x1xf32>
    %4 = vector.extract_strided_slice %1 {offsets = [0, 0], sizes = [1, 256], strides = [1, 1]} : vector<3x256xf32> to vector<1x256xf32>
    %5 = vector.broadcast %3 : vector<32x1xf32> to vector<32x256xf32>
    %6 = vector.broadcast %4 : vector<1x256xf32> to vector<32x256xf32>
    %7 = arith.mulf %5, %6 : vector<32x256xf32>
    %c1 = arith.constant 1 : index
    %c0_5 = arith.constant 0 : index
    %c0_6 = arith.constant 0 : index
    %8 = vector.load %arg3[%c1, %c0_5, %c0_6] : memref<3x32x1xf32, #tpu.memory_space<vmem>>, vector<1x32x1xf32>
    %9 = vector.shape_cast %8 : vector<1x32x1xf32> to vector<32x1xf32>
    %10 = vector.extract_strided_slice %1 {offsets = [1, 0], sizes = [1, 256], strides = [1, 1]} : vector<3x256xf32> to vector<1x256xf32>
    %11 = vector.broadcast %9 : vector<32x1xf32> to vector<32x256xf32>
    %12 = vector.broadcast %10 : vector<1x256xf32> to vector<32x256xf32>
    %13 = arith.mulf %11, %12 : vector<32x256xf32>
    %14 = arith.addf %7, %13 : vector<32x256xf32>
    %c2 = arith.constant 2 : index
    %c0_7 = arith.constant 0 : index
    %c0_8 = arith.constant 0 : index
    %15 = vector.load %arg3[%c2, %c0_7, %c0_8] : memref<3x32x1xf32, #tpu.memory_space<vmem>>, vector<1x32x1xf32>
    %16 = vector.shape_cast %15 : vector<1x32x1xf32> to vector<32x1xf32>
    %17 = vector.extract_strided_slice %1 {offsets = [2, 0], sizes = [1, 256], strides = [1, 1]} : vector<3x256xf32> to vector<1x256xf32>
    %18 = vector.broadcast %16 : vector<32x1xf32> to vector<32x256xf32>
    %19 = vector.broadcast %17 : vector<1x256xf32> to vector<32x256xf32>
    %20 = arith.mulf %18, %19 : vector<32x256xf32>
    %21 = arith.addf %14, %20 : vector<32x256xf32>
    %c0_9 = arith.constant 0 : index
    %c0_10 = arith.constant 0 : index
    %c0_11 = arith.constant 0 : index
    %22 = vector.load %arg5[%c0_9, %c0_10, %c0_11] : memref<7x32x1xf32, #tpu.memory_space<vmem>>, vector<1x32x1xf32>
    %23 = vector.shape_cast %22 : vector<1x32x1xf32> to vector<32x1xf32>
    %24 = vector.broadcast %23 : vector<32x1xf32> to vector<32x256xf32>
    %25 = arith.addf %21, %24 : vector<32x256xf32>
    %cst = arith.constant 0.000000e+00 : f32
    %26 = vector.broadcast %cst : f32 to vector<32x256xf32>
    %27 = arith.maximumf %25, %26 : vector<32x256xf32>
    %c0_12 = arith.constant 0 : index
    %c0_13 = arith.constant 0 : index
    %28 = vector.load %arg7[%c0_12, %c0_13] : memref<32x1024xf32, #tpu.memory_space<vmem>>, vector<32x256xf32>
    tpu.vector_store %arg7[%c0_12, %c0_13], %27 {strides = array<i32>} : memref<32x1024xf32, #tpu.memory_space<vmem>>, vector<32x256xf32>,
    %c1_14 = arith.constant 1 : index
    %c0_15 = arith.constant 0 : index
    %c0_16 = arith.constant 0 : index
    %29 = vector.load %arg2[%c1_14, %c0_15, %c0_16] : memref<4x3x256xf32, #tpu.memory_space<vmem>>, vector<1x3x256xf32>
    %30 = vector.shape_cast %29 : vector<1x3x256xf32> to vector<3x256xf32>
    %c0_17 = arith.constant 0 : index
    %c0_18 = arith.constant 0 : index
    %c0_19 = arith.constant 0 : index
    %31 = vector.load %arg3[%c0_17, %c0_18, %c0_19] : memref<3x32x1xf32, #tpu.memory_space<vmem>>, vector<1x32x1xf32>
    %32 = vector.shape_cast %31 : vector<1x32x1xf32> to vector<32x1xf32>
    %33 = vector.extract_strided_slice %30 {offsets = [0, 0], sizes = [1, 256], strides = [1, 1]} : vector<3x256xf32> to vector<1x256xf32>
    %34 = vector.broadcast %32 : vector<32x1xf32> to vector<32x256xf32>
    %35 = vector.broadcast %33 : vector<1x256xf32> to vector<32x256xf32>
    %36 = arith.mulf %34, %35 : vector<32x256xf32>
    %c1_20 = arith.constant 1 : index
    %c0_21 = arith.constant 0 : index
    %c0_22 = arith.constant 0 : index
    %37 = vector.load %arg3[%c1_20, %c0_21, %c0_22] : memref<3x32x1xf32, #tpu.memory_space<vmem>>, vector<1x32x1xf32>
    %38 = vector.shape_cast %37 : vector<1x32x1xf32> to vector<32x1xf32>
    %39 = vector.extract_strided_slice %30 {offsets = [1, 0], sizes = [1, 256], strides = [1, 1]} : vector<3x256xf32> to vector<1x256xf32>
    %40 = vector.broadcast %38 : vector<32x1xf32> to vector<32x256xf32>
    %41 = vector.broadcast %39 : vector<1x256xf32> to vector<32x256xf32>
    %42 = arith.mulf %40, %41 : vector<32x256xf32>
    %43 = arith.addf %36, %42 : vector<32x256xf32>
    %c2_23 = arith.constant 2 : index
    %c0_24 = arith.constant 0 : index
    %c0_25 = arith.constant 0 : index
    %44 = vector.load %arg3[%c2_23, %c0_24, %c0_25] : memref<3x32x1xf32, #tpu.memory_space<vmem>>, vector<1x32x1xf32>
    %45 = vector.shape_cast %44 : vector<1x32x1xf32> to vector<32x1xf32>
    %46 = vector.extract_strided_slice %30 {offsets = [2, 0], sizes = [1, 256], strides = [1, 1]} : vector<3x256xf32> to vector<1x256xf32>
    %47 = vector.broadcast %45 : vector<32x1xf32> to vector<32x256xf32>
    %48 = vector.broadcast %46 : vector<1x256xf32> to vector<32x256xf32>
    %49 = arith.mulf %47, %48 : vector<32x256xf32>
    %50 = arith.addf %43, %49 : vector<32x256xf32>
    %c0_26 = arith.constant 0 : index
    %c0_27 = arith.constant 0 : index
    %c0_28 = arith.constant 0 : index
    %51 = vector.load %arg5[%c0_26, %c0_27, %c0_28] : memref<7x32x1xf32, #tpu.memory_space<vmem>>, vector<1x32x1xf32>
    %52 = vector.shape_cast %51 : vector<1x32x1xf32> to vector<32x1xf32>
    %53 = vector.broadcast %52 : vector<32x1xf32> to vector<32x256xf32>
    %54 = arith.addf %50, %53 : vector<32x256xf32>
    %cst_29 = arith.constant 0.000000e+00 : f32
    %55 = vector.broadcast %cst_29 : f32 to vector<32x256xf32>
    %56 = arith.maximumf %54, %55 : vector<32x256xf32>
    %c0_30 = arith.constant 0 : index
    %c256 = arith.constant 256 : index
    %57 = vector.load %arg7[%c0_30, %c256] : memref<32x1024xf32, #tpu.memory_space<vmem>>, vector<32x256xf32>
    tpu.vector_store %arg7[%c0_30, %c256], %56 {strides = array<i32>} : memref<32x1024xf32, #tpu.memory_space<vmem>>, vector<32x256xf32>,
    %c2_31 = arith.constant 2 : index
    %c0_32 = arith.constant 0 : index
    %c0_33 = arith.constant 0 : index
    %58 = vector.load %arg2[%c2_31, %c0_32, %c0_33] : memref<4x3x256xf32, #tpu.memory_space<vmem>>, vector<1x3x256xf32>
    %59 = vector.shape_cast %58 : vector<1x3x256xf32> to vector<3x256xf32>
    %c0_34 = arith.constant 0 : index
    %c0_35 = arith.constant 0 : index
    %c0_36 = arith.constant 0 : index
    %60 = vector.load %arg3[%c0_34, %c0_35, %c0_36] : memref<3x32x1xf32, #tpu.memory_space<vmem>>, vector<1x32x1xf32>
    %61 = vector.shape_cast %60 : vector<1x32x1xf32> to vector<32x1xf32>
    %62 = vector.extract_strided_slice %59 {offsets = [0, 0], sizes = [1, 256], strides = [1, 1]} : vector<3x256xf32> to vector<1x256xf32>
    %63 = vector.broadcast %61 : vector<32x1xf32> to vector<32x256xf32>
    %64 = vector.broadcast %62 : vector<1x256xf32> to vector<32x256xf32>
    %65 = arith.mulf %63, %64 : vector<32x256xf32>
    %c1_37 = arith.constant 1 : index
    %c0_38 = arith.constant 0 : index
    %c0_39 = arith.constant 0 : index
    %66 = vector.load %arg3[%c1_37, %c0_38, %c0_39] : memref<3x32x1xf32, #tpu.memory_space<vmem>>, vector<1x32x1xf32>
    %67 = vector.shape_cast %66 : vector<1x32x1xf32> to vector<32x1xf32>
    %68 = vector.extract_strided_slice %59 {offsets = [1, 0], sizes = [1, 256], strides = [1, 1]} : vector<3x256xf32> to vector<1x256xf32>
    %69 = vector.broadcast %67 : vector<32x1xf32> to vector<32x256xf32>
    %70 = vector.broadcast %68 : vector<1x256xf32> to vector<32x256xf32>
    %71 = arith.mulf %69, %70 : vector<32x256xf32>
    %72 = arith.addf %65, %71 : vector<32x256xf32>
    %c2_40 = arith.constant 2 : index
    %c0_41 = arith.constant 0 : index
    %c0_42 = arith.constant 0 : index
    %73 = vector.load %arg3[%c2_40, %c0_41, %c0_42] : memref<3x32x1xf32, #tpu.memory_space<vmem>>, vector<1x32x1xf32>
    %74 = vector.shape_cast %73 : vector<1x32x1xf32> to vector<32x1xf32>
    %75 = vector.extract_strided_slice %59 {offsets = [2, 0], sizes = [1, 256], strides = [1, 1]} : vector<3x256xf32> to vector<1x256xf32>
    %76 = vector.broadcast %74 : vector<32x1xf32> to vector<32x256xf32>
    %77 = vector.broadcast %75 : vector<1x256xf32> to vector<32x256xf32>
    %78 = arith.mulf %76, %77 : vector<32x256xf32>
    %79 = arith.addf %72, %78 : vector<32x256xf32>
    %c0_43 = arith.constant 0 : index
    %c0_44 = arith.constant 0 : index
    %c0_45 = arith.constant 0 : index
    %80 = vector.load %arg5[%c0_43, %c0_44, %c0_45] : memref<7x32x1xf32, #tpu.memory_space<vmem>>, vector<1x32x1xf32>
    %81 = vector.shape_cast %80 : vector<1x32x1xf32> to vector<32x1xf32>
    %82 = vector.broadcast %81 : vector<32x1xf32> to vector<32x256xf32>
    %83 = arith.addf %79, %82 : vector<32x256xf32>
    %cst_46 = arith.constant 0.000000e+00 : f32
    %84 = vector.broadcast %cst_46 : f32 to vector<32x256xf32>
    %85 = arith.maximumf %83, %84 : vector<32x256xf32>
    %c0_47 = arith.constant 0 : index
    %c512 = arith.constant 512 : index
    %86 = vector.load %arg7[%c0_47, %c512] : memref<32x1024xf32, #tpu.memory_space<vmem>>, vector<32x256xf32>
    tpu.vector_store %arg7[%c0_47, %c512], %85 {strides = array<i32>} : memref<32x1024xf32, #tpu.memory_space<vmem>>, vector<32x256xf32>,
    %c3 = arith.constant 3 : index
    %c0_48 = arith.constant 0 : index
    %c0_49 = arith.constant 0 : index
    %87 = vector.load %arg2[%c3, %c0_48, %c0_49] : memref<4x3x256xf32, #tpu.memory_space<vmem>>, vector<1x3x256xf32>
    %88 = vector.shape_cast %87 : vector<1x3x256xf32> to vector<3x256xf32>
    %c0_50 = arith.constant 0 : index
    %c0_51 = arith.constant 0 : index
    %c0_52 = arith.constant 0 : index
    %89 = vector.load %arg3[%c0_50, %c0_51, %c0_52] : memref<3x32x1xf32, #tpu.memory_space<vmem>>, vector<1x32x1xf32>
    %90 = vector.shape_cast %89 : vector<1x32x1xf32> to vector<32x1xf32>
    %91 = vector.extract_strided_slice %88 {offsets = [0, 0], sizes = [1, 256], strides = [1, 1]} : vector<3x256xf32> to vector<1x256xf32>
    %92 = vector.broadcast %90 : vector<32x1xf32> to vector<32x256xf32>
    %93 = vector.broadcast %91 : vector<1x256xf32> to vector<32x256xf32>
    %94 = arith.mulf %92, %93 : vector<32x256xf32>
    %c1_53 = arith.constant 1 : index
    %c0_54 = arith.constant 0 : index
    %c0_55 = arith.constant 0 : index
    %95 = vector.load %arg3[%c1_53, %c0_54, %c0_55] : memref<3x32x1xf32, #tpu.memory_space<vmem>>, vector<1x32x1xf32>
    %96 = vector.shape_cast %95 : vector<1x32x1xf32> to vector<32x1xf32>
    %97 = vector.extract_strided_slice %88 {offsets = [1, 0], sizes = [1, 256], strides = [1, 1]} : vector<3x256xf32> to vector<1x256xf32>
    %98 = vector.broadcast %96 : vector<32x1xf32> to vector<32x256xf32>
    %99 = vector.broadcast %97 : vector<1x256xf32> to vector<32x256xf32>
    %100 = arith.mulf %98, %99 : vector<32x256xf32>
    %101 = arith.addf %94, %100 : vector<32x256xf32>
    %c2_56 = arith.constant 2 : index
    %c0_57 = arith.constant 0 : index
    %c0_58 = arith.constant 0 : index
    %102 = vector.load %arg3[%c2_56, %c0_57, %c0_58] : memref<3x32x1xf32, #tpu.memory_space<vmem>>, vector<1x32x1xf32>
    %103 = vector.shape_cast %102 : vector<1x32x1xf32> to vector<32x1xf32>
    %104 = vector.extract_strided_slice %88 {offsets = [2, 0], sizes = [1, 256], strides = [1, 1]} : vector<3x256xf32> to vector<1x256xf32>
    %105 = vector.broadcast %103 : vector<32x1xf32> to vector<32x256xf32>
    %106 = vector.broadcast %104 : vector<1x256xf32> to vector<32x256xf32>
    %107 = arith.mulf %105, %106 : vector<32x256xf32>
    %108 = arith.addf %101, %107 : vector<32x256xf32>
    %c0_59 = arith.constant 0 : index
    %c0_60 = arith.constant 0 : index
    %c0_61 = arith.constant 0 : index
    %109 = vector.load %arg5[%c0_59, %c0_60, %c0_61] : memref<7x32x1xf32, #tpu.memory_space<vmem>>, vector<1x32x1xf32>
    %110 = vector.shape_cast %109 : vector<1x32x1xf32> to vector<32x1xf32>
    %111 = vector.broadcast %110 : vector<32x1xf32> to vector<32x256xf32>
    %112 = arith.addf %108, %111 : vector<32x256xf32>
    %cst_62 = arith.constant 0.000000e+00 : f32
    %113 = vector.broadcast %cst_62 : f32 to vector<32x256xf32>
    %114 = arith.maximumf %112, %113 : vector<32x256xf32>
    %c0_63 = arith.constant 0 : index
    %c768 = arith.constant 768 : index
    %115 = vector.load %arg7[%c0_63, %c768] : memref<32x1024xf32, #tpu.memory_space<vmem>>, vector<32x256xf32>
    tpu.vector_store %arg7[%c0_63, %c768], %114 {strides = array<i32>} : memref<32x1024xf32, #tpu.memory_space<vmem>>, vector<32x256xf32>,
    %c0_64 = arith.constant 0 : index
    %c0_65 = arith.constant 0 : index
    %116 = vector.load %arg7[%c0_64, %c0_65] : memref<32x1024xf32, #tpu.memory_space<vmem>>, vector<32x1024xf32>
    %c0_66 = arith.constant 0 : index
    %c0_67 = arith.constant 0 : index
    %c0_68 = arith.constant 0 : index
    %117 = vector.load %arg4[%c0_66, %c0_67, %c0_68] : memref<6x32x32xf32, #tpu.memory_space<vmem>>, vector<1x32x32xf32>
    %118 = vector.shape_cast %117 : vector<1x32x32xf32> to vector<32x32xf32>
    %cst_69 = arith.constant dense<0.000000e+00> : vector<32x1024xf32>
    %119 = tpu.matmul %118, %116, %cst_69 {dimension_numbers = #tpu.dot_dimension_numbers<[1], [0], [0], [1], [0, 0, 1, 1], [], []>} : vector<32x32xf32>, vector<32x1024xf32>, vector<32x1024xf32> -> vector<32x1024xf32>
    %c1_70 = arith.constant 1 : index
    %c0_71 = arith.constant 0 : index
    %c0_72 = arith.constant 0 : index
    %120 = vector.load %arg5[%c1_70, %c0_71, %c0_72] : memref<7x32x1xf32, #tpu.memory_space<vmem>>, vector<1x32x1xf32>
    %121 = vector.shape_cast %120 : vector<1x32x1xf32> to vector<32x1xf32>
    %122 = vector.broadcast %121 : vector<32x1xf32> to vector<32x1024xf32>
    %123 = arith.addf %119, %122 : vector<32x1024xf32>
    %cst_73 = arith.constant 0.000000e+00 : f32
    %124 = vector.broadcast %cst_73 : f32 to vector<32x1024xf32>
    %125 = arith.maximumf %123, %124 : vector<32x1024xf32>
    %c1_74 = arith.constant 1 : index
    %c0_75 = arith.constant 0 : index
    %c0_76 = arith.constant 0 : index
    %126 = vector.load %arg4[%c1_74, %c0_75, %c0_76] : memref<6x32x32xf32, #tpu.memory_space<vmem>>, vector<1x32x32xf32>
    %127 = vector.shape_cast %126 : vector<1x32x32xf32> to vector<32x32xf32>
    %cst_77 = arith.constant dense<0.000000e+00> : vector<32x1024xf32>
    %128 = tpu.matmul %127, %125, %cst_77 {dimension_numbers = #tpu.dot_dimension_numbers<[1], [0], [0], [1], [0, 0, 1, 1], [], []>} : vector<32x32xf32>, vector<32x1024xf32>, vector<32x1024xf32> -> vector<32x1024xf32>
    %c2_78 = arith.constant 2 : index
    %c0_79 = arith.constant 0 : index
    %c0_80 = arith.constant 0 : index
    %129 = vector.load %arg5[%c2_78, %c0_79, %c0_80] : memref<7x32x1xf32, #tpu.memory_space<vmem>>, vector<1x32x1xf32>
    %130 = vector.shape_cast %129 : vector<1x32x1xf32> to vector<32x1xf32>
    %131 = vector.broadcast %130 : vector<32x1xf32> to vector<32x1024xf32>
    %132 = arith.addf %128, %131 : vector<32x1024xf32>
    %cst_81 = arith.constant 0.000000e+00 : f32
    %133 = vector.broadcast %cst_81 : f32 to vector<32x1024xf32>
    %134 = arith.maximumf %132, %133 : vector<32x1024xf32>
    %c2_82 = arith.constant 2 : index
    %c0_83 = arith.constant 0 : index
    %c0_84 = arith.constant 0 : index
    %135 = vector.load %arg4[%c2_82, %c0_83, %c0_84] : memref<6x32x32xf32, #tpu.memory_space<vmem>>, vector<1x32x32xf32>
    %136 = vector.shape_cast %135 : vector<1x32x32xf32> to vector<32x32xf32>
    %cst_85 = arith.constant dense<0.000000e+00> : vector<32x1024xf32>
    %137 = tpu.matmul %136, %134, %cst_85 {dimension_numbers = #tpu.dot_dimension_numbers<[1], [0], [0], [1], [0, 0, 1, 1], [], []>} : vector<32x32xf32>, vector<32x1024xf32>, vector<32x1024xf32> -> vector<32x1024xf32>
    %c3_86 = arith.constant 3 : index
    %c0_87 = arith.constant 0 : index
    %c0_88 = arith.constant 0 : index
    %138 = vector.load %arg5[%c3_86, %c0_87, %c0_88] : memref<7x32x1xf32, #tpu.memory_space<vmem>>, vector<1x32x1xf32>
    %139 = vector.shape_cast %138 : vector<1x32x1xf32> to vector<32x1xf32>
    %140 = vector.broadcast %139 : vector<32x1xf32> to vector<32x1024xf32>
    %141 = arith.addf %137, %140 : vector<32x1024xf32>
    %cst_89 = arith.constant 0.000000e+00 : f32
    %142 = vector.broadcast %cst_89 : f32 to vector<32x1024xf32>
    %143 = arith.maximumf %141, %142 : vector<32x1024xf32>
    %c3_90 = arith.constant 3 : index
    %c0_91 = arith.constant 0 : index
    %c0_92 = arith.constant 0 : index
    %144 = vector.load %arg4[%c3_90, %c0_91, %c0_92] : memref<6x32x32xf32, #tpu.memory_space<vmem>>, vector<1x32x32xf32>
    %145 = vector.shape_cast %144 : vector<1x32x32xf32> to vector<32x32xf32>
    %cst_93 = arith.constant dense<0.000000e+00> : vector<32x1024xf32>
    %146 = tpu.matmul %145, %143, %cst_93 {dimension_numbers = #tpu.dot_dimension_numbers<[1], [0], [0], [1], [0, 0, 1, 1], [], []>} : vector<32x32xf32>, vector<32x1024xf32>, vector<32x1024xf32> -> vector<32x1024xf32>
    %c4 = arith.constant 4 : index
    %c0_94 = arith.constant 0 : index
    %c0_95 = arith.constant 0 : index
    %147 = vector.load %arg5[%c4, %c0_94, %c0_95] : memref<7x32x1xf32, #tpu.memory_space<vmem>>, vector<1x32x1xf32>
    %148 = vector.shape_cast %147 : vector<1x32x1xf32> to vector<32x1xf32>
    %149 = vector.broadcast %148 : vector<32x1xf32> to vector<32x1024xf32>
    %150 = arith.addf %146, %149 : vector<32x1024xf32>
    %cst_96 = arith.constant 0.000000e+00 : f32
    %151 = vector.broadcast %cst_96 : f32 to vector<32x1024xf32>
    %152 = arith.maximumf %150, %151 : vector<32x1024xf32>
    %c4_97 = arith.constant 4 : index
    %c0_98 = arith.constant 0 : index
    %c0_99 = arith.constant 0 : index
    %153 = vector.load %arg4[%c4_97, %c0_98, %c0_99] : memref<6x32x32xf32, #tpu.memory_space<vmem>>, vector<1x32x32xf32>
    %154 = vector.shape_cast %153 : vector<1x32x32xf32> to vector<32x32xf32>
    %cst_100 = arith.constant dense<0.000000e+00> : vector<32x1024xf32>
    %155 = tpu.matmul %154, %152, %cst_100 {dimension_numbers = #tpu.dot_dimension_numbers<[1], [0], [0], [1], [0, 0, 1, 1], [], []>} : vector<32x32xf32>, vector<32x1024xf32>, vector<32x1024xf32> -> vector<32x1024xf32>
    %c5 = arith.constant 5 : index
    %c0_101 = arith.constant 0 : index
    %c0_102 = arith.constant 0 : index
    %156 = vector.load %arg5[%c5, %c0_101, %c0_102] : memref<7x32x1xf32, #tpu.memory_space<vmem>>, vector<1x32x1xf32>
    %157 = vector.shape_cast %156 : vector<1x32x1xf32> to vector<32x1xf32>
    %158 = vector.broadcast %157 : vector<32x1xf32> to vector<32x1024xf32>
    %159 = arith.addf %155, %158 : vector<32x1024xf32>
    %cst_103 = arith.constant 0.000000e+00 : f32
    %160 = vector.broadcast %cst_103 : f32 to vector<32x1024xf32>
    %161 = arith.maximumf %159, %160 : vector<32x1024xf32>
    %c5_104 = arith.constant 5 : index
    %c0_105 = arith.constant 0 : index
    %c0_106 = arith.constant 0 : index
    %162 = vector.load %arg4[%c5_104, %c0_105, %c0_106] : memref<6x32x32xf32, #tpu.memory_space<vmem>>, vector<1x32x32xf32>
    %163 = vector.shape_cast %162 : vector<1x32x32xf32> to vector<32x32xf32>
    %cst_107 = arith.constant dense<0.000000e+00> : vector<32x1024xf32>
    %164 = tpu.matmul %163, %161, %cst_107 {dimension_numbers = #tpu.dot_dimension_numbers<[1], [0], [0], [1], [0, 0, 1, 1], [], []>} : vector<32x32xf32>, vector<32x1024xf32>, vector<32x1024xf32> -> vector<32x1024xf32>
    %c6 = arith.constant 6 : index
    %c0_108 = arith.constant 0 : index
    %c0_109 = arith.constant 0 : index
    %165 = vector.load %arg5[%c6, %c0_108, %c0_109] : memref<7x32x1xf32, #tpu.memory_space<vmem>>, vector<1x32x1xf32>
    %166 = vector.shape_cast %165 : vector<1x32x1xf32> to vector<32x1xf32>
    %167 = vector.broadcast %166 : vector<32x1xf32> to vector<32x1024xf32>
    %168 = arith.addf %164, %167 : vector<32x1024xf32>
    %169 = vector.extract_strided_slice %168 {offsets = [0, 0], sizes = [5, 256], strides = [1, 1]} : vector<32x1024xf32> to vector<5x256xf32>
    %c0_110 = arith.constant 0 : index
    %c0_111 = arith.constant 0 : index
    %c0_112 = arith.constant 0 : index
    %170 = vector.load %arg6[%c0_110, %c0_111, %c0_112] : memref<4x5x256xf32, #tpu.memory_space<vmem>>, vector<1x5x256xf32>
    %171 = vector.shape_cast %170 : vector<1x5x256xf32> to vector<5x256xf32>
    %172 = vector.shape_cast %169 : vector<5x256xf32> to vector<1x5x256xf32>
    tpu.vector_store %arg6[%c0_110, %c0_111, %c0_112], %172 {strides = array<i32>} : memref<4x5x256xf32, #tpu.memory_space<vmem>>, vector<1x5x256xf32>,
    %173 = vector.extract_strided_slice %168 {offsets = [0, 256], sizes = [5, 256], strides = [1, 1]} : vector<32x1024xf32> to vector<5x256xf32>
    %c1_113 = arith.constant 1 : index
    %c0_114 = arith.constant 0 : index
    %c0_115 = arith.constant 0 : index
    %174 = vector.load %arg6[%c1_113, %c0_114, %c0_115] : memref<4x5x256xf32, #tpu.memory_space<vmem>>, vector<1x5x256xf32>
    %175 = vector.shape_cast %174 : vector<1x5x256xf32> to vector<5x256xf32>
    %176 = vector.shape_cast %173 : vector<5x256xf32> to vector<1x5x256xf32>
    tpu.vector_store %arg6[%c1_113, %c0_114, %c0_115], %176 {strides = array<i32>} : memref<4x5x256xf32, #tpu.memory_space<vmem>>, vector<1x5x256xf32>,
    %177 = vector.extract_strided_slice %168 {offsets = [0, 512], sizes = [5, 256], strides = [1, 1]} : vector<32x1024xf32> to vector<5x256xf32>
    %c2_116 = arith.constant 2 : index
    %c0_117 = arith.constant 0 : index
    %c0_118 = arith.constant 0 : index
    %178 = vector.load %arg6[%c2_116, %c0_117, %c0_118] : memref<4x5x256xf32, #tpu.memory_space<vmem>>, vector<1x5x256xf32>
    %179 = vector.shape_cast %178 : vector<1x5x256xf32> to vector<5x256xf32>
    %180 = vector.shape_cast %177 : vector<5x256xf32> to vector<1x5x256xf32>
    tpu.vector_store %arg6[%c2_116, %c0_117, %c0_118], %180 {strides = array<i32>} : memref<4x5x256xf32, #tpu.memory_space<vmem>>, vector<1x5x256xf32>,
    %181 = vector.extract_strided_slice %168 {offsets = [0, 768], sizes = [5, 256], strides = [1, 1]} : vector<32x1024xf32> to vector<5x256xf32>
    %c3_119 = arith.constant 3 : index
    %c0_120 = arith.constant 0 : index
    %c0_121 = arith.constant 0 : index
    %182 = vector.load %arg6[%c3_119, %c0_120, %c0_121] : memref<4x5x256xf32, #tpu.memory_space<vmem>>, vector<1x5x256xf32>
    %183 = vector.shape_cast %182 : vector<1x5x256xf32> to vector<5x256xf32>
    %184 = vector.shape_cast %181 : vector<5x256xf32> to vector<1x5x256xf32>
    tpu.vector_store %arg6[%c3_119, %c0_120, %c0_121], %184 {strides = array<i32>} : memref<4x5x256xf32, #tpu.memory_space<vmem>>, vector<1x5x256xf32>,
    return
  }
  func.func @transform_0(%arg0: i32, %arg1: i32) -> (i32, i32, i32) {
    %c0_i32 = arith.constant 0 : i32
    %c0_i32_0 = arith.constant 0 : i32
    return %arg0, %c0_i32, %arg1 : i32, i32, i32
  }
  func.func @transform_1(%arg0: i32, %arg1: i32) -> (i32, i32, i32) {
    %c0_i32 = arith.constant 0 : i32
    %c0_i32_0 = arith.constant 0 : i32
    %c0_i32_1 = arith.constant 0 : i32
    %c0_i32_2 = arith.constant 0 : i32
    return %c0_i32, %c0_i32_0, %c0_i32_1 : i32, i32, i32
  }
  func.func @transform_2(%arg0: i32, %arg1: i32) -> (i32, i32, i32) {
    %c0_i32 = arith.constant 0 : i32
    %c0_i32_0 = arith.constant 0 : i32
    %c0_i32_1 = arith.constant 0 : i32
    %c0_i32_2 = arith.constant 0 : i32
    return %c0_i32, %c0_i32_0, %c0_i32_1 : i32, i32, i32
  }
  func.func @transform_3(%arg0: i32, %arg1: i32) -> (i32, i32, i32) {
    %c0_i32 = arith.constant 0 : i32
    %c0_i32_0 = arith.constant 0 : i32
    %c0_i32_1 = arith.constant 0 : i32
    %c0_i32_2 = arith.constant 0 : i32
    return %c0_i32, %c0_i32_0, %c0_i32_1 : i32, i32, i32
  }
  func.func @transform_4(%arg0: i32, %arg1: i32) -> (i32, i32, i32) {
    %c0_i32 = arith.constant 0 : i32
    %c0_i32_0 = arith.constant 0 : i32
    return %arg0, %c0_i32, %arg1 : i32, i32, i32
  }
}

</mosaic_0001>

<llo_original>
// kernel: tpu_custom_call.1
$region0: #{tpu_custom_call.1}
  #allocation0 [shape = 'u32[]', space=smem, size = 0x4, offset = 0x4, fixed_abs, tag = 'smem constant byte address 0x4 - core index']
  #allocation1 [shape = 'u32[144,128]{1,0:T(1,128)}', space=vmem, size = 0x12000, scoped, tag = 'internal scratch']
  #allocation2 [shape = 'f32[32,1024]{1,0:T(8,128)}', space=vmem, size = 0x20000, scoped, tag = 'scratch operand']
  %s0 = inlined_call_operand.vmem [shape: f32[8,3,256], index: 0, kind: input, shape index: {}]
  %s1 = inlined_call_operand.vmem [shape: f32[3,32,1], index: 1, kind: input, shape index: {}]
  %s2 = inlined_call_operand.vmem [shape: f32[6,32,32], index: 2, kind: input, shape index: {}]
  %s3 = inlined_call_operand.vmem [shape: f32[7,32,1], index: 3, kind: input, shape index: {}]
  %s4 = inlined_call_operand.vmem [shape: f32[8,5,256], index: 4, kind: output, shape index: {}]
  %s5 = sld [smem:[#allocation0]]
  $region49: #{tpu_custom_call.1} parent=0
    _
  %s7 = ssub.s32 1, %s5
  %s8 = scalar_select 0, %s7, %s5
  loop: start=0, step=1, limit=4
  $region2: #{tpu_custom_call.1} parent=0 // loop_pre_header
    _
  $region3: #{tpu_custom_call.1} parent=0 // loop_header
    %s10 = sphi 0, %s14
    %p11 = scmp.ge.s32.totalorder %s10, 4
    %s17 = sphi 0, %s29
    %s18 = sphi 0, %s25
    %s19 = sphi 0, %s17
    %s20 = sphi 0, %s18
    %s21 = sphi 0, %s19
    %s22 = sphi 0, %s20
    %s34 = sphi 0, %s36
    %s37 = sphi 0, %s34
    %s38 = sphi 0, %s37
    %s54 = sphi 0, %s38
    %s58 = sphi 0, %s58
    %s60 = sphi 0, %s58
    %s61 = sphi 0, %s60
    %s75 = sphi 0, %s61
    %s79 = sphi 0, %s79
    %s81 = sphi 0, %s79
    %s82 = sphi 0, %s81
    %s96 = sphi 0, %s82
    %s100 = sphi 0, %s100
    %s102 = sphi 0, %s100
    %s103 = sphi 0, %s102
    %s117 = sphi 0, %s103
    %s125 = sphi 0, %s127
    %s128 = sphi 0, %s125
    %s129 = sphi 0, %s128
    %s145 = sphi 0, %s129
  $region4: #{tpu_custom_call.1} parent=0 // loop_header_branch
    %13 = sbr.rel (%p11) target = $region8
  $region5: #{tpu_custom_call.1} parent=0 // loop_body
    %s15 = ssub.s32 %s10, 1
    %s16 = ssub.s32 %s10, 2
    %s23 = sadd.s32 1, %s18
    %p24 = scmp.ge.s32.totalorder %s23, 1
    %s25 = scalar_select %p24, 0, %s23
    %s26 = sadd.s32 1, %s17
    %s27 = scalar_select %p24, %s26, %s17
    %p28 = scmp.ge.s32.totalorder %s27, 2
    %s29 = scalar_select %p28, 0, %s27
    %s30 = ssub.s32 %s17, %s29
    %s31 = ssub.s32 %s18, %s25
    %s32 = sor.u32 %s30, %s31
    %p33 = scmp.eq.s32.totalorder %s32, 0
    %s35 = sadd.s32 %s34, 1
    %s36 = scalar_select %p33, %s34, %s35
    %p39 = pneg %p33
    %p40 = scmp.eq.s32.totalorder %s10, 1
    %p41 = por %p39, %p40
    %p42 = scmp.ne.s32.totalorder %s34, %s37
    %p43 = scmp.eq.s32.totalorder %s10, 0
    %p44 = por %p42, %p43
    %p45 = scmp.ne.s32.totalorder %s34, %s37
    %p46 = scmp.eq.s32.totalorder %s15, 1
    %p47 = por %p45, %p46
    %p48 = scmp.ne.s32.totalorder %s37, %s38
    %p49 = scmp.eq.s32.totalorder %s15, 0
    %p50 = por %p48, %p49
    %p51 = scmp.ne.s32.totalorder %s37, %s38
    %p52 = scmp.eq.s32.totalorder %s16, 1
    %p53 = por %p51, %p52
    %p55 = scmp.ne.s32.totalorder %s38, %s54
    %p56 = scmp.eq.s32.totalorder %s16, 0
    %p57 = por %p55, %p56
    %s59 = sadd.s32 %s58, 1
    %p62 = scmp.eq.s32.totalorder %s10, 1
    %p63 = scmp.ne.s32.totalorder %s58, %s60
    %p64 = scmp.eq.s32.totalorder %s10, 0
    %p65 = por %p63, %p64
    %p66 = scmp.ne.s32.totalorder %s58, %s60
    %p67 = scmp.eq.s32.totalorder %s15, 1
    %p68 = por %p66, %p67
    %p69 = scmp.ne.s32.totalorder %s60, %s61
    %p70 = scmp.eq.s32.totalorder %s15, 0
    %p71 = por %p69, %p70
    %p72 = scmp.ne.s32.totalorder %s60, %s61
    %p73 = scmp.eq.s32.totalorder %s16, 1
    %p74 = por %p72, %p73
    %p76 = scmp.ne.s32.totalorder %s61, %s75
    %p77 = scmp.eq.s32.totalorder %s16, 0
    %p78 = por %p76, %p77
    %s80 = sadd.s32 %s79, 1
    %p83 = scmp.eq.s32.totalorder %s10, 1
    %p84 = scmp.ne.s32.totalorder %s79, %s81
    %p85 = scmp.eq.s32.totalorder %s10, 0
    %p86 = por %p84, %p85
    %p87 = scmp.ne.s32.totalorder %s79, %s81
    %p88 = scmp.eq.s32.totalorder %s15, 1
    %p89 = por %p87, %p88
    %p90 = scmp.ne.s32.totalorder %s81, %s82
    %p91 = scmp.eq.s32.totalorder %s15, 0
    %p92 = por %p90, %p91
    %p93 = scmp.ne.s32.totalorder %s81, %s82
    %p94 = scmp.eq.s32.totalorder %s16, 1
    %p95 = por %p93, %p94
    %p97 = scmp.ne.s32.totalorder %s82, %s96
    %p98 = scmp.eq.s32.totalorder %s16, 0
    %p99 = por %p97, %p98
    %s101 = sadd.s32 %s100, 1
    %p104 = scmp.eq.s32.totalorder %s10, 1
    %p105 = scmp.ne.s32.totalorder %s100, %s102
    %p106 = scmp.eq.s32.totalorder %s10, 0
    %p107 = por %p105, %p106
    %p108 = scmp.ne.s32.totalorder %s100, %s102
    %p109 = scmp.eq.s32.totalorder %s15, 1
    %p110 = por %p108, %p109
    %p111 = scmp.ne.s32.totalorder %s102, %s103
    %p112 = scmp.eq.s32.totalorder %s15, 0
    %p113 = por %p111, %p112
    %p114 = scmp.ne.s32.totalorder %s102, %s103
    %p115 = scmp.eq.s32.totalorder %s16, 1
    %p116 = por %p114, %p115
    %p118 = scmp.ne.s32.totalorder %s103, %s117
    %p119 = scmp.eq.s32.totalorder %s16, 0
    %p120 = por %p118, %p119
    %s121 = ssub.s32 %s17, %s29
    %s122 = ssub.s32 %s18, %s25
    %s123 = sor.u32 %s121, %s122
    %p124 = scmp.eq.s32.totalorder %s123, 0
    %s126 = sadd.s32 %s125, 1
    %s127 = scalar_select %p124, %s125, %s126
    %p130 = pneg %p124
    %p131 = scmp.eq.s32.totalorder %s10, 1
    %p132 = por %p130, %p131
    %p133 = scmp.ne.s32.totalorder %s125, %s128
    %p134 = scmp.eq.s32.totalorder %s10, 0
    %p135 = por %p133, %p134
    %p136 = scmp.ne.s32.totalorder %s125, %s128
    %p137 = scmp.eq.s32.totalorder %s15, 1
    %p138 = por %p136, %p137
    %p139 = scmp.ne.s32.totalorder %s128, %s129
    %p140 = scmp.eq.s32.totalorder %s15, 0
    %p141 = por %p139, %p140
    %p142 = scmp.ne.s32.totalorder %s128, %s129
    %p143 = scmp.eq.s32.totalorder %s16, 1
    %p144 = por %p142, %p143
    %p146 = scmp.ne.s32.totalorder %s129, %s145
    %p147 = scmp.eq.s32.totalorder %s16, 0
    %p148 = por %p146, %p147
    %p149 = scmp.le.s32.totalorder 1, %s10
    %p150 = scmp.lt.s32.totalorder %s10, 3
    %p151 = pnand %p149, %p150
    %p152 = pneg %p151
    // Predicated region
    $region9: #{tpu_custom_call.1} parent=5 // pred_check
      _
    $region10: #{tpu_custom_call.1} parent=5 // pred_check_branch
      %154 = sbr.rel (%p151) target = $region12
    $region11: #{tpu_custom_call.1} parent=5 // pred_region
      %s155 = ssub.s32 %s10, 1
      // Predicated region
      $region13: #{tpu_custom_call.1} parent=11 // pred_check
        %p156 = pneg %p71
      $region14: #{tpu_custom_call.1} parent=11 // pred_check_branch
        %158 = sbr.rel (%p156) target = $region16
      $region15: #{tpu_custom_call.1} parent=11 // pred_region
        _
      $region16: #{tpu_custom_call.1} parent=11 // pred_fallthru
        _
      // Predicated region
      $region17: #{tpu_custom_call.1} parent=11 // pred_check
        %p159 = pneg %p92
      $region18: #{tpu_custom_call.1} parent=11 // pred_check_branch
        %161 = sbr.rel (%p159) target = $region20
      $region19: #{tpu_custom_call.1} parent=11 // pred_region
        _
      $region20: #{tpu_custom_call.1} parent=11 // pred_fallthru
        _
      // Predicated region
      $region21: #{tpu_custom_call.1} parent=11 // pred_check
        %p162 = pneg %p113
      $region22: #{tpu_custom_call.1} parent=11 // pred_check_branch
        %164 = sbr.rel (%p162) target = $region24
      $region23: #{tpu_custom_call.1} parent=11 // pred_region
        _
      $region24: #{tpu_custom_call.1} parent=11 // pred_fallthru
        _
    $region12: #{tpu_custom_call.1} parent=5 // pred_fallthru
      _
    %p165 = scmp.lt.s32.totalorder %s10, 2
    // Predicated region
    $region25: #{tpu_custom_call.1} parent=5 // pred_check
      %p166 = pneg %p165
    $region26: #{tpu_custom_call.1} parent=5 // pred_check_branch
      %168 = sbr.rel (%p166) target = $region28
    $region27: #{tpu_custom_call.1} parent=5 // pred_region
      // Predicated region
      $region29: #{tpu_custom_call.1} parent=27 // pred_check
        %p169 = pneg %p44
      $region30: #{tpu_custom_call.1} parent=27 // pred_check_branch
        %171 = sbr.rel (%p169) target = $region32
      $region31: #{tpu_custom_call.1} parent=27 // pred_region
        %s172 = smul.u32 4, %s17
        %s173 = smul.u32 2, %s18
        %p174 = scmp.lt.s32.totalorder %s172, 7
        %s175 = scalar_select %p174, %s172, 7
        %p176 = scmp.lt.s32.totalorder %s173, 1
        %s177 = scalar_select %p176, %s173, 1
        %s178 = smul.addr %s175, 2
        %s179 = sadd.s32 %s177, %s178
        %s180 = smul.addr %s179, 4
        %s181 = scalar_lea.vmem %s0, %s180
        %s182 = smul.u32 4, %s17
        %s183 = smul.u32 2, %s18
      $region32: #{tpu_custom_call.1} parent=27 // pred_fallthru
        _
    $region28: #{tpu_custom_call.1} parent=5 // pred_fallthru
      _
    %p184 = scmp.le.s32.totalorder 1, %s10
    %p185 = scmp.lt.s32.totalorder %s10, 3
    %p186 = pnand %p184, %p185
    %p187 = pneg %p186
    // Predicated region
    $region33: #{tpu_custom_call.1} parent=5 // pred_check
      _
    $region34: #{tpu_custom_call.1} parent=5 // pred_check_branch
      %189 = sbr.rel (%p186) target = $region36
    $region35: #{tpu_custom_call.1} parent=5 // pred_region
      %s190 = ssub.s32 %s10, 1
      %s191 = smul.u32 4, %s19
      %s192 = smul.u32 2, %s20
      %p193 = scmp.lt.s32.totalorder %s191, 7
      %s194 = scalar_select %p193, %s191, 7
      %p195 = scmp.lt.s32.totalorder %s192, 1
      %s196 = scalar_select %p195, %s192, 1
      %s197 = smul.addr %s194, 2
      %s198 = sadd.s32 %s196, %s197
      %s199 = smul.addr %s198, 4
      %s200 = scalar_lea.vmem %s0, %s199
      %p201 = pneg %p50
      %p202 = pneg %p47
      %p203 = pneg %p71
      %p204 = pneg %p68
      %p205 = pneg %p92
      %p206 = pneg %p89
      %p207 = pneg %p113
      %p208 = pneg %p110
      %p209 = pneg %p141
      %p210 = pneg %p138
      %s211 = smul.u32 4, %s19
      %s212 = smul.u32 2, %s20
      %p213 = scmp.lt.s32.totalorder %s211, 7
      %s214 = scalar_select %p213, %s211, 7
      %p215 = scmp.lt.s32.totalorder %s212, 1
      %s216 = scalar_select %p215, %s212, 1
      %s217 = smul.addr %s214, 2
      %s218 = sadd.s32 %s216, %s217
      %s219 = smul.addr %s218, 8
      %s220 = scalar_lea.vmem %s4, %s219
      %s221 = smul.u32 4, %s19
      %s222 = smul.u32 2, %s20
      %p223 = scmp.lt.s32.totalorder %s221, 7
      %s224 = scalar_select %p223, %s221, 7
      %p225 = scmp.lt.s32.totalorder %s222, 1
      %s226 = scalar_select %p225, %s222, 1
      %s227 = smul.addr %s224, 2
      %s228 = sadd.s32 %s226, %s227
      %s229 = smul.addr %s228, 4
      %s230 = scalar_lea.vmem %s0, %s229
      %s231 = smul.u32 4, %s19
      %s232 = smul.u32 2, %s20
      %s233 = smul.u32 4, %s19
      %s234 = smul.u32 2, %s20
      %p235 = scmp.lt.s32.totalorder %s233, 7
      %s236 = scalar_select %p235, %s233, 7
      %p237 = scmp.lt.s32.totalorder %s234, 1
      %s238 = scalar_select %p237, %s234, 1
      %s239 = smul.addr %s236, 2
      %s240 = sadd.s32 %s238, %s239
      %s241 = smul.addr %s240, 8
      %s242 = scalar_lea.vmem %s4, %s241
      %s243 = smul.u32 4, %s19
      %s244 = smul.u32 2, %s20
      %v245 = vld [vmem:[%s230] sm:$0x77]
      %v246 = vld [vmem:[%s1] sm:$0xff]
      %v247 = vld [vmem:[%s1 + $0x8] sm:$0xff]
      %v248 = vld [vmem:[%s1 + $0x10] sm:$0xff]
      %v249 = vld [vmem:[%s1 + $0x18] sm:$0xff]
      %251 = vset.pattern.permute.xlu0 0
      %252 = vperm.xlu0 %251, %v246
      %v253 = vpop.permute.xlu0 %252
      %256 = vset.pattern.permute.xlu0 0
      %257 = vperm.xlu0 %256, %v247
      %v258 = vpop.permute.xlu0 %257
      %261 = vset.pattern.permute.xlu0 0
      %262 = vperm.xlu0 %261, %v248
      %v263 = vpop.permute.xlu0 %262
      %266 = vset.pattern.permute.xlu0 0
      %267 = vperm.xlu0 %266, %v249
      %v268 = vpop.permute.xlu0 %267
      %v271 = vlaneseq
      %v272 = vshrl.u32 %v271, 7
      %v273 = vsub.s32 0, %v272
      %v274 = vrot.slane %v245, %v273
      %v275 = vlaneseq
      %v276 = vshrl.u32 %v275, 7
      %v277 = vsub.s32 4, %v276
      %v278 = vrot.slane %v245, %v277
      %v281 = vlaneseq
      %v282 = vshrl.u32 %v281, 7
      %v283 = vsub.s32 0, %v282
      %v284 = vrot.slane %v274, %v283
      %v285 = vlaneseq
      %v286 = vshrl.u32 %v285, 7
      %v287 = vsub.s32 0, %v286
      %v288 = vrot.slane %v278, %v287
      %v289 = vmul.f32 %v253, %v284
      %v290 = vmul.f32 %v253, %v288
      %v291 = vmul.f32 %v258, %v284
      %v292 = vmul.f32 %v258, %v288
      %v293 = vmul.f32 %v263, %v284
      %v294 = vmul.f32 %v263, %v288
      %v295 = vmul.f32 %v268, %v284
      %v296 = vmul.f32 %v268, %v288
      %s297 = scalar_lea.vmem %s1, 32
      %v298 = vld [vmem:[%s297] sm:$0xff]
      %v299 = vld [vmem:[%s297 + $0x8] sm:$0xff]
      %v300 = vld [vmem:[%s297 + $0x10] sm:$0xff]
      %v301 = vld [vmem:[%s297 + $0x18] sm:$0xff]
      %303 = vset.pattern.permute.xlu0 0
      %304 = vperm.xlu0 %303, %v298
      %v305 = vpop.permute.xlu0 %304
      %308 = vset.pattern.permute.xlu0 0
      %309 = vperm.xlu0 %308, %v299
      %v310 = vpop.permute.xlu0 %309
      %313 = vset.pattern.permute.xlu0 0
      %314 = vperm.xlu0 %313, %v300
      %v315 = vpop.permute.xlu0 %314
      %318 = vset.pattern.permute.xlu0 0
      %319 = vperm.xlu0 %318, %v301
      %v320 = vpop.permute.xlu0 %319
      %v322 = vlaneseq
      %v323 = vshrl.u32 %v322, 7
      %v324 = vsub.s32 1, %v323
      %v325 = vrot.slane %v245, %v324
      %v326 = vlaneseq
      %v327 = vshrl.u32 %v326, 7
      %v328 = vsub.s32 5, %v327
      %v329 = vrot.slane %v245, %v328
      %v332 = vlaneseq
      %v333 = vshrl.u32 %v332, 7
      %v334 = vsub.s32 1, %v333
      %v335 = vrot.slane %v325, %v334
      %v336 = vlaneseq
      %v337 = vshrl.u32 %v336, 7
      %v338 = vsub.s32 1, %v337
      %v339 = vrot.slane %v329, %v338
      %v340 = vmul.f32 %v305, %v335
      %v341 = vmul.f32 %v305, %v339
      %v342 = vmul.f32 %v310, %v335
      %v343 = vmul.f32 %v310, %v339
      %v344 = vmul.f32 %v315, %v335
      %v345 = vmul.f32 %v315, %v339
      %v346 = vmul.f32 %v320, %v335
      %v347 = vmul.f32 %v320, %v339
      %v348 = vadd.f32 %v289, %v340
      %v349 = vadd.f32 %v290, %v341
      %v350 = vadd.f32 %v291, %v342
      %v351 = vadd.f32 %v292, %v343
      %v352 = vadd.f32 %v293, %v344
      %v353 = vadd.f32 %v294, %v345
      %v354 = vadd.f32 %v295, %v346
      %v355 = vadd.f32 %v296, %v347
      %s356 = scalar_lea.vmem %s1, 64
      %v357 = vld [vmem:[%s356] sm:$0xff]
      %v358 = vld [vmem:[%s356 + $0x8] sm:$0xff]
      %v359 = vld [vmem:[%s356 + $0x10] sm:$0xff]
      %v360 = vld [vmem:[%s356 + $0x18] sm:$0xff]
      %362 = vset.pattern.permute.xlu0 0
      %363 = vperm.xlu0 %362, %v357
      %v364 = vpop.permute.xlu0 %363
      %367 = vset.pattern.permute.xlu0 0
      %368 = vperm.xlu0 %367, %v358
      %v369 = vpop.permute.xlu0 %368
      %372 = vset.pattern.permute.xlu0 0
      %373 = vperm.xlu0 %372, %v359
      %v374 = vpop.permute.xlu0 %373
      %377 = vset.pattern.permute.xlu0 0
      %378 = vperm.xlu0 %377, %v360
      %v379 = vpop.permute.xlu0 %378
      %v381 = vlaneseq
      %v382 = vshrl.u32 %v381, 7
      %v383 = vsub.s32 2, %v382
      %v384 = vrot.slane %v245, %v383
      %v385 = vlaneseq
      %v386 = vshrl.u32 %v385, 7
      %v387 = vsub.s32 6, %v386
      %v388 = vrot.slane %v245, %v387
      %v391 = vlaneseq
      %v392 = vshrl.u32 %v391, 7
      %v393 = vsub.s32 2, %v392
      %v394 = vrot.slane %v384, %v393
      %v395 = vlaneseq
      %v396 = vshrl.u32 %v395, 7
      %v397 = vsub.s32 2, %v396
      %v398 = vrot.slane %v388, %v397
      %v399 = vmul.f32 %v364, %v394
      %v400 = vmul.f32 %v364, %v398
      %v401 = vmul.f32 %v369, %v394
      %v402 = vmul.f32 %v369, %v398
      %v403 = vmul.f32 %v374, %v394
      %v404 = vmul.f32 %v374, %v398
      %v405 = vmul.f32 %v379, %v394
      %v406 = vmul.f32 %v379, %v398
      %v407 = vadd.f32 %v348, %v399
      %v408 = vadd.f32 %v349, %v400
      %v409 = vadd.f32 %v350, %v401
      %v410 = vadd.f32 %v351, %v402
      %v411 = vadd.f32 %v352, %v403
      %v412 = vadd.f32 %v353, %v404
      %v413 = vadd.f32 %v354, %v405
      %v414 = vadd.f32 %v355, %v406
      %v415 = vld [vmem:[%s3] sm:$0xff]
      %v416 = vld [vmem:[%s3 + $0x8] sm:$0xff]
      %v417 = vld [vmem:[%s3 + $0x10] sm:$0xff]
      %v418 = vld [vmem:[%s3 + $0x18] sm:$0xff]
      %420 = vset.pattern.permute.xlu0 0
      %421 = vperm.xlu0 %420, %v415
      %v422 = vpop.permute.xlu0 %421
      %425 = vset.pattern.permute.xlu0 0
      %426 = vperm.xlu0 %425, %v416
      %v427 = vpop.permute.xlu0 %426
      %430 = vset.pattern.permute.xlu0 0
      %431 = vperm.xlu0 %430, %v417
      %v432 = vpop.permute.xlu0 %431
      %435 = vset.pattern.permute.xlu0 0
      %436 = vperm.xlu0 %435, %v418
      %v437 = vpop.permute.xlu0 %436
      %v439 = vadd.f32 %v407, %v422
      %v440 = vadd.f32 %v408, %v422
      %v441 = vadd.f32 %v409, %v427
      %v442 = vadd.f32 %v410, %v427
      %v443 = vadd.f32 %v411, %v432
      %v444 = vadd.f32 %v412, %v432
      %v445 = vadd.f32 %v413, %v437
      %v446 = vadd.f32 %v414, %v437
      %v447 = vmax.f32 %v439, 0.0
      %v448 = vmax.f32 %v440, 0.0
      %v449 = vmax.f32 %v441, 0.0
      %v450 = vmax.f32 %v442, 0.0
      %v451 = vmax.f32 %v443, 0.0
      %v452 = vmax.f32 %v444, 0.0
      %v453 = vmax.f32 %v445, 0.0
      %v454 = vmax.f32 %v446, 0.0
      %455 = vst [vmem:[#allocation2] sm:$0xff] %v447
      %456 = vst [vmem:[#allocation2 + $0x8] sm:$0xff] %v448
      %457 = vst [vmem:[#allocation2 + $0x40] sm:$0xff] %v449
      %458 = vst [vmem:[#allocation2 + $0x48] sm:$0xff] %v450
      %459 = vst [vmem:[#allocation2 + $0x80] sm:$0xff] %v451
      %460 = vst [vmem:[#allocation2 + $0x88] sm:$0xff] %v452
      %461 = vst [vmem:[#allocation2 + $0xc0] sm:$0xff] %v453
      %462 = vst [vmem:[#allocation2 + $0xc8] sm:$0xff] %v454
      %s463 = scalar_lea.vmem %s230, 8
      %v464 = vld [vmem:[%s463] sm:$0x77]
      %v465 = vld [vmem:[%s1] sm:$0xff]
      %v466 = vld [vmem:[%s1 + $0x8] sm:$0xff]
      %v467 = vld [vmem:[%s1 + $0x10] sm:$0xff]
      %v468 = vld [vmem:[%s1 + $0x18] sm:$0xff]
      %470 = vset.pattern.permute.xlu0 0
      %471 = vperm.xlu0 %470, %v465
      %v472 = vpop.permute.xlu0 %471
      %475 = vset.pattern.permute.xlu0 0
      %476 = vperm.xlu0 %475, %v466
      %v477 = vpop.permute.xlu0 %476
      %480 = vset.pattern.permute.xlu0 0
      %481 = vperm.xlu0 %480, %v467
      %v482 = vpop.permute.xlu0 %481
      %485 = vset.pattern.permute.xlu0 0
      %486 = vperm.xlu0 %485, %v468
      %v487 = vpop.permute.xlu0 %486
      %v490 = vlaneseq
      %v491 = vshrl.u32 %v490, 7
      %v492 = vsub.s32 0, %v491
      %v493 = vrot.slane %v464, %v492
      %v494 = vlaneseq
      %v495 = vshrl.u32 %v494, 7
      %v496 = vsub.s32 4, %v495
      %v497 = vrot.slane %v464, %v496
      %v500 = vlaneseq
      %v501 = vshrl.u32 %v500, 7
      %v502 = vsub.s32 0, %v501
      %v503 = vrot.slane %v493, %v502
      %v504 = vlaneseq
      %v505 = vshrl.u32 %v504, 7
      %v506 = vsub.s32 0, %v505
      %v507 = vrot.slane %v497, %v506
      %v508 = vmul.f32 %v472, %v503
      %v509 = vmul.f32 %v472, %v507
      %v510 = vmul.f32 %v477, %v503
      %v511 = vmul.f32 %v477, %v507
      %v512 = vmul.f32 %v482, %v503
      %v513 = vmul.f32 %v482, %v507
      %v514 = vmul.f32 %v487, %v503
      %v515 = vmul.f32 %v487, %v507
      %v516 = vld [vmem:[%s297] sm:$0xff]
      %v517 = vld [vmem:[%s297 + $0x8] sm:$0xff]
      %v518 = vld [vmem:[%s297 + $0x10] sm:$0xff]
      %v519 = vld [vmem:[%s297 + $0x18] sm:$0xff]
      %521 = vset.pattern.permute.xlu0 0
      %522 = vperm.xlu0 %521, %v516
      %v523 = vpop.permute.xlu0 %522
      %526 = vset.pattern.permute.xlu0 0
      %527 = vperm.xlu0 %526, %v517
      %v528 = vpop.permute.xlu0 %527
      %531 = vset.pattern.permute.xlu0 0
      %532 = vperm.xlu0 %531, %v518
      %v533 = vpop.permute.xlu0 %532
      %536 = vset.pattern.permute.xlu0 0
      %537 = vperm.xlu0 %536, %v519
      %v538 = vpop.permute.xlu0 %537
      %v540 = vlaneseq
      %v541 = vshrl.u32 %v540, 7
      %v542 = vsub.s32 1, %v541
      %v543 = vrot.slane %v464, %v542
      %v544 = vlaneseq
      %v545 = vshrl.u32 %v544, 7
      %v546 = vsub.s32 5, %v545
      %v547 = vrot.slane %v464, %v546
      %v550 = vlaneseq
      %v551 = vshrl.u32 %v550, 7
      %v552 = vsub.s32 1, %v551
      %v553 = vrot.slane %v543, %v552
      %v554 = vlaneseq
      %v555 = vshrl.u32 %v554, 7
      %v556 = vsub.s32 1, %v555
      %v557 = vrot.slane %v547, %v556
      %v558 = vmul.f32 %v523, %v553
      %v559 = vmul.f32 %v523, %v557
      %v560 = vmul.f32 %v528, %v553
      %v561 = vmul.f32 %v528, %v557
      %v562 = vmul.f32 %v533, %v553
      %v563 = vmul.f32 %v533, %v557
      %v564 = vmul.f32 %v538, %v553
      %v565 = vmul.f32 %v538, %v557
      %v566 = vadd.f32 %v508, %v558
      %v567 = vadd.f32 %v509, %v559
      %v568 = vadd.f32 %v510, %v560
      %v569 = vadd.f32 %v511, %v561
      %v570 = vadd.f32 %v512, %v562
      %v571 = vadd.f32 %v513, %v563
      %v572 = vadd.f32 %v514, %v564
      %v573 = vadd.f32 %v515, %v565
      %v574 = vld [vmem:[%s356] sm:$0xff]
      %v575 = vld [vmem:[%s356 + $0x8] sm:$0xff]
      %v576 = vld [vmem:[%s356 + $0x10] sm:$0xff]
      %v577 = vld [vmem:[%s356 + $0x18] sm:$0xff]
      %579 = vset.pattern.permute.xlu0 0
      %580 = vperm.xlu0 %579, %v574
      %v581 = vpop.permute.xlu0 %580
      %584 = vset.pattern.permute.xlu0 0
      %585 = vperm.xlu0 %584, %v575
      %v586 = vpop.permute.xlu0 %585
      %589 = vset.pattern.permute.xlu0 0
      %590 = vperm.xlu0 %589, %v576
      %v591 = vpop.permute.xlu0 %590
      %594 = vset.pattern.permute.xlu0 0
      %595 = vperm.xlu0 %594, %v577
      %v596 = vpop.permute.xlu0 %595
      %v598 = vlaneseq
      %v599 = vshrl.u32 %v598, 7
      %v600 = vsub.s32 2, %v599
      %v601 = vrot.slane %v464, %v600
      %v602 = vlaneseq
      %v603 = vshrl.u32 %v602, 7
      %v604 = vsub.s32 6, %v603
      %v605 = vrot.slane %v464, %v604
      %v608 = vlaneseq
      %v609 = vshrl.u32 %v608, 7
      %v610 = vsub.s32 2, %v609
      %v611 = vrot.slane %v601, %v610
      %v612 = vlaneseq
      %v613 = vshrl.u32 %v612, 7
      %v614 = vsub.s32 2, %v613
      %v615 = vrot.slane %v605, %v614
      %v616 = vmul.f32 %v581, %v611
      %v617 = vmul.f32 %v581, %v615
      %v618 = vmul.f32 %v586, %v611
      %v619 = vmul.f32 %v586, %v615
      %v620 = vmul.f32 %v591, %v611
      %v621 = vmul.f32 %v591, %v615
      %v622 = vmul.f32 %v596, %v611
      %v623 = vmul.f32 %v596, %v615
      %v624 = vadd.f32 %v566, %v616
      %v625 = vadd.f32 %v567, %v617
      %v626 = vadd.f32 %v568, %v618
      %v627 = vadd.f32 %v569, %v619
      %v628 = vadd.f32 %v570, %v620
      %v629 = vadd.f32 %v571, %v621
      %v630 = vadd.f32 %v572, %v622
      %v631 = vadd.f32 %v573, %v623
      %v632 = vld [vmem:[%s3] sm:$0xff]
      %v633 = vld [vmem:[%s3 + $0x8] sm:$0xff]
      %v634 = vld [vmem:[%s3 + $0x10] sm:$0xff]
      %v635 = vld [vmem:[%s3 + $0x18] sm:$0xff]
      %637 = vset.pattern.permute.xlu0 0
      %638 = vperm.xlu0 %637, %v632
      %v639 = vpop.permute.xlu0 %638
      %642 = vset.pattern.permute.xlu0 0
      %643 = vperm.xlu0 %642, %v633
      %v644 = vpop.permute.xlu0 %643
      %647 = vset.pattern.permute.xlu0 0
      %648 = vperm.xlu0 %647, %v634
      %v649 = vpop.permute.xlu0 %648
      %652 = vset.pattern.permute.xlu0 0
      %653 = vperm.xlu0 %652, %v635
      %v654 = vpop.permute.xlu0 %653
      %v656 = vadd.f32 %v624, %v639
      %v657 = vadd.f32 %v625, %v639
      %v658 = vadd.f32 %v626, %v644
      %v659 = vadd.f32 %v627, %v644
      %v660 = vadd.f32 %v628, %v649
      %v661 = vadd.f32 %v629, %v649
      %v662 = vadd.f32 %v630, %v654
      %v663 = vadd.f32 %v631, %v654
      %v664 = vmax.f32 %v656, 0.0
      %v665 = vmax.f32 %v657, 0.0
      %v666 = vmax.f32 %v658, 0.0
      %v667 = vmax.f32 %v659, 0.0
      %v668 = vmax.f32 %v660, 0.0
      %v669 = vmax.f32 %v661, 0.0
      %v670 = vmax.f32 %v662, 0.0
      %v671 = vmax.f32 %v663, 0.0
      %672 = vst [vmem:[#allocation2 + $0x10] sm:$0xff] %v664
      %673 = vst [vmem:[#allocation2 + $0x18] sm:$0xff] %v665
      %674 = vst [vmem:[#allocation2 + $0x50] sm:$0xff] %v666
      %675 = vst [vmem:[#allocation2 + $0x58] sm:$0xff] %v667
      %676 = vst [vmem:[#allocation2 + $0x90] sm:$0xff] %v668
      %677 = vst [vmem:[#allocation2 + $0x98] sm:$0xff] %v669
      %678 = vst [vmem:[#allocation2 + $0xd0] sm:$0xff] %v670
      %679 = vst [vmem:[#allocation2 + $0xd8] sm:$0xff] %v671
      %s680 = scalar_lea.vmem %s230, 16
      %v681 = vld [vmem:[%s680] sm:$0x77]
      %v682 = vld [vmem:[%s1] sm:$0xff]
      %v683 = vld [vmem:[%s1 + $0x8] sm:$0xff]
      %v684 = vld [vmem:[%s1 + $0x10] sm:$0xff]
      %v685 = vld [vmem:[%s1 + $0x18] sm:$0xff]
      %687 = vset.pattern.permute.xlu0 0
      %688 = vperm.xlu0 %687, %v682
      %v689 = vpop.permute.xlu0 %688
      %692 = vset.pattern.permute.xlu0 0
      %693 = vperm.xlu0 %692, %v683
      %v694 = vpop.permute.xlu0 %693
      %697 = vset.pattern.permute.xlu0 0
      %698 = vperm.xlu0 %697, %v684
      %v699 = vpop.permute.xlu0 %698
      %702 = vset.pattern.permute.xlu0 0
      %703 = vperm.xlu0 %702, %v685
      %v704 = vpop.permute.xlu0 %703
      %v707 = vlaneseq
      %v708 = vshrl.u32 %v707, 7
      %v709 = vsub.s32 0, %v708
      %v710 = vrot.slane %v681, %v709
      %v711 = vlaneseq
      %v712 = vshrl.u32 %v711, 7
      %v713 = vsub.s32 4, %v712
      %v714 = vrot.slane %v681, %v713
      %v717 = vlaneseq
      %v718 = vshrl.u32 %v717, 7
      %v719 = vsub.s32 0, %v718
      %v720 = vrot.slane %v710, %v719
      %v721 = vlaneseq
      %v722 = vshrl.u32 %v721, 7
      %v723 = vsub.s32 0, %v722
      %v724 = vrot.slane %v714, %v723
      %v725 = vmul.f32 %v689, %v720
      %v726 = vmul.f32 %v689, %v724
      %v727 = vmul.f32 %v694, %v720
      %v728 = vmul.f32 %v694, %v724
      %v729 = vmul.f32 %v699, %v720
      %v730 = vmul.f32 %v699, %v724
      %v731 = vmul.f32 %v704, %v720
      %v732 = vmul.f32 %v704, %v724
      %v733 = vld [vmem:[%s297] sm:$0xff]
      %v734 = vld [vmem:[%s297 + $0x8] sm:$0xff]
      %v735 = vld [vmem:[%s297 + $0x10] sm:$0xff]
      %v736 = vld [vmem:[%s297 + $0x18] sm:$0xff]
      %738 = vset.pattern.permute.xlu0 0
      %739 = vperm.xlu0 %738, %v733
      %v740 = vpop.permute.xlu0 %739
      %743 = vset.pattern.permute.xlu0 0
      %744 = vperm.xlu0 %743, %v734
      %v745 = vpop.permute.xlu0 %744
      %748 = vset.pattern.permute.xlu0 0
      %749 = vperm.xlu0 %748, %v735
      %v750 = vpop.permute.xlu0 %749
      %753 = vset.pattern.permute.xlu0 0
      %754 = vperm.xlu0 %753, %v736
      %v755 = vpop.permute.xlu0 %754
      %v757 = vlaneseq
      %v758 = vshrl.u32 %v757, 7
      %v759 = vsub.s32 1, %v758
      %v760 = vrot.slane %v681, %v759
      %v761 = vlaneseq
      %v762 = vshrl.u32 %v761, 7
      %v763 = vsub.s32 5, %v762
      %v764 = vrot.slane %v681, %v763
      %v767 = vlaneseq
      %v768 = vshrl.u32 %v767, 7
      %v769 = vsub.s32 1, %v768
      %v770 = vrot.slane %v760, %v769
      %v771 = vlaneseq
      %v772 = vshrl.u32 %v771, 7
      %v773 = vsub.s32 1, %v772
      %v774 = vrot.slane %v764, %v773
      %v775 = vmul.f32 %v740, %v770
      %v776 = vmul.f32 %v740, %v774
      %v777 = vmul.f32 %v745, %v770
      %v778 = vmul.f32 %v745, %v774
      %v779 = vmul.f32 %v750, %v770
      %v780 = vmul.f32 %v750, %v774
      %v781 = vmul.f32 %v755, %v770
      %v782 = vmul.f32 %v755, %v774
      %v783 = vadd.f32 %v725, %v775
      %v784 = vadd.f32 %v726, %v776
      %v785 = vadd.f32 %v727, %v777
      %v786 = vadd.f32 %v728, %v778
      %v787 = vadd.f32 %v729, %v779
      %v788 = vadd.f32 %v730, %v780
      %v789 = vadd.f32 %v731, %v781
      %v790 = vadd.f32 %v732, %v782
      %v791 = vld [vmem:[%s356] sm:$0xff]
      %v792 = vld [vmem:[%s356 + $0x8] sm:$0xff]
      %v793 = vld [vmem:[%s356 + $0x10] sm:$0xff]
      %v794 = vld [vmem:[%s356 + $0x18] sm:$0xff]
      %796 = vset.pattern.permute.xlu0 0
      %797 = vperm.xlu0 %796, %v791
      %v798 = vpop.permute.xlu0 %797
      %801 = vset.pattern.permute.xlu0 0
      %802 = vperm.xlu0 %801, %v792
      %v803 = vpop.permute.xlu0 %802
      %806 = vset.pattern.permute.xlu0 0
      %807 = vperm.xlu0 %806, %v793
      %v808 = vpop.permute.xlu0 %807
      %811 = vset.pattern.permute.xlu0 0
      %812 = vperm.xlu0 %811, %v794
      %v813 = vpop.permute.xlu0 %812
      %v815 = vlaneseq
      %v816 = vshrl.u32 %v815, 7
      %v817 = vsub.s32 2, %v816
      %v818 = vrot.slane %v681, %v817
      %v819 = vlaneseq
      %v820 = vshrl.u32 %v819, 7
      %v821 = vsub.s32 6, %v820
      %v822 = vrot.slane %v681, %v821
      %v825 = vlaneseq
      %v826 = vshrl.u32 %v825, 7
      %v827 = vsub.s32 2, %v826
      %v828 = vrot.slane %v818, %v827
      %v829 = vlaneseq
      %v830 = vshrl.u32 %v829, 7
      %v831 = vsub.s32 2, %v830
      %v832 = vrot.slane %v822, %v831
      %v833 = vmul.f32 %v798, %v828
      %v834 = vmul.f32 %v798, %v832
      %v835 = vmul.f32 %v803, %v828
      %v836 = vmul.f32 %v803, %v832
      %v837 = vmul.f32 %v808, %v828
      %v838 = vmul.f32 %v808, %v832
      %v839 = vmul.f32 %v813, %v828
      %v840 = vmul.f32 %v813, %v832
      %v841 = vadd.f32 %v783, %v833
      %v842 = vadd.f32 %v784, %v834
      %v843 = vadd.f32 %v785, %v835
      %v844 = vadd.f32 %v786, %v836
      %v845 = vadd.f32 %v787, %v837
      %v846 = vadd.f32 %v788, %v838
      %v847 = vadd.f32 %v789, %v839
      %v848 = vadd.f32 %v790, %v840
      %v849 = vld [vmem:[%s3] sm:$0xff]
      %v850 = vld [vmem:[%s3 + $0x8] sm:$0xff]
      %v851 = vld [vmem:[%s3 + $0x10] sm:$0xff]
      %v852 = vld [vmem:[%s3 + $0x18] sm:$0xff]
      %854 = vset.pattern.permute.xlu0 0
      %855 = vperm.xlu0 %854, %v849
      %v856 = vpop.permute.xlu0 %855
      %859 = vset.pattern.permute.xlu0 0
      %860 = vperm.xlu0 %859, %v850
      %v861 = vpop.permute.xlu0 %860
      %864 = vset.pattern.permute.xlu0 0
      %865 = vperm.xlu0 %864, %v851
      %v866 = vpop.permute.xlu0 %865
      %869 = vset.pattern.permute.xlu0 0
      %870 = vperm.xlu0 %869, %v852
      %v871 = vpop.permute.xlu0 %870
      %v873 = vadd.f32 %v841, %v856
      %v874 = vadd.f32 %v842, %v856
      %v875 = vadd.f32 %v843, %v861
      %v876 = vadd.f32 %v844, %v861
      %v877 = vadd.f32 %v845, %v866
      %v878 = vadd.f32 %v846, %v866
      %v879 = vadd.f32 %v847, %v871
      %v880 = vadd.f32 %v848, %v871
      %v881 = vmax.f32 %v873, 0.0
      %v882 = vmax.f32 %v874, 0.0
      %v883 = vmax.f32 %v875, 0.0
      %v884 = vmax.f32 %v876, 0.0
      %v885 = vmax.f32 %v877, 0.0
      %v886 = vmax.f32 %v878, 0.0
      %v887 = vmax.f32 %v879, 0.0
      %v888 = vmax.f32 %v880, 0.0
      %889 = vst [vmem:[#allocation2 + $0x20] sm:$0xff] %v881
      %890 = vst [vmem:[#allocation2 + $0x28] sm:$0xff] %v882
      %891 = vst [vmem:[#allocation2 + $0x60] sm:$0xff] %v883
      %892 = vst [vmem:[#allocation2 + $0x68] sm:$0xff] %v884
      %893 = vst [vmem:[#allocation2 + $0xa0] sm:$0xff] %v885
      %894 = vst [vmem:[#allocation2 + $0xa8] sm:$0xff] %v886
      %895 = vst [vmem:[#allocation2 + $0xe0] sm:$0xff] %v887
      %896 = vst [vmem:[#allocation2 + $0xe8] sm:$0xff] %v888
      %s897 = scalar_lea.vmem %s230, 24
      %v898 = vld [vmem:[%s897] sm:$0x77]
      %v899 = vld [vmem:[%s1] sm:$0xff]
      %v900 = vld [vmem:[%s1 + $0x8] sm:$0xff]
      %v901 = vld [vmem:[%s1 + $0x10] sm:$0xff]
      %v902 = vld [vmem:[%s1 + $0x18] sm:$0xff]
      %904 = vset.pattern.permute.xlu0 0
      %905 = vperm.xlu0 %904, %v899
      %v906 = vpop.permute.xlu0 %905
      %909 = vset.pattern.permute.xlu0 0
      %910 = vperm.xlu0 %909, %v900
      %v911 = vpop.permute.xlu0 %910
      %914 = vset.pattern.permute.xlu0 0
      %915 = vperm.xlu0 %914, %v901
      %v916 = vpop.permute.xlu0 %915
      %919 = vset.pattern.permute.xlu0 0
      %920 = vperm.xlu0 %919, %v902
      %v921 = vpop.permute.xlu0 %920
      %v924 = vlaneseq
      %v925 = vshrl.u32 %v924, 7
      %v926 = vsub.s32 0, %v925
      %v927 = vrot.slane %v898, %v926
      %v928 = vlaneseq
      %v929 = vshrl.u32 %v928, 7
      %v930 = vsub.s32 4, %v929
      %v931 = vrot.slane %v898, %v930
      %v934 = vlaneseq
      %v935 = vshrl.u32 %v934, 7
      %v936 = vsub.s32 0, %v935
      %v937 = vrot.slane %v927, %v936
      %v938 = vlaneseq
      %v939 = vshrl.u32 %v938, 7
      %v940 = vsub.s32 0, %v939
      %v941 = vrot.slane %v931, %v940
      %v942 = vmul.f32 %v906, %v937
      %v943 = vmul.f32 %v906, %v941
      %v944 = vmul.f32 %v911, %v937
      %v945 = vmul.f32 %v911, %v941
      %v946 = vmul.f32 %v916, %v937
      %v947 = vmul.f32 %v916, %v941
      %v948 = vmul.f32 %v921, %v937
      %v949 = vmul.f32 %v921, %v941
      %v950 = vld [vmem:[%s297] sm:$0xff]
      %v951 = vld [vmem:[%s297 + $0x8] sm:$0xff]
      %v952 = vld [vmem:[%s297 + $0x10] sm:$0xff]
      %v953 = vld [vmem:[%s297 + $0x18] sm:$0xff]
      %955 = vset.pattern.permute.xlu0 0
      %956 = vperm.xlu0 %955, %v950
      %v957 = vpop.permute.xlu0 %956
      %960 = vset.pattern.permute.xlu0 0
      %961 = vperm.xlu0 %960, %v951
      %v962 = vpop.permute.xlu0 %961
      %965 = vset.pattern.permute.xlu0 0
      %966 = vperm.xlu0 %965, %v952
      %v967 = vpop.permute.xlu0 %966
      %970 = vset.pattern.permute.xlu0 0
      %971 = vperm.xlu0 %970, %v953
      %v972 = vpop.permute.xlu0 %971
      %v974 = vlaneseq
      %v975 = vshrl.u32 %v974, 7
      %v976 = vsub.s32 1, %v975
      %v977 = vrot.slane %v898, %v976
      %v978 = vlaneseq
      %v979 = vshrl.u32 %v978, 7
      %v980 = vsub.s32 5, %v979
      %v981 = vrot.slane %v898, %v980
      %v984 = vlaneseq
      %v985 = vshrl.u32 %v984, 7
      %v986 = vsub.s32 1, %v985
      %v987 = vrot.slane %v977, %v986
      %v988 = vlaneseq
      %v989 = vshrl.u32 %v988, 7
      %v990 = vsub.s32 1, %v989
      %v991 = vrot.slane %v981, %v990
      %v992 = vmul.f32 %v957, %v987
      %v993 = vmul.f32 %v957, %v991
      %v994 = vmul.f32 %v962, %v987
      %v995 = vmul.f32 %v962, %v991
      %v996 = vmul.f32 %v967, %v987
      %v997 = vmul.f32 %v967, %v991
      %v998 = vmul.f32 %v972, %v987
      %v999 = vmul.f32 %v972, %v991
      %v1000 = vadd.f32 %v942, %v992
      %v1001 = vadd.f32 %v943, %v993
      %v1002 = vadd.f32 %v944, %v994
      %v1003 = vadd.f32 %v945, %v995
      %v1004 = vadd.f32 %v946, %v996
      %v1005 = vadd.f32 %v947, %v997
      %v1006 = vadd.f32 %v948, %v998
      %v1007 = vadd.f32 %v949, %v999
      %v1008 = vld [vmem:[%s356] sm:$0xff]
      %v1009 = vld [vmem:[%s356 + $0x8] sm:$0xff]
      %v1010 = vld [vmem:[%s356 + $0x10] sm:$0xff]
      %v1011 = vld [vmem:[%s356 + $0x18] sm:$0xff]
      %1013 = vset.pattern.permute.xlu0 0
      %1014 = vperm.xlu0 %1013, %v1008
      %v1015 = vpop.permute.xlu0 %1014
      %1018 = vset.pattern.permute.xlu0 0
      %1019 = vperm.xlu0 %1018, %v1009
      %v1020 = vpop.permute.xlu0 %1019
      %1023 = vset.pattern.permute.xlu0 0
      %1024 = vperm.xlu0 %1023, %v1010
      %v1025 = vpop.permute.xlu0 %1024
      %1028 = vset.pattern.permute.xlu0 0
      %1029 = vperm.xlu0 %1028, %v1011
      %v1030 = vpop.permute.xlu0 %1029
      %v1032 = vlaneseq
      %v1033 = vshrl.u32 %v1032, 7
      %v1034 = vsub.s32 2, %v1033
      %v1035 = vrot.slane %v898, %v1034
      %v1036 = vlaneseq
      %v1037 = vshrl.u32 %v1036, 7
      %v1038 = vsub.s32 6, %v1037
      %v1039 = vrot.slane %v898, %v1038
      %v1042 = vlaneseq
      %v1043 = vshrl.u32 %v1042, 7
      %v1044 = vsub.s32 2, %v1043
      %v1045 = vrot.slane %v1035, %v1044
      %v1046 = vlaneseq
      %v1047 = vshrl.u32 %v1046, 7
      %v1048 = vsub.s32 2, %v1047
      %v1049 = vrot.slane %v1039, %v1048
      %v1050 = vmul.f32 %v1015, %v1045
      %v1051 = vmul.f32 %v1015, %v1049
      %v1052 = vmul.f32 %v1020, %v1045
      %v1053 = vmul.f32 %v1020, %v1049
      %v1054 = vmul.f32 %v1025, %v1045
      %v1055 = vmul.f32 %v1025, %v1049
      %v1056 = vmul.f32 %v1030, %v1045
      %v1057 = vmul.f32 %v1030, %v1049
      %v1058 = vadd.f32 %v1000, %v1050
      %v1059 = vadd.f32 %v1001, %v1051
      %v1060 = vadd.f32 %v1002, %v1052
      %v1061 = vadd.f32 %v1003, %v1053
      %v1062 = vadd.f32 %v1004, %v1054
      %v1063 = vadd.f32 %v1005, %v1055
      %v1064 = vadd.f32 %v1006, %v1056
      %v1065 = vadd.f32 %v1007, %v1057
      %v1066 = vld [vmem:[%s3] sm:$0xff]
      %v1067 = vld [vmem:[%s3 + $0x8] sm:$0xff]
      %v1068 = vld [vmem:[%s3 + $0x10] sm:$0xff]
      %v1069 = vld [vmem:[%s3 + $0x18] sm:$0xff]
      %1071 = vset.pattern.permute.xlu0 0
      %1072 = vperm.xlu0 %1071, %v1066
      %v1073 = vpop.permute.xlu0 %1072
      %1076 = vset.pattern.permute.xlu0 0
      %1077 = vperm.xlu0 %1076, %v1067
      %v1078 = vpop.permute.xlu0 %1077
      %1081 = vset.pattern.permute.xlu0 0
      %1082 = vperm.xlu0 %1081, %v1068
      %v1083 = vpop.permute.xlu0 %1082
      %1086 = vset.pattern.permute.xlu0 0
      %1087 = vperm.xlu0 %1086, %v1069
      %v1088 = vpop.permute.xlu0 %1087
      %v1090 = vadd.f32 %v1058, %v1073
      %v1091 = vadd.f32 %v1059, %v1073
      %v1092 = vadd.f32 %v1060, %v1078
      %v1093 = vadd.f32 %v1061, %v1078
      %v1094 = vadd.f32 %v1062, %v1083
      %v1095 = vadd.f32 %v1063, %v1083
      %v1096 = vadd.f32 %v1064, %v1088
      %v1097 = vadd.f32 %v1065, %v1088
      %v1098 = vmax.f32 %v1090, 0.0
      %v1099 = vmax.f32 %v1091, 0.0
      %v1100 = vmax.f32 %v1092, 0.0
      %v1101 = vmax.f32 %v1093, 0.0
      %v1102 = vmax.f32 %v1094, 0.0
      %v1103 = vmax.f32 %v1095, 0.0
      %v1104 = vmax.f32 %v1096, 0.0
      %v1105 = vmax.f32 %v1097, 0.0
      %1106 = vst [vmem:[#allocation2 + $0x30] sm:$0xff] %v1098
      %1107 = vst [vmem:[#allocation2 + $0x38] sm:$0xff] %v1099
      %1108 = vst [vmem:[#allocation2 + $0x70] sm:$0xff] %v1100
      %1109 = vst [vmem:[#allocation2 + $0x78] sm:$0xff] %v1101
      %1110 = vst [vmem:[#allocation2 + $0xb0] sm:$0xff] %v1102
      %1111 = vst [vmem:[#allocation2 + $0xb8] sm:$0xff] %v1103
      %1112 = vst [vmem:[#allocation2 + $0xf0] sm:$0xff] %v1104
      %1113 = vst [vmem:[#allocation2 + $0xf8] sm:$0xff] %v1105
      %v1114 = vld [vmem:[#allocation2] sm:$0xff]
      %v1115 = vld [vmem:[#allocation2 + $0x8] sm:$0xff]
      %v1116 = vld [vmem:[#allocation2 + $0x10] sm:$0xff]
      %v1117 = vld [vmem:[#allocation2 + $0x18] sm:$0xff]
      %v1118 = vld [vmem:[#allocation2 + $0x20] sm:$0xff]
      %v1119 = vld [vmem:[#allocation2 + $0x28] sm:$0xff]
      %v1120 = vld [vmem:[#allocation2 + $0x30] sm:$0xff]
      %v1121 = vld [vmem:[#allocation2 + $0x38] sm:$0xff]
      %v1122 = vld [vmem:[#allocation2 + $0x40] sm:$0xff]
      %v1123 = vld [vmem:[#allocation2 + $0x48] sm:$0xff]
      %v1124 = vld [vmem:[#allocation2 + $0x50] sm:$0xff]
      %v1125 = vld [vmem:[#allocation2 + $0x58] sm:$0xff]
      %v1126 = vld [vmem:[#allocation2 + $0x60] sm:$0xff]
      %v1127 = vld [vmem:[#allocation2 + $0x68] sm:$0xff]
      %v1128 = vld [vmem:[#allocation2 + $0x70] sm:$0xff]
      %v1129 = vld [vmem:[#allocation2 + $0x78] sm:$0xff]
      %v1130 = vld [vmem:[#allocation2 + $0x80] sm:$0xff]
      %v1131 = vld [vmem:[#allocation2 + $0x88] sm:$0xff]
      %v1132 = vld [vmem:[#allocation2 + $0x90] sm:$0xff]
      %v1133 = vld [vmem:[#allocation2 + $0x98] sm:$0xff]
      %v1134 = vld [vmem:[#allocation2 + $0xa0] sm:$0xff]
      %v1135 = vld [vmem:[#allocation2 + $0xa8] sm:$0xff]
      %v1136 = vld [vmem:[#allocation2 + $0xb0] sm:$0xff]
      %v1137 = vld [vmem:[#allocation2 + $0xb8] sm:$0xff]
      %v1138 = vld [vmem:[#allocation2 + $0xc0] sm:$0xff]
      %v1139 = vld [vmem:[#allocation2 + $0xc8] sm:$0xff]
      %v1140 = vld [vmem:[#allocation2 + $0xd0] sm:$0xff]
      %v1141 = vld [vmem:[#allocation2 + $0xd8] sm:$0xff]
      %v1142 = vld [vmem:[#allocation2 + $0xe0] sm:$0xff]
      %v1143 = vld [vmem:[#allocation2 + $0xe8] sm:$0xff]
      %v1144 = vld [vmem:[#allocation2 + $0xf0] sm:$0xff]
      %v1145 = vld [vmem:[#allocation2 + $0xf8] sm:$0xff]
      %v1146 = vld [vmem:[%s2] sm:$0xff]
      %v1147 = vld [vmem:[%s2 + $0x8] sm:$0xff]
      %v1148 = vld [vmem:[%s2 + $0x10] sm:$0xff]
      %v1149 = vld [vmem:[%s2 + $0x18] sm:$0xff]
      %s1150 = scalar_lea.vmem %s3, 32
      %v1151 = vld [vmem:[%s1150] sm:$0xff]
      %v1152 = vld [vmem:[%s1150 + $0x8] sm:$0xff]
      %v1153 = vld [vmem:[%s1150 + $0x10] sm:$0xff]
      %v1154 = vld [vmem:[%s1150 + $0x18] sm:$0xff]
      %1156 = vset.pattern.permute.xlu0 0
      %1157 = vperm.xlu0 %1156, %v1151
      %v1158 = vpop.permute.xlu0 %1157
      %1161 = vset.pattern.permute.xlu0 0
      %1162 = vperm.xlu0 %1161, %v1152
      %v1163 = vpop.permute.xlu0 %1162
      %1166 = vset.pattern.permute.xlu0 0
      %1167 = vperm.xlu0 %1166, %v1153
      %v1168 = vpop.permute.xlu0 %1167
      %1171 = vset.pattern.permute.xlu0 0
      %1172 = vperm.xlu0 %1171, %v1154
      %v1173 = vpop.permute.xlu0 %1172
      %vm1175 = vcmask 261120
      %v1177 = vsel %vm1175, %v1146, 0
      %v1180 = vsel %vm1175, %v1147, 0
      %v1183 = vsel %vm1175, %v1148, 0
      %v1186 = vsel %vm1175, %v1149, 0
      %1188 = vmatprep.subr.mxu0 0.0
      %1189 = vmatpush1.msra.mxu0 0.0
      %1190 = vmatprep.subr.mxu0 0.0
      %1191 = vmatpush1.msra.mxu0 0.0
      %1192 = vmatprep.subr.mxu0 0.0
      %1193 = vmatpush1.msra.mxu0 0.0
      %1194 = vmatprep.subr.mxu0 0.0
      %1195 = vmatpush1.msra.mxu0 0.0
      %1196 = vmatprep.subr.mxu0 0.0
      %1197 = vmatpush1.msra.mxu0 0.0
      %1198 = vmatprep.subr.mxu0 0.0
      %1199 = vmatpush1.msra.mxu0 0.0
      %1200 = vmatprep.subr.mxu0 0.0
      %1201 = vmatpush1.msra.mxu0 0.0
      %1202 = vmatprep.subr.mxu0 0.0
      %1203 = vmatpush1.msra.mxu0 0.0
      %1204 = vmatprep.subr.mxu0 0.0
      %1205 = vmatpush1.msra.mxu0 0.0
      %1206 = vmatprep.subr.mxu0 0.0
      %1207 = vmatpush1.msra.mxu0 0.0
      %1208 = vmatprep.subr.mxu0 0.0
      %1209 = vmatpush1.msra.mxu0 0.0
      %1210 = vmatprep.subr.mxu0 0.0
      %1211 = vmatpush1.msra.mxu0 0.0
      %1212 = vmatprep.subr.mxu0 %v1139
      %1213 = vmatpush1.msra.mxu0 %v1138
      %1214 = vmatprep.subr.mxu0 %v1131
      %1215 = vmatpush1.msra.mxu0 %v1130
      %1216 = vmatprep.subr.mxu0 %v1123
      %1217 = vmatpush1.msra.mxu0 %v1122
      %1218 = vmatprep.subr.mxu0 %v1115
      %1219 = vmatpush1.msra.mxu0 %v1114
      %1220 = vmatprep.subr.mxu0 0.0
      %1221 = vmatpush2.msra.mxu0 0.0
      %1222 = vmatprep.subr.mxu0 0.0
      %1223 = vmatpush2.msra.mxu0 0.0
      %1224 = vmatprep.subr.mxu0 0.0
      %1225 = vmatpush2.msra.mxu0 0.0
      %1226 = vmatprep.subr.mxu0 0.0
      %1227 = vmatpush2.msra.mxu0 0.0
      %1228 = vmatprep.subr.mxu0 0.0
      %1229 = vmatpush2.msra.mxu0 0.0
      %1230 = vmatprep.subr.mxu0 0.0
      %1231 = vmatpush2.msra.mxu0 0.0
      %1232 = vmatprep.subr.mxu0 0.0
      %1233 = vmatpush2.msra.mxu0 0.0
      %1234 = vmatprep.subr.mxu0 0.0
      %1235 = vmatpush2.msra.mxu0 0.0
      %1236 = vmatprep.subr.mxu0 0.0
      %1237 = vmatpush2.msra.mxu0 0.0
      %1238 = vmatprep.subr.mxu0 0.0
      %1239 = vmatpush2.msra.mxu0 0.0
      %1240 = vmatprep.subr.mxu0 0.0
      %1241 = vmatpush2.msra.mxu0 0.0
      %1242 = vmatprep.subr.mxu0 0.0
      %1243 = vmatpush2.msra.mxu0 0.0
      %1244 = vmatprep.subr.mxu0 0.0
      %1245 = vmatpush2.msra.mxu0 0.0
      %1246 = vmatprep.subr.mxu0 0.0
      %1247 = vmatpush2.msra.mxu0 0.0
      %1248 = vmatprep.subr.mxu0 0.0
      %1249 = vmatpush2.msra.mxu0 0.0
      %1250 = vmatprep.subr.mxu0 0.0
      %1251 = vmatpush2.msra.mxu0 0.0
      %1252 = vmatprep.mubr.f32.mxu0 0.0
      %1253 = vmatmul.mubr.f32.gmra.mxu0 %v1177
      %v1254 = vpop.f32.mrf.mxu0
      %v1255 = vadd.f32 %v1158, %v1254
      %v1256 = vpop.f32.mrf.mxu0
      %v1257 = vadd.f32 %v1158, %v1256
      %1258 = vmatprep.mubr.f32.mxu0 0.0
      %1259 = vmatmul.mubr.f32.gmra.mxu0 %v1180
      %v1260 = vpop.f32.mrf.mxu0
      %v1261 = vadd.f32 %v1163, %v1260
      %v1262 = vpop.f32.mrf.mxu0
      %v1263 = vadd.f32 %v1163, %v1262
      %1264 = vmatprep.mubr.f32.mxu0 0.0
      %1265 = vmatmul.mubr.f32.gmra.mxu0 %v1183
      %v1266 = vpop.f32.mrf.mxu0
      %v1267 = vadd.f32 %v1168, %v1266
      %v1268 = vpop.f32.mrf.mxu0
      %v1269 = vadd.f32 %v1168, %v1268
      %1270 = vmatprep.mubr.f32.mxu0 0.0
      %1271 = vmatmul.mubr.f32.gmra.mxu0 %v1186
      %v1272 = vpop.f32.mrf.mxu0
      %v1273 = vadd.f32 %v1173, %v1272
      %v1274 = vpop.f32.mrf.mxu0
      %v1275 = vadd.f32 %v1173, %v1274
      %1276 = vdwg.mxu0
      %1277 = vmatprep.subr.mxu0 0.0
      %1278 = vmatpush1.msra.mxu0 0.0
      %1279 = vmatprep.subr.mxu0 0.0
      %1280 = vmatpush1.msra.mxu0 0.0
      %1281 = vmatprep.subr.mxu0 0.0
      %1282 = vmatpush1.msra.mxu0 0.0
      %1283 = vmatprep.subr.mxu0 0.0
      %1284 = vmatpush1.msra.mxu0 0.0
      %1285 = vmatprep.subr.mxu0 0.0
      %1286 = vmatpush1.msra.mxu0 0.0
      %1287 = vmatprep.subr.mxu0 0.0
      %1288 = vmatpush1.msra.mxu0 0.0
      %1289 = vmatprep.subr.mxu0 0.0
      %1290 = vmatpush1.msra.mxu0 0.0
      %1291 = vmatprep.subr.mxu0 0.0
      %1292 = vmatpush1.msra.mxu0 0.0
      %1293 = vmatprep.subr.mxu0 0.0
      %1294 = vmatpush1.msra.mxu0 0.0
      %1295 = vmatprep.subr.mxu0 0.0
      %1296 = vmatpush1.msra.mxu0 0.0
      %1297 = vmatprep.subr.mxu0 0.0
      %1298 = vmatpush1.msra.mxu0 0.0
      %1299 = vmatprep.subr.mxu0 0.0
      %1300 = vmatpush1.msra.mxu0 0.0
      %1301 = vmatprep.subr.mxu0 %v1141
      %1302 = vmatpush1.msra.mxu0 %v1140
      %1303 = vmatprep.subr.mxu0 %v1133
      %1304 = vmatpush1.msra.mxu0 %v1132
      %1305 = vmatprep.subr.mxu0 %v1125
      %1306 = vmatpush1.msra.mxu0 %v1124
      %1307 = vmatprep.subr.mxu0 %v1117
      %1308 = vmatpush1.msra.mxu0 %v1116
      %1309 = vmatprep.subr.mxu0 0.0
      %1310 = vmatpush2.msra.mxu0 0.0
      %1311 = vmatprep.subr.mxu0 0.0
      %1312 = vmatpush2.msra.mxu0 0.0
      %1313 = vmatprep.subr.mxu0 0.0
      %1314 = vmatpush2.msra.mxu0 0.0
      %1315 = vmatprep.subr.mxu0 0.0
      %1316 = vmatpush2.msra.mxu0 0.0
      %1317 = vmatprep.subr.mxu0 0.0
      %1318 = vmatpush2.msra.mxu0 0.0
      %1319 = vmatprep.subr.mxu0 0.0
      %1320 = vmatpush2.msra.mxu0 0.0
      %1321 = vmatprep.subr.mxu0 0.0
      %1322 = vmatpush2.msra.mxu0 0.0
      %1323 = vmatprep.subr.mxu0 0.0
      %1324 = vmatpush2.msra.mxu0 0.0
      %1325 = vmatprep.subr.mxu0 0.0
      %1326 = vmatpush2.msra.mxu0 0.0
      %1327 = vmatprep.subr.mxu0 0.0
      %1328 = vmatpush2.msra.mxu0 0.0
      %1329 = vmatprep.subr.mxu0 0.0
      %1330 = vmatpush2.msra.mxu0 0.0
      %1331 = vmatprep.subr.mxu0 0.0
      %1332 = vmatpush2.msra.mxu0 0.0
      %1333 = vmatprep.subr.mxu0 0.0
      %1334 = vmatpush2.msra.mxu0 0.0
      %1335 = vmatprep.subr.mxu0 0.0
      %1336 = vmatpush2.msra.mxu0 0.0
      %1337 = vmatprep.subr.mxu0 0.0
      %1338 = vmatpush2.msra.mxu0 0.0
      %1339 = vmatprep.subr.mxu0 0.0
      %1340 = vmatpush2.msra.mxu0 0.0
      %1341 = vmatprep.mubr.f32.mxu0 0.0
      %1342 = vmatmul.mubr.f32.gmra.mxu0 %v1177
      %v1343 = vpop.f32.mrf.mxu0
      %v1344 = vadd.f32 %v1158, %v1343
      %v1345 = vpop.f32.mrf.mxu0
      %v1346 = vadd.f32 %v1158, %v1345
      %1347 = vmatprep.mubr.f32.mxu0 0.0
      %1348 = vmatmul.mubr.f32.gmra.mxu0 %v1180
      %v1349 = vpop.f32.mrf.mxu0
      %v1350 = vadd.f32 %v1163, %v1349
      %v1351 = vpop.f32.mrf.mxu0
      %v1352 = vadd.f32 %v1163, %v1351
      %1353 = vmatprep.mubr.f32.mxu0 0.0
      %1354 = vmatmul.mubr.f32.gmra.mxu0 %v1183
      %v1355 = vpop.f32.mrf.mxu0
      %v1356 = vadd.f32 %v1168, %v1355
      %v1357 = vpop.f32.mrf.mxu0
      %v1358 = vadd.f32 %v1168, %v1357
      %1359 = vmatprep.mubr.f32.mxu0 0.0
      %1360 = vmatmul.mubr.f32.gmra.mxu0 %v1186
      %v1361 = vpop.f32.mrf.mxu0
      %v1362 = vadd.f32 %v1173, %v1361
      %v1363 = vpop.f32.mrf.mxu0
      %v1364 = vadd.f32 %v1173, %v1363
      %1365 = vdwg.mxu0
      %1366 = vmatprep.subr.mxu0 0.0
      %1367 = vmatpush1.msra.mxu0 0.0
      %1368 = vmatprep.subr.mxu0 0.0
      %1369 = vmatpush1.msra.mxu0 0.0
      %1370 = vmatprep.subr.mxu0 0.0
      %1371 = vmatpush1.msra.mxu0 0.0
      %1372 = vmatprep.subr.mxu0 0.0
      %1373 = vmatpush1.msra.mxu0 0.0
      %1374 = vmatprep.subr.mxu0 0.0
      %1375 = vmatpush1.msra.mxu0 0.0
      %1376 = vmatprep.subr.mxu0 0.0
      %1377 = vmatpush1.msra.mxu0 0.0
      %1378 = vmatprep.subr.mxu0 0.0
      %1379 = vmatpush1.msra.mxu0 0.0
      %1380 = vmatprep.subr.mxu0 0.0
      %1381 = vmatpush1.msra.mxu0 0.0
      %1382 = vmatprep.subr.mxu0 0.0
      %1383 = vmatpush1.msra.mxu0 0.0
      %1384 = vmatprep.subr.mxu0 0.0
      %1385 = vmatpush1.msra.mxu0 0.0
      %1386 = vmatprep.subr.mxu0 0.0
      %1387 = vmatpush1.msra.mxu0 0.0
      %1388 = vmatprep.subr.mxu0 0.0
      %1389 = vmatpush1.msra.mxu0 0.0
      %1390 = vmatprep.subr.mxu0 %v1143
      %1391 = vmatpush1.msra.mxu0 %v1142
      %1392 = vmatprep.subr.mxu0 %v1135
      %1393 = vmatpush1.msra.mxu0 %v1134
      %1394 = vmatprep.subr.mxu0 %v1127
      %1395 = vmatpush1.msra.mxu0 %v1126
      %1396 = vmatprep.subr.mxu0 %v1119
      %1397 = vmatpush1.msra.mxu0 %v1118
      %1398 = vmatprep.subr.mxu0 0.0
      %1399 = vmatpush2.msra.mxu0 0.0
      %1400 = vmatprep.subr.mxu0 0.0
      %1401 = vmatpush2.msra.mxu0 0.0
      %1402 = vmatprep.subr.mxu0 0.0
      %1403 = vmatpush2.msra.mxu0 0.0
      %1404 = vmatprep.subr.mxu0 0.0
      %1405 = vmatpush2.msra.mxu0 0.0
      %1406 = vmatprep.subr.mxu0 0.0
      %1407 = vmatpush2.msra.mxu0 0.0
      %1408 = vmatprep.subr.mxu0 0.0
      %1409 = vmatpush2.msra.mxu0 0.0
      %1410 = vmatprep.subr.mxu0 0.0
      %1411 = vmatpush2.msra.mxu0 0.0
      %1412 = vmatprep.subr.mxu0 0.0
      %1413 = vmatpush2.msra.mxu0 0.0
      %1414 = vmatprep.subr.mxu0 0.0
      %1415 = vmatpush2.msra.mxu0 0.0
      %1416 = vmatprep.subr.mxu0 0.0
      %1417 = vmatpush2.msra.mxu0 0.0
      %1418 = vmatprep.subr.mxu0 0.0
      %1419 = vmatpush2.msra.mxu0 0.0
      %1420 = vmatprep.subr.mxu0 0.0
      %1421 = vmatpush2.msra.mxu0 0.0
      %1422 = vmatprep.subr.mxu0 0.0
      %1423 = vmatpush2.msra.mxu0 0.0
      %1424 = vmatprep.subr.mxu0 0.0
      %1425 = vmatpush2.msra.mxu0 0.0
      %1426 = vmatprep.subr.mxu0 0.0
      %1427 = vmatpush2.msra.mxu0 0.0
      %1428 = vmatprep.subr.mxu0 0.0
      %1429 = vmatpush2.msra.mxu0 0.0
      %1430 = vmatprep.mubr.f32.mxu0 0.0
      %1431 = vmatmul.mubr.f32.gmra.mxu0 %v1177
      %v1432 = vpop.f32.mrf.mxu0
      %v1433 = vadd.f32 %v1158, %v1432
      %v1434 = vpop.f32.mrf.mxu0
      %v1435 = vadd.f32 %v1158, %v1434
      %1436 = vmatprep.mubr.f32.mxu0 0.0
      %1437 = vmatmul.mubr.f32.gmra.mxu0 %v1180
      %v1438 = vpop.f32.mrf.mxu0
      %v1439 = vadd.f32 %v1163, %v1438
      %v1440 = vpop.f32.mrf.mxu0
      %v1441 = vadd.f32 %v1163, %v1440
      %1442 = vmatprep.mubr.f32.mxu0 0.0
      %1443 = vmatmul.mubr.f32.gmra.mxu0 %v1183
      %v1444 = vpop.f32.mrf.mxu0
      %v1445 = vadd.f32 %v1168, %v1444
      %v1446 = vpop.f32.mrf.mxu0
      %v1447 = vadd.f32 %v1168, %v1446
      %1448 = vmatprep.mubr.f32.mxu0 0.0
      %1449 = vmatmul.mubr.f32.gmra.mxu0 %v1186
      %v1450 = vpop.f32.mrf.mxu0
      %v1451 = vadd.f32 %v1173, %v1450
      %v1452 = vpop.f32.mrf.mxu0
      %v1453 = vadd.f32 %v1173, %v1452
      %1454 = vdwg.mxu0
      %1455 = vmatprep.subr.mxu0 0.0
      %1456 = vmatpush1.msra.mxu0 0.0
      %1457 = vmatprep.subr.mxu0 0.0
      %1458 = vmatpush1.msra.mxu0 0.0
      %1459 = vmatprep.subr.mxu0 0.0
      %1460 = vmatpush1.msra.mxu0 0.0
      %1461 = vmatprep.subr.mxu0 0.0
      %1462 = vmatpush1.msra.mxu0 0.0
      %1463 = vmatprep.subr.mxu0 0.0
      %1464 = vmatpush1.msra.mxu0 0.0
      %1465 = vmatprep.subr.mxu0 0.0
      %1466 = vmatpush1.msra.mxu0 0.0
      %1467 = vmatprep.subr.mxu0 0.0
      %1468 = vmatpush1.msra.mxu0 0.0
      %1469 = vmatprep.subr.mxu0 0.0
      %1470 = vmatpush1.msra.mxu0 0.0
      %1471 = vmatprep.subr.mxu0 0.0
      %1472 = vmatpush1.msra.mxu0 0.0
      %1473 = vmatprep.subr.mxu0 0.0
      %1474 = vmatpush1.msra.mxu0 0.0
      %1475 = vmatprep.subr.mxu0 0.0
      %1476 = vmatpush1.msra.mxu0 0.0
      %1477 = vmatprep.subr.mxu0 0.0
      %1478 = vmatpush1.msra.mxu0 0.0
      %1479 = vmatprep.subr.mxu0 %v1145
      %1480 = vmatpush1.msra.mxu0 %v1144
      %1481 = vmatprep.subr.mxu0 %v1137
      %1482 = vmatpush1.msra.mxu0 %v1136
      %1483 = vmatprep.subr.mxu0 %v1129
      %1484 = vmatpush1.msra.mxu0 %v1128
      %1485 = vmatprep.subr.mxu0 %v1121
      %1486 = vmatpush1.msra.mxu0 %v1120
      %1487 = vmatprep.subr.mxu0 0.0
      %1488 = vmatpush2.msra.mxu0 0.0
      %1489 = vmatprep.subr.mxu0 0.0
      %1490 = vmatpush2.msra.mxu0 0.0
      %1491 = vmatprep.subr.mxu0 0.0
      %1492 = vmatpush2.msra.mxu0 0.0
      %1493 = vmatprep.subr.mxu0 0.0
      %1494 = vmatpush2.msra.mxu0 0.0
      %1495 = vmatprep.subr.mxu0 0.0
      %1496 = vmatpush2.msra.mxu0 0.0
      %1497 = vmatprep.subr.mxu0 0.0
      %1498 = vmatpush2.msra.mxu0 0.0
      %1499 = vmatprep.subr.mxu0 0.0
      %1500 = vmatpush2.msra.mxu0 0.0
      %1501 = vmatprep.subr.mxu0 0.0
      %1502 = vmatpush2.msra.mxu0 0.0
      %1503 = vmatprep.subr.mxu0 0.0
      %1504 = vmatpush2.msra.mxu0 0.0
      %1505 = vmatprep.subr.mxu0 0.0
      %1506 = vmatpush2.msra.mxu0 0.0
      %1507 = vmatprep.subr.mxu0 0.0
      %1508 = vmatpush2.msra.mxu0 0.0
      %1509 = vmatprep.subr.mxu0 0.0
      %1510 = vmatpush2.msra.mxu0 0.0
      %1511 = vmatprep.subr.mxu0 0.0
      %1512 = vmatpush2.msra.mxu0 0.0
      %1513 = vmatprep.subr.mxu0 0.0
      %1514 = vmatpush2.msra.mxu0 0.0
      %1515 = vmatprep.subr.mxu0 0.0
      %1516 = vmatpush2.msra.mxu0 0.0
      %1517 = vmatprep.subr.mxu0 0.0
      %1518 = vmatpush2.msra.mxu0 0.0
      %1519 = vmatprep.mubr.f32.mxu0 0.0
      %1520 = vmatmul.mubr.f32.gmra.mxu0 %v1177
      %v1521 = vpop.f32.mrf.mxu0
      %v1522 = vadd.f32 %v1158, %v1521
      %v1523 = vpop.f32.mrf.mxu0
      %v1524 = vadd.f32 %v1158, %v1523
      %1525 = vmatprep.mubr.f32.mxu0 0.0
      %1526 = vmatmul.mubr.f32.gmra.mxu0 %v1180
      %v1527 = vpop.f32.mrf.mxu0
      %v1528 = vadd.f32 %v1163, %v1527
      %v1529 = vpop.f32.mrf.mxu0
      %v1530 = vadd.f32 %v1163, %v1529
      %1531 = vmatprep.mubr.f32.mxu0 0.0
      %1532 = vmatmul.mubr.f32.gmra.mxu0 %v1183
      %v1533 = vpop.f32.mrf.mxu0
      %v1534 = vadd.f32 %v1168, %v1533
      %v1535 = vpop.f32.mrf.mxu0
      %v1536 = vadd.f32 %v1168, %v1535
      %1537 = vmatprep.mubr.f32.mxu0 0.0
      %1538 = vmatmul.mubr.f32.gmra.mxu0 %v1186
      %v1539 = vpop.f32.mrf.mxu0
      %v1540 = vadd.f32 %v1173, %v1539
      %v1541 = vpop.f32.mrf.mxu0
      %v1542 = vadd.f32 %v1173, %v1541
      %1543 = vdwg.mxu0
      %v1544 = vmax.f32 %v1255, 0.0
      %v1545 = vmax.f32 %v1257, 0.0
      %v1546 = vmax.f32 %v1344, 0.0
      %v1547 = vmax.f32 %v1346, 0.0
      %v1548 = vmax.f32 %v1433, 0.0
      %v1549 = vmax.f32 %v1435, 0.0
      %v1550 = vmax.f32 %v1522, 0.0
      %v1551 = vmax.f32 %v1524, 0.0
      %v1552 = vmax.f32 %v1261, 0.0
      %v1553 = vmax.f32 %v1263, 0.0
      %v1554 = vmax.f32 %v1350, 0.0
      %v1555 = vmax.f32 %v1352, 0.0
      %v1556 = vmax.f32 %v1439, 0.0
      %v1557 = vmax.f32 %v1441, 0.0
      %v1558 = vmax.f32 %v1528, 0.0
      %v1559 = vmax.f32 %v1530, 0.0
      %v1560 = vmax.f32 %v1267, 0.0
      %v1561 = vmax.f32 %v1269, 0.0
      %v1562 = vmax.f32 %v1356, 0.0
      %v1563 = vmax.f32 %v1358, 0.0
      %v1564 = vmax.f32 %v1445, 0.0
      %v1565 = vmax.f32 %v1447, 0.0
      %v1566 = vmax.f32 %v1534, 0.0
      %v1567 = vmax.f32 %v1536, 0.0
      %v1568 = vmax.f32 %v1273, 0.0
      %v1569 = vmax.f32 %v1275, 0.0
      %v1570 = vmax.f32 %v1362, 0.0
      %v1571 = vmax.f32 %v1364, 0.0
      %v1572 = vmax.f32 %v1451, 0.0
      %v1573 = vmax.f32 %v1453, 0.0
      %v1574 = vmax.f32 %v1540, 0.0
      %v1575 = vmax.f32 %v1542, 0.0
      %s1576 = scalar_lea.vmem %s2, 32
      %v1577 = vld [vmem:[%s1576] sm:$0xff]
      %v1578 = vld [vmem:[%s1576 + $0x8] sm:$0xff]
      %v1579 = vld [vmem:[%s1576 + $0x10] sm:$0xff]
      %v1580 = vld [vmem:[%s1576 + $0x18] sm:$0xff]
      %s1581 = scalar_lea.vmem %s3, 64
      %v1582 = vld [vmem:[%s1581] sm:$0xff]
      %v1583 = vld [vmem:[%s1581 + $0x8] sm:$0xff]
      %v1584 = vld [vmem:[%s1581 + $0x10] sm:$0xff]
      %v1585 = vld [vmem:[%s1581 + $0x18] sm:$0xff]
      %1587 = vset.pattern.permute.xlu0 0
      %1588 = vperm.xlu0 %1587, %v1582
      %v1589 = vpop.permute.xlu0 %1588
      %1592 = vset.pattern.permute.xlu0 0
      %1593 = vperm.xlu0 %1592, %v1583
      %v1594 = vpop.permute.xlu0 %1593
      %1597 = vset.pattern.permute.xlu0 0
      %1598 = vperm.xlu0 %1597, %v1584
      %v1599 = vpop.permute.xlu0 %1598
      %1602 = vset.pattern.permute.xlu0 0
      %1603 = vperm.xlu0 %1602, %v1585
      %v1604 = vpop.permute.xlu0 %1603
      %v1607 = vsel %vm1175, %v1577, 0
      %v1610 = vsel %vm1175, %v1578, 0
      %v1613 = vsel %vm1175, %v1579, 0
      %v1616 = vsel %vm1175, %v1580, 0
      %1618 = vmatprep.subr.mxu0 0.0
      %1619 = vmatpush1.msra.mxu0 0.0
      %1620 = vmatprep.subr.mxu0 0.0
      %1621 = vmatpush1.msra.mxu0 0.0
      %1622 = vmatprep.subr.mxu0 0.0
      %1623 = vmatpush1.msra.mxu0 0.0
      %1624 = vmatprep.subr.mxu0 0.0
      %1625 = vmatpush1.msra.mxu0 0.0
      %1626 = vmatprep.subr.mxu0 0.0
      %1627 = vmatpush1.msra.mxu0 0.0
      %1628 = vmatprep.subr.mxu0 0.0
      %1629 = vmatpush1.msra.mxu0 0.0
      %1630 = vmatprep.subr.mxu0 0.0
      %1631 = vmatpush1.msra.mxu0 0.0
      %1632 = vmatprep.subr.mxu0 0.0
      %1633 = vmatpush1.msra.mxu0 0.0
      %1634 = vmatprep.subr.mxu0 0.0
      %1635 = vmatpush1.msra.mxu0 0.0
      %1636 = vmatprep.subr.mxu0 0.0
      %1637 = vmatpush1.msra.mxu0 0.0
      %1638 = vmatprep.subr.mxu0 0.0
      %1639 = vmatpush1.msra.mxu0 0.0
      %1640 = vmatprep.subr.mxu0 0.0
      %1641 = vmatpush1.msra.mxu0 0.0
      %1642 = vmatprep.subr.mxu0 %v1569
      %1643 = vmatpush1.msra.mxu0 %v1568
      %1644 = vmatprep.subr.mxu0 %v1561
      %1645 = vmatpush1.msra.mxu0 %v1560
      %1646 = vmatprep.subr.mxu0 %v1553
      %1647 = vmatpush1.msra.mxu0 %v1552
      %1648 = vmatprep.subr.mxu0 %v1545
      %1649 = vmatpush1.msra.mxu0 %v1544
      %1650 = vmatprep.subr.mxu0 0.0
      %1651 = vmatpush2.msra.mxu0 0.0
      %1652 = vmatprep.subr.mxu0 0.0
      %1653 = vmatpush2.msra.mxu0 0.0
      %1654 = vmatprep.subr.mxu0 0.0
      %1655 = vmatpush2.msra.mxu0 0.0
      %1656 = vmatprep.subr.mxu0 0.0
      %1657 = vmatpush2.msra.mxu0 0.0
      %1658 = vmatprep.subr.mxu0 0.0
      %1659 = vmatpush2.msra.mxu0 0.0
      %1660 = vmatprep.subr.mxu0 0.0
      %1661 = vmatpush2.msra.mxu0 0.0
      %1662 = vmatprep.subr.mxu0 0.0
      %1663 = vmatpush2.msra.mxu0 0.0
      %1664 = vmatprep.subr.mxu0 0.0
      %1665 = vmatpush2.msra.mxu0 0.0
      %1666 = vmatprep.subr.mxu0 0.0
      %1667 = vmatpush2.msra.mxu0 0.0
      %1668 = vmatprep.subr.mxu0 0.0
      %1669 = vmatpush2.msra.mxu0 0.0
      %1670 = vmatprep.subr.mxu0 0.0
      %1671 = vmatpush2.msra.mxu0 0.0
      %1672 = vmatprep.subr.mxu0 0.0
      %1673 = vmatpush2.msra.mxu0 0.0
      %1674 = vmatprep.subr.mxu0 0.0
      %1675 = vmatpush2.msra.mxu0 0.0
      %1676 = vmatprep.subr.mxu0 0.0
      %1677 = vmatpush2.msra.mxu0 0.0
      %1678 = vmatprep.subr.mxu0 0.0
      %1679 = vmatpush2.msra.mxu0 0.0
      %1680 = vmatprep.subr.mxu0 0.0
      %1681 = vmatpush2.msra.mxu0 0.0
      %1682 = vmatprep.mubr.f32.mxu0 0.0
      %1683 = vmatmul.mubr.f32.gmra.mxu0 %v1607
      %v1684 = vpop.f32.mrf.mxu0
      %v1685 = vadd.f32 %v1589, %v1684
      %v1686 = vpop.f32.mrf.mxu0
      %v1687 = vadd.f32 %v1589, %v1686
      %1688 = vmatprep.mubr.f32.mxu0 0.0
      %1689 = vmatmul.mubr.f32.gmra.mxu0 %v1610
      %v1690 = vpop.f32.mrf.mxu0
      %v1691 = vadd.f32 %v1594, %v1690
      %v1692 = vpop.f32.mrf.mxu0
      %v1693 = vadd.f32 %v1594, %v1692
      %1694 = vmatprep.mubr.f32.mxu0 0.0
      %1695 = vmatmul.mubr.f32.gmra.mxu0 %v1613
      %v1696 = vpop.f32.mrf.mxu0
      %v1697 = vadd.f32 %v1599, %v1696
      %v1698 = vpop.f32.mrf.mxu0
      %v1699 = vadd.f32 %v1599, %v1698
      %1700 = vmatprep.mubr.f32.mxu0 0.0
      %1701 = vmatmul.mubr.f32.gmra.mxu0 %v1616
      %v1702 = vpop.f32.mrf.mxu0
      %v1703 = vadd.f32 %v1604, %v1702
      %v1704 = vpop.f32.mrf.mxu0
      %v1705 = vadd.f32 %v1604, %v1704
      %1706 = vdwg.mxu0
      %1707 = vmatprep.subr.mxu0 0.0
      %1708 = vmatpush1.msra.mxu0 0.0
      %1709 = vmatprep.subr.mxu0 0.0
      %1710 = vmatpush1.msra.mxu0 0.0
      %1711 = vmatprep.subr.mxu0 0.0
      %1712 = vmatpush1.msra.mxu0 0.0
      %1713 = vmatprep.subr.mxu0 0.0
      %1714 = vmatpush1.msra.mxu0 0.0
      %1715 = vmatprep.subr.mxu0 0.0
      %1716 = vmatpush1.msra.mxu0 0.0
      %1717 = vmatprep.subr.mxu0 0.0
      %1718 = vmatpush1.msra.mxu0 0.0
      %1719 = vmatprep.subr.mxu0 0.0
      %1720 = vmatpush1.msra.mxu0 0.0
      %1721 = vmatprep.subr.mxu0 0.0
      %1722 = vmatpush1.msra.mxu0 0.0
      %1723 = vmatprep.subr.mxu0 0.0
      %1724 = vmatpush1.msra.mxu0 0.0
      %1725 = vmatprep.subr.mxu0 0.0
      %1726 = vmatpush1.msra.mxu0 0.0
      %1727 = vmatprep.subr.mxu0 0.0
      %1728 = vmatpush1.msra.mxu0 0.0
      %1729 = vmatprep.subr.mxu0 0.0
      %1730 = vmatpush1.msra.mxu0 0.0
      %1731 = vmatprep.subr.mxu0 %v1571
      %1732 = vmatpush1.msra.mxu0 %v1570
      %1733 = vmatprep.subr.mxu0 %v1563
      %1734 = vmatpush1.msra.mxu0 %v1562
      %1735 = vmatprep.subr.mxu0 %v1555
      %1736 = vmatpush1.msra.mxu0 %v1554
      %1737 = vmatprep.subr.mxu0 %v1547
      %1738 = vmatpush1.msra.mxu0 %v1546
      %1739 = vmatprep.subr.mxu0 0.0
      %1740 = vmatpush2.msra.mxu0 0.0
      %1741 = vmatprep.subr.mxu0 0.0
      %1742 = vmatpush2.msra.mxu0 0.0
      %1743 = vmatprep.subr.mxu0 0.0
      %1744 = vmatpush2.msra.mxu0 0.0
      %1745 = vmatprep.subr.mxu0 0.0
      %1746 = vmatpush2.msra.mxu0 0.0
      %1747 = vmatprep.subr.mxu0 0.0
      %1748 = vmatpush2.msra.mxu0 0.0
      %1749 = vmatprep.subr.mxu0 0.0
      %1750 = vmatpush2.msra.mxu0 0.0
      %1751 = vmatprep.subr.mxu0 0.0
      %1752 = vmatpush2.msra.mxu0 0.0
      %1753 = vmatprep.subr.mxu0 0.0
      %1754 = vmatpush2.msra.mxu0 0.0
      %1755 = vmatprep.subr.mxu0 0.0
      %1756 = vmatpush2.msra.mxu0 0.0
      %1757 = vmatprep.subr.mxu0 0.0
      %1758 = vmatpush2.msra.mxu0 0.0
      %1759 = vmatprep.subr.mxu0 0.0
      %1760 = vmatpush2.msra.mxu0 0.0
      %1761 = vmatprep.subr.mxu0 0.0
      %1762 = vmatpush2.msra.mxu0 0.0
      %1763 = vmatprep.subr.mxu0 0.0
      %1764 = vmatpush2.msra.mxu0 0.0
      %1765 = vmatprep.subr.mxu0 0.0
      %1766 = vmatpush2.msra.mxu0 0.0
      %1767 = vmatprep.subr.mxu0 0.0
      %1768 = vmatpush2.msra.mxu0 0.0
      %1769 = vmatprep.subr.mxu0 0.0
      %1770 = vmatpush2.msra.mxu0 0.0
      %1771 = vmatprep.mubr.f32.mxu0 0.0
      %1772 = vmatmul.mubr.f32.gmra.mxu0 %v1607
      %v1773 = vpop.f32.mrf.mxu0
      %v1774 = vadd.f32 %v1589, %v1773
      %v1775 = vpop.f32.mrf.mxu0
      %v1776 = vadd.f32 %v1589, %v1775
      %1777 = vmatprep.mubr.f32.mxu0 0.0
      %1778 = vmatmul.mubr.f32.gmra.mxu0 %v1610
      %v1779 = vpop.f32.mrf.mxu0
      %v1780 = vadd.f32 %v1594, %v1779
      %v1781 = vpop.f32.mrf.mxu0
      %v1782 = vadd.f32 %v1594, %v1781
      %1783 = vmatprep.mubr.f32.mxu0 0.0
      %1784 = vmatmul.mubr.f32.gmra.mxu0 %v1613
      %v1785 = vpop.f32.mrf.mxu0
      %v1786 = vadd.f32 %v1599, %v1785
      %v1787 = vpop.f32.mrf.mxu0
      %v1788 = vadd.f32 %v1599, %v1787
      %1789 = vmatprep.mubr.f32.mxu0 0.0
      %1790 = vmatmul.mubr.f32.gmra.mxu0 %v1616
      %v1791 = vpop.f32.mrf.mxu0
      %v1792 = vadd.f32 %v1604, %v1791
      %v1793 = vpop.f32.mrf.mxu0
      %v1794 = vadd.f32 %v1604, %v1793
      %1795 = vdwg.mxu0
      %1796 = vmatprep.subr.mxu0 0.0
      %1797 = vmatpush1.msra.mxu0 0.0
      %1798 = vmatprep.subr.mxu0 0.0
      %1799 = vmatpush1.msra.mxu0 0.0
      %1800 = vmatprep.subr.mxu0 0.0
      %1801 = vmatpush1.msra.mxu0 0.0
      %1802 = vmatprep.subr.mxu0 0.0
      %1803 = vmatpush1.msra.mxu0 0.0
      %1804 = vmatprep.subr.mxu0 0.0
      %1805 = vmatpush1.msra.mxu0 0.0
      %1806 = vmatprep.subr.mxu0 0.0
      %1807 = vmatpush1.msra.mxu0 0.0
      %1808 = vmatprep.subr.mxu0 0.0
      %1809 = vmatpush1.msra.mxu0 0.0
      %1810 = vmatprep.subr.mxu0 0.0
      %1811 = vmatpush1.msra.mxu0 0.0
      %1812 = vmatprep.subr.mxu0 0.0
      %1813 = vmatpush1.msra.mxu0 0.0
      %1814 = vmatprep.subr.mxu0 0.0
      %1815 = vmatpush1.msra.mxu0 0.0
      %1816 = vmatprep.subr.mxu0 0.0
      %1817 = vmatpush1.msra.mxu0 0.0
      %1818 = vmatprep.subr.mxu0 0.0
      %1819 = vmatpush1.msra.mxu0 0.0
      %1820 = vmatprep.subr.mxu0 %v1573
      %1821 = vmatpush1.msra.mxu0 %v1572
      %1822 = vmatprep.subr.mxu0 %v1565
      %1823 = vmatpush1.msra.mxu0 %v1564
      %1824 = vmatprep.subr.mxu0 %v1557
      %1825 = vmatpush1.msra.mxu0 %v1556
      %1826 = vmatprep.subr.mxu0 %v1549
      %1827 = vmatpush1.msra.mxu0 %v1548
      %1828 = vmatprep.subr.mxu0 0.0
      %1829 = vmatpush2.msra.mxu0 0.0
      %1830 = vmatprep.subr.mxu0 0.0
      %1831 = vmatpush2.msra.mxu0 0.0
      %1832 = vmatprep.subr.mxu0 0.0
      %1833 = vmatpush2.msra.mxu0 0.0
      %1834 = vmatprep.subr.mxu0 0.0
      %1835 = vmatpush2.msra.mxu0 0.0
      %1836 = vmatprep.subr.mxu0 0.0
      %1837 = vmatpush2.msra.mxu0 0.0
      %1838 = vmatprep.subr.mxu0 0.0
      %1839 = vmatpush2.msra.mxu0 0.0
      %1840 = vmatprep.subr.mxu0 0.0
      %1841 = vmatpush2.msra.mxu0 0.0
      %1842 = vmatprep.subr.mxu0 0.0
      %1843 = vmatpush2.msra.mxu0 0.0
      %1844 = vmatprep.subr.mxu0 0.0
      %1845 = vmatpush2.msra.mxu0 0.0
      %1846 = vmatprep.subr.mxu0 0.0
      %1847 = vmatpush2.msra.mxu0 0.0
      %1848 = vmatprep.subr.mxu0 0.0
      %1849 = vmatpush2.msra.mxu0 0.0
      %1850 = vmatprep.subr.mxu0 0.0
      %1851 = vmatpush2.msra.mxu0 0.0
      %1852 = vmatprep.subr.mxu0 0.0
      %1853 = vmatpush2.msra.mxu0 0.0
      %1854 = vmatprep.subr.mxu0 0.0
      %1855 = vmatpush2.msra.mxu0 0.0
      %1856 = vmatprep.subr.mxu0 0.0
      %1857 = vmatpush2.msra.mxu0 0.0
      %1858 = vmatprep.subr.mxu0 0.0
      %1859 = vmatpush2.msra.mxu0 0.0
      %1860 = vmatprep.mubr.f32.mxu0 0.0
      %1861 = vmatmul.mubr.f32.gmra.mxu0 %v1607
      %v1862 = vpop.f32.mrf.mxu0
      %v1863 = vadd.f32 %v1589, %v1862
      %v1864 = vpop.f32.mrf.mxu0
      %v1865 = vadd.f32 %v1589, %v1864
      %1866 = vmatprep.mubr.f32.mxu0 0.0
      %1867 = vmatmul.mubr.f32.gmra.mxu0 %v1610
      %v1868 = vpop.f32.mrf.mxu0
      %v1869 = vadd.f32 %v1594, %v1868
      %v1870 = vpop.f32.mrf.mxu0
      %v1871 = vadd.f32 %v1594, %v1870
      %1872 = vmatprep.mubr.f32.mxu0 0.0
      %1873 = vmatmul.mubr.f32.gmra.mxu0 %v1613
      %v1874 = vpop.f32.mrf.mxu0
      %v1875 = vadd.f32 %v1599, %v1874
      %v1876 = vpop.f32.mrf.mxu0
      %v1877 = vadd.f32 %v1599, %v1876
      %1878 = vmatprep.mubr.f32.mxu0 0.0
      %1879 = vmatmul.mubr.f32.gmra.mxu0 %v1616
      %v1880 = vpop.f32.mrf.mxu0
      %v1881 = vadd.f32 %v1604, %v1880
      %v1882 = vpop.f32.mrf.mxu0
      %v1883 = vadd.f32 %v1604, %v1882
      %1884 = vdwg.mxu0
      %1885 = vmatprep.subr.mxu0 0.0
      %1886 = vmatpush1.msra.mxu0 0.0
      %1887 = vmatprep.subr.mxu0 0.0
      %1888 = vmatpush1.msra.mxu0 0.0
      %1889 = vmatprep.subr.mxu0 0.0
      %1890 = vmatpush1.msra.mxu0 0.0
      %1891 = vmatprep.subr.mxu0 0.0
      %1892 = vmatpush1.msra.mxu0 0.0
      %1893 = vmatprep.subr.mxu0 0.0
      %1894 = vmatpush1.msra.mxu0 0.0
      %1895 = vmatprep.subr.mxu0 0.0
      %1896 = vmatpush1.msra.mxu0 0.0
      %1897 = vmatprep.subr.mxu0 0.0
      %1898 = vmatpush1.msra.mxu0 0.0
      %1899 = vmatprep.subr.mxu0 0.0
      %1900 = vmatpush1.msra.mxu0 0.0
      %1901 = vmatprep.subr.mxu0 0.0
      %1902 = vmatpush1.msra.mxu0 0.0
      %1903 = vmatprep.subr.mxu0 0.0
      %1904 = vmatpush1.msra.mxu0 0.0
      %1905 = vmatprep.subr.mxu0 0.0
      %1906 = vmatpush1.msra.mxu0 0.0
      %1907 = vmatprep.subr.mxu0 0.0
      %1908 = vmatpush1.msra.mxu0 0.0
      %1909 = vmatprep.subr.mxu0 %v1575
      %1910 = vmatpush1.msra.mxu0 %v1574
      %1911 = vmatprep.subr.mxu0 %v1567
      %1912 = vmatpush1.msra.mxu0 %v1566
      %1913 = vmatprep.subr.mxu0 %v1559
      %1914 = vmatpush1.msra.mxu0 %v1558
      %1915 = vmatprep.subr.mxu0 %v1551
      %1916 = vmatpush1.msra.mxu0 %v1550
      %1917 = vmatprep.subr.mxu0 0.0
      %1918 = vmatpush2.msra.mxu0 0.0
      %1919 = vmatprep.subr.mxu0 0.0
      %1920 = vmatpush2.msra.mxu0 0.0
      %1921 = vmatprep.subr.mxu0 0.0
      %1922 = vmatpush2.msra.mxu0 0.0
      %1923 = vmatprep.subr.mxu0 0.0
      %1924 = vmatpush2.msra.mxu0 0.0
      %1925 = vmatprep.subr.mxu0 0.0
      %1926 = vmatpush2.msra.mxu0 0.0
      %1927 = vmatprep.subr.mxu0 0.0
      %1928 = vmatpush2.msra.mxu0 0.0
      %1929 = vmatprep.subr.mxu0 0.0
      %1930 = vmatpush2.msra.mxu0 0.0
      %1931 = vmatprep.subr.mxu0 0.0
      %1932 = vmatpush2.msra.mxu0 0.0
      %1933 = vmatprep.subr.mxu0 0.0
      %1934 = vmatpush2.msra.mxu0 0.0
      %1935 = vmatprep.subr.mxu0 0.0
      %1936 = vmatpush2.msra.mxu0 0.0
      %1937 = vmatprep.subr.mxu0 0.0
      %1938 = vmatpush2.msra.mxu0 0.0
      %1939 = vmatprep.subr.mxu0 0.0
      %1940 = vmatpush2.msra.mxu0 0.0
      %1941 = vmatprep.subr.mxu0 0.0
      %1942 = vmatpush2.msra.mxu0 0.0
      %1943 = vmatprep.subr.mxu0 0.0
      %1944 = vmatpush2.msra.mxu0 0.0
      %1945 = vmatprep.subr.mxu0 0.0
      %1946 = vmatpush2.msra.mxu0 0.0
      %1947 = vmatprep.subr.mxu0 0.0
      %1948 = vmatpush2.msra.mxu0 0.0
      %1949 = vmatprep.mubr.f32.mxu0 0.0
      %1950 = vmatmul.mubr.f32.gmra.mxu0 %v1607
      %v1951 = vpop.f32.mrf.mxu0
      %v1952 = vadd.f32 %v1589, %v1951
      %v1953 = vpop.f32.mrf.mxu0
      %v1954 = vadd.f32 %v1589, %v1953
      %1955 = vmatprep.mubr.f32.mxu0 0.0
      %1956 = vmatmul.mubr.f32.gmra.mxu0 %v1610
      %v1957 = vpop.f32.mrf.mxu0
      %v1958 = vadd.f32 %v1594, %v1957
      %v1959 = vpop.f32.mrf.mxu0
      %v1960 = vadd.f32 %v1594, %v1959
      %1961 = vmatprep.mubr.f32.mxu0 0.0
      %1962 = vmatmul.mubr.f32.gmra.mxu0 %v1613
      %v1963 = vpop.f32.mrf.mxu0
      %v1964 = vadd.f32 %v1599, %v1963
      %v1965 = vpop.f32.mrf.mxu0
      %v1966 = vadd.f32 %v1599, %v1965
      %1967 = vmatprep.mubr.f32.mxu0 0.0
      %1968 = vmatmul.mubr.f32.gmra.mxu0 %v1616
      %v1969 = vpop.f32.mrf.mxu0
      %v1970 = vadd.f32 %v1604, %v1969
      %v1971 = vpop.f32.mrf.mxu0
      %v1972 = vadd.f32 %v1604, %v1971
      %1973 = vdwg.mxu0
      %v1974 = vmax.f32 %v1685, 0.0
      %v1975 = vmax.f32 %v1687, 0.0
      %v1976 = vmax.f32 %v1774, 0.0
      %v1977 = vmax.f32 %v1776, 0.0
      %v1978 = vmax.f32 %v1863, 0.0
      %v1979 = vmax.f32 %v1865, 0.0
      %v1980 = vmax.f32 %v1952, 0.0
      %v1981 = vmax.f32 %v1954, 0.0
      %v1982 = vmax.f32 %v1691, 0.0
      %v1983 = vmax.f32 %v1693, 0.0
      %v1984 = vmax.f32 %v1780, 0.0
      %v1985 = vmax.f32 %v1782, 0.0
      %v1986 = vmax.f32 %v1869, 0.0
      %v1987 = vmax.f32 %v1871, 0.0
      %v1988 = vmax.f32 %v1958, 0.0
      %v1989 = vmax.f32 %v1960, 0.0
      %v1990 = vmax.f32 %v1697, 0.0
      %v1991 = vmax.f32 %v1699, 0.0
      %v1992 = vmax.f32 %v1786, 0.0
      %v1993 = vmax.f32 %v1788, 0.0
      %v1994 = vmax.f32 %v1875, 0.0
      %v1995 = vmax.f32 %v1877, 0.0
      %v1996 = vmax.f32 %v1964, 0.0
      %v1997 = vmax.f32 %v1966, 0.0
      %v1998 = vmax.f32 %v1703, 0.0
      %v1999 = vmax.f32 %v1705, 0.0
      %v2000 = vmax.f32 %v1792, 0.0
      %v2001 = vmax.f32 %v1794, 0.0
      %v2002 = vmax.f32 %v1881, 0.0
      %v2003 = vmax.f32 %v1883, 0.0
      %v2004 = vmax.f32 %v1970, 0.0
      %v2005 = vmax.f32 %v1972, 0.0
      %s2006 = scalar_lea.vmem %s2, 64
      %v2007 = vld [vmem:[%s2006] sm:$0xff]
      %v2008 = vld [vmem:[%s2006 + $0x8] sm:$0xff]
      %v2009 = vld [vmem:[%s2006 + $0x10] sm:$0xff]
      %v2010 = vld [vmem:[%s2006 + $0x18] sm:$0xff]
      %s2011 = scalar_lea.vmem %s3, 96
      %v2012 = vld [vmem:[%s2011] sm:$0xff]
      %v2013 = vld [vmem:[%s2011 + $0x8] sm:$0xff]
      %v2014 = vld [vmem:[%s2011 + $0x10] sm:$0xff]
      %v2015 = vld [vmem:[%s2011 + $0x18] sm:$0xff]
      %2017 = vset.pattern.permute.xlu0 0
      %2018 = vperm.xlu0 %2017, %v2012
      %v2019 = vpop.permute.xlu0 %2018
      %2022 = vset.pattern.permute.xlu0 0
      %2023 = vperm.xlu0 %2022, %v2013
      %v2024 = vpop.permute.xlu0 %2023
      %2027 = vset.pattern.permute.xlu0 0
      %2028 = vperm.xlu0 %2027, %v2014
      %v2029 = vpop.permute.xlu0 %2028
      %2032 = vset.pattern.permute.xlu0 0
      %2033 = vperm.xlu0 %2032, %v2015
      %v2034 = vpop.permute.xlu0 %2033
      %v2037 = vsel %vm1175, %v2007, 0
      %v2040 = vsel %vm1175, %v2008, 0
      %v2043 = vsel %vm1175, %v2009, 0
      %v2046 = vsel %vm1175, %v2010, 0
      %2048 = vmatprep.subr.mxu0 0.0
      %2049 = vmatpush1.msra.mxu0 0.0
      %2050 = vmatprep.subr.mxu0 0.0
      %2051 = vmatpush1.msra.mxu0 0.0
      %2052 = vmatprep.subr.mxu0 0.0
      %2053 = vmatpush1.msra.mxu0 0.0
      %2054 = vmatprep.subr.mxu0 0.0
      %2055 = vmatpush1.msra.mxu0 0.0
      %2056 = vmatprep.subr.mxu0 0.0
      %2057 = vmatpush1.msra.mxu0 0.0
      %2058 = vmatprep.subr.mxu0 0.0
      %2059 = vmatpush1.msra.mxu0 0.0
      %2060 = vmatprep.subr.mxu0 0.0
      %2061 = vmatpush1.msra.mxu0 0.0
      %2062 = vmatprep.subr.mxu0 0.0
      %2063 = vmatpush1.msra.mxu0 0.0
      %2064 = vmatprep.subr.mxu0 0.0
      %2065 = vmatpush1.msra.mxu0 0.0
      %2066 = vmatprep.subr.mxu0 0.0
      %2067 = vmatpush1.msra.mxu0 0.0
      %2068 = vmatprep.subr.mxu0 0.0
      %2069 = vmatpush1.msra.mxu0 0.0
      %2070 = vmatprep.subr.mxu0 0.0
      %2071 = vmatpush1.msra.mxu0 0.0
      %2072 = vmatprep.subr.mxu0 %v1999
      %2073 = vmatpush1.msra.mxu0 %v1998
      %2074 = vmatprep.subr.mxu0 %v1991
      %2075 = vmatpush1.msra.mxu0 %v1990
      %2076 = vmatprep.subr.mxu0 %v1983
      %2077 = vmatpush1.msra.mxu0 %v1982
      %2078 = vmatprep.subr.mxu0 %v1975
      %2079 = vmatpush1.msra.mxu0 %v1974
      %2080 = vmatprep.subr.mxu0 0.0
      %2081 = vmatpush2.msra.mxu0 0.0
      %2082 = vmatprep.subr.mxu0 0.0
      %2083 = vmatpush2.msra.mxu0 0.0
      %2084 = vmatprep.subr.mxu0 0.0
      %2085 = vmatpush2.msra.mxu0 0.0
      %2086 = vmatprep.subr.mxu0 0.0
      %2087 = vmatpush2.msra.mxu0 0.0
      %2088 = vmatprep.subr.mxu0 0.0
      %2089 = vmatpush2.msra.mxu0 0.0
      %2090 = vmatprep.subr.mxu0 0.0
      %2091 = vmatpush2.msra.mxu0 0.0
      %2092 = vmatprep.subr.mxu0 0.0
      %2093 = vmatpush2.msra.mxu0 0.0
      %2094 = vmatprep.subr.mxu0 0.0
      %2095 = vmatpush2.msra.mxu0 0.0
      %2096 = vmatprep.subr.mxu0 0.0
      %2097 = vmatpush2.msra.mxu0 0.0
      %2098 = vmatprep.subr.mxu0 0.0
      %2099 = vmatpush2.msra.mxu0 0.0
      %2100 = vmatprep.subr.mxu0 0.0
      %2101 = vmatpush2.msra.mxu0 0.0
      %2102 = vmatprep.subr.mxu0 0.0
      %2103 = vmatpush2.msra.mxu0 0.0
      %2104 = vmatprep.subr.mxu0 0.0
      %2105 = vmatpush2.msra.mxu0 0.0
      %2106 = vmatprep.subr.mxu0 0.0
      %2107 = vmatpush2.msra.mxu0 0.0
      %2108 = vmatprep.subr.mxu0 0.0
      %2109 = vmatpush2.msra.mxu0 0.0
      %2110 = vmatprep.subr.mxu0 0.0
      %2111 = vmatpush2.msra.mxu0 0.0
      %2112 = vmatprep.mubr.f32.mxu0 0.0
      %2113 = vmatmul.mubr.f32.gmra.mxu0 %v2037
      %v2114 = vpop.f32.mrf.mxu0
      %v2115 = vadd.f32 %v2019, %v2114
      %v2116 = vpop.f32.mrf.mxu0
      %v2117 = vadd.f32 %v2019, %v2116
      %2118 = vmatprep.mubr.f32.mxu0 0.0
      %2119 = vmatmul.mubr.f32.gmra.mxu0 %v2040
      %v2120 = vpop.f32.mrf.mxu0
      %v2121 = vadd.f32 %v2024, %v2120
      %v2122 = vpop.f32.mrf.mxu0
      %v2123 = vadd.f32 %v2024, %v2122
      %2124 = vmatprep.mubr.f32.mxu0 0.0
      %2125 = vmatmul.mubr.f32.gmra.mxu0 %v2043
      %v2126 = vpop.f32.mrf.mxu0
      %v2127 = vadd.f32 %v2029, %v2126
      %v2128 = vpop.f32.mrf.mxu0
      %v2129 = vadd.f32 %v2029, %v2128
      %2130 = vmatprep.mubr.f32.mxu0 0.0
      %2131 = vmatmul.mubr.f32.gmra.mxu0 %v2046
      %v2132 = vpop.f32.mrf.mxu0
      %v2133 = vadd.f32 %v2034, %v2132
      %v2134 = vpop.f32.mrf.mxu0
      %v2135 = vadd.f32 %v2034, %v2134
      %2136 = vdwg.mxu0
      %2137 = vmatprep.subr.mxu0 0.0
      %2138 = vmatpush1.msra.mxu0 0.0
      %2139 = vmatprep.subr.mxu0 0.0
      %2140 = vmatpush1.msra.mxu0 0.0
      %2141 = vmatprep.subr.mxu0 0.0
      %2142 = vmatpush1.msra.mxu0 0.0
      %2143 = vmatprep.subr.mxu0 0.0
      %2144 = vmatpush1.msra.mxu0 0.0
      %2145 = vmatprep.subr.mxu0 0.0
      %2146 = vmatpush1.msra.mxu0 0.0
      %2147 = vmatprep.subr.mxu0 0.0
      %2148 = vmatpush1.msra.mxu0 0.0
      %2149 = vmatprep.subr.mxu0 0.0
      %2150 = vmatpush1.msra.mxu0 0.0
      %2151 = vmatprep.subr.mxu0 0.0
      %2152 = vmatpush1.msra.mxu0 0.0
      %2153 = vmatprep.subr.mxu0 0.0
      %2154 = vmatpush1.msra.mxu0 0.0
      %2155 = vmatprep.subr.mxu0 0.0
      %2156 = vmatpush1.msra.mxu0 0.0
      %2157 = vmatprep.subr.mxu0 0.0
      %2158 = vmatpush1.msra.mxu0 0.0
      %2159 = vmatprep.subr.mxu0 0.0
      %2160 = vmatpush1.msra.mxu0 0.0
      %2161 = vmatprep.subr.mxu0 %v2001
      %2162 = vmatpush1.msra.mxu0 %v2000
      %2163 = vmatprep.subr.mxu0 %v1993
      %2164 = vmatpush1.msra.mxu0 %v1992
      %2165 = vmatprep.subr.mxu0 %v1985
      %2166 = vmatpush1.msra.mxu0 %v1984
      %2167 = vmatprep.subr.mxu0 %v1977
      %2168 = vmatpush1.msra.mxu0 %v1976
      %2169 = vmatprep.subr.mxu0 0.0
      %2170 = vmatpush2.msra.mxu0 0.0
      %2171 = vmatprep.subr.mxu0 0.0
      %2172 = vmatpush2.msra.mxu0 0.0
      %2173 = vmatprep.subr.mxu0 0.0
      %2174 = vmatpush2.msra.mxu0 0.0
      %2175 = vmatprep.subr.mxu0 0.0
      %2176 = vmatpush2.msra.mxu0 0.0
      %2177 = vmatprep.subr.mxu0 0.0
      %2178 = vmatpush2.msra.mxu0 0.0
      %2179 = vmatprep.subr.mxu0 0.0
      %2180 = vmatpush2.msra.mxu0 0.0
      %2181 = vmatprep.subr.mxu0 0.0
      %2182 = vmatpush2.msra.mxu0 0.0
      %2183 = vmatprep.subr.mxu0 0.0
      %2184 = vmatpush2.msra.mxu0 0.0
      %2185 = vmatprep.subr.mxu0 0.0
      %2186 = vmatpush2.msra.mxu0 0.0
      %2187 = vmatprep.subr.mxu0 0.0
      %2188 = vmatpush2.msra.mxu0 0.0
      %2189 = vmatprep.subr.mxu0 0.0
      %2190 = vmatpush2.msra.mxu0 0.0
      %2191 = vmatprep.subr.mxu0 0.0
      %2192 = vmatpush2.msra.mxu0 0.0
      %2193 = vmatprep.subr.mxu0 0.0
      %2194 = vmatpush2.msra.mxu0 0.0
      %2195 = vmatprep.subr.mxu0 0.0
      %2196 = vmatpush2.msra.mxu0 0.0
      %2197 = vmatprep.subr.mxu0 0.0
      %2198 = vmatpush2.msra.mxu0 0.0
      %2199 = vmatprep.subr.mxu0 0.0
      %2200 = vmatpush2.msra.mxu0 0.0
      %2201 = vmatprep.mubr.f32.mxu0 0.0
      %2202 = vmatmul.mubr.f32.gmra.mxu0 %v2037
      %v2203 = vpop.f32.mrf.mxu0
      %v2204 = vadd.f32 %v2019, %v2203
      %v2205 = vpop.f32.mrf.mxu0
      %v2206 = vadd.f32 %v2019, %v2205
      %2207 = vmatprep.mubr.f32.mxu0 0.0
      %2208 = vmatmul.mubr.f32.gmra.mxu0 %v2040
      %v2209 = vpop.f32.mrf.mxu0
      %v2210 = vadd.f32 %v2024, %v2209
      %v2211 = vpop.f32.mrf.mxu0
      %v2212 = vadd.f32 %v2024, %v2211
      %2213 = vmatprep.mubr.f32.mxu0 0.0
      %2214 = vmatmul.mubr.f32.gmra.mxu0 %v2043
      %v2215 = vpop.f32.mrf.mxu0
      %v2216 = vadd.f32 %v2029, %v2215
      %v2217 = vpop.f32.mrf.mxu0
      %v2218 = vadd.f32 %v2029, %v2217
      %2219 = vmatprep.mubr.f32.mxu0 0.0
      %2220 = vmatmul.mubr.f32.gmra.mxu0 %v2046
      %v2221 = vpop.f32.mrf.mxu0
      %v2222 = vadd.f32 %v2034, %v2221
      %v2223 = vpop.f32.mrf.mxu0
      %v2224 = vadd.f32 %v2034, %v2223
      %2225 = vdwg.mxu0
      %2226 = vmatprep.subr.mxu0 0.0
      %2227 = vmatpush1.msra.mxu0 0.0
      %2228 = vmatprep.subr.mxu0 0.0
      %2229 = vmatpush1.msra.mxu0 0.0
      %2230 = vmatprep.subr.mxu0 0.0
      %2231 = vmatpush1.msra.mxu0 0.0
      %2232 = vmatprep.subr.mxu0 0.0
      %2233 = vmatpush1.msra.mxu0 0.0
      %2234 = vmatprep.subr.mxu0 0.0
      %2235 = vmatpush1.msra.mxu0 0.0
      %2236 = vmatprep.subr.mxu0 0.0
      %2237 = vmatpush1.msra.mxu0 0.0
      %2238 = vmatprep.subr.mxu0 0.0
      %2239 = vmatpush1.msra.mxu0 0.0
      %2240 = vmatprep.subr.mxu0 0.0
      %2241 = vmatpush1.msra.mxu0 0.0
      %2242 = vmatprep.subr.mxu0 0.0
      %2243 = vmatpush1.msra.mxu0 0.0
      %2244 = vmatprep.subr.mxu0 0.0
      %2245 = vmatpush1.msra.mxu0 0.0
      %2246 = vmatprep.subr.mxu0 0.0
      %2247 = vmatpush1.msra.mxu0 0.0
      %2248 = vmatprep.subr.mxu0 0.0
      %2249 = vmatpush1.msra.mxu0 0.0
      %2250 = vmatprep.subr.mxu0 %v2003
      %2251 = vmatpush1.msra.mxu0 %v2002
      %2252 = vmatprep.subr.mxu0 %v1995
      %2253 = vmatpush1.msra.mxu0 %v1994
      %2254 = vmatprep.subr.mxu0 %v1987
      %2255 = vmatpush1.msra.mxu0 %v1986
      %2256 = vmatprep.subr.mxu0 %v1979
      %2257 = vmatpush1.msra.mxu0 %v1978
      %2258 = vmatprep.subr.mxu0 0.0
      %2259 = vmatpush2.msra.mxu0 0.0
      %2260 = vmatprep.subr.mxu0 0.0
      %2261 = vmatpush2.msra.mxu0 0.0
      %2262 = vmatprep.subr.mxu0 0.0
      %2263 = vmatpush2.msra.mxu0 0.0
      %2264 = vmatprep.subr.mxu0 0.0
      %2265 = vmatpush2.msra.mxu0 0.0
      %2266 = vmatprep.subr.mxu0 0.0
      %2267 = vmatpush2.msra.mxu0 0.0
      %2268 = vmatprep.subr.mxu0 0.0
      %2269 = vmatpush2.msra.mxu0 0.0
      %2270 = vmatprep.subr.mxu0 0.0
      %2271 = vmatpush2.msra.mxu0 0.0
      %2272 = vmatprep.subr.mxu0 0.0
      %2273 = vmatpush2.msra.mxu0 0.0
      %2274 = vmatprep.subr.mxu0 0.0
      %2275 = vmatpush2.msra.mxu0 0.0
      %2276 = vmatprep.subr.mxu0 0.0
      %2277 = vmatpush2.msra.mxu0 0.0
      %2278 = vmatprep.subr.mxu0 0.0
      %2279 = vmatpush2.msra.mxu0 0.0
      %2280 = vmatprep.subr.mxu0 0.0
      %2281 = vmatpush2.msra.mxu0 0.0
      %2282 = vmatprep.subr.mxu0 0.0
      %2283 = vmatpush2.msra.mxu0 0.0
      %2284 = vmatprep.subr.mxu0 0.0
      %2285 = vmatpush2.msra.mxu0 0.0
      %2286 = vmatprep.subr.mxu0 0.0
      %2287 = vmatpush2.msra.mxu0 0.0
      %2288 = vmatprep.subr.mxu0 0.0
      %2289 = vmatpush2.msra.mxu0 0.0
      %2290 = vmatprep.mubr.f32.mxu0 0.0
      %2291 = vmatmul.mubr.f32.gmra.mxu0 %v2037
      %v2292 = vpop.f32.mrf.mxu0
      %v2293 = vadd.f32 %v2019, %v2292
      %v2294 = vpop.f32.mrf.mxu0
      %v2295 = vadd.f32 %v2019, %v2294
      %2296 = vmatprep.mubr.f32.mxu0 0.0
      %2297 = vmatmul.mubr.f32.gmra.mxu0 %v2040
      %v2298 = vpop.f32.mrf.mxu0
      %v2299 = vadd.f32 %v2024, %v2298
      %v2300 = vpop.f32.mrf.mxu0
      %v2301 = vadd.f32 %v2024, %v2300
      %2302 = vmatprep.mubr.f32.mxu0 0.0
      %2303 = vmatmul.mubr.f32.gmra.mxu0 %v2043
      %v2304 = vpop.f32.mrf.mxu0
      %v2305 = vadd.f32 %v2029, %v2304
      %v2306 = vpop.f32.mrf.mxu0
      %v2307 = vadd.f32 %v2029, %v2306
      %2308 = vmatprep.mubr.f32.mxu0 0.0
      %2309 = vmatmul.mubr.f32.gmra.mxu0 %v2046
      %v2310 = vpop.f32.mrf.mxu0
      %v2311 = vadd.f32 %v2034, %v2310
      %v2312 = vpop.f32.mrf.mxu0
      %v2313 = vadd.f32 %v2034, %v2312
      %2314 = vdwg.mxu0
      %2315 = vmatprep.subr.mxu0 0.0
      %2316 = vmatpush1.msra.mxu0 0.0
      %2317 = vmatprep.subr.mxu0 0.0
      %2318 = vmatpush1.msra.mxu0 0.0
      %2319 = vmatprep.subr.mxu0 0.0
      %2320 = vmatpush1.msra.mxu0 0.0
      %2321 = vmatprep.subr.mxu0 0.0
      %2322 = vmatpush1.msra.mxu0 0.0
      %2323 = vmatprep.subr.mxu0 0.0
      %2324 = vmatpush1.msra.mxu0 0.0
      %2325 = vmatprep.subr.mxu0 0.0
      %2326 = vmatpush1.msra.mxu0 0.0
      %2327 = vmatprep.subr.mxu0 0.0
      %2328 = vmatpush1.msra.mxu0 0.0
      %2329 = vmatprep.subr.mxu0 0.0
      %2330 = vmatpush1.msra.mxu0 0.0
      %2331 = vmatprep.subr.mxu0 0.0
      %2332 = vmatpush1.msra.mxu0 0.0
      %2333 = vmatprep.subr.mxu0 0.0
      %2334 = vmatpush1.msra.mxu0 0.0
      %2335 = vmatprep.subr.mxu0 0.0
      %2336 = vmatpush1.msra.mxu0 0.0
      %2337 = vmatprep.subr.mxu0 0.0
      %2338 = vmatpush1.msra.mxu0 0.0
      %2339 = vmatprep.subr.mxu0 %v2005
      %2340 = vmatpush1.msra.mxu0 %v2004
      %2341 = vmatprep.subr.mxu0 %v1997
      %2342 = vmatpush1.msra.mxu0 %v1996
      %2343 = vmatprep.subr.mxu0 %v1989
      %2344 = vmatpush1.msra.mxu0 %v1988
      %2345 = vmatprep.subr.mxu0 %v1981
      %2346 = vmatpush1.msra.mxu0 %v1980
      %2347 = vmatprep.subr.mxu0 0.0
      %2348 = vmatpush2.msra.mxu0 0.0
      %2349 = vmatprep.subr.mxu0 0.0
      %2350 = vmatpush2.msra.mxu0 0.0
      %2351 = vmatprep.subr.mxu0 0.0
      %2352 = vmatpush2.msra.mxu0 0.0
      %2353 = vmatprep.subr.mxu0 0.0
      %2354 = vmatpush2.msra.mxu0 0.0
      %2355 = vmatprep.subr.mxu0 0.0
      %2356 = vmatpush2.msra.mxu0 0.0
      %2357 = vmatprep.subr.mxu0 0.0
      %2358 = vmatpush2.msra.mxu0 0.0
      %2359 = vmatprep.subr.mxu0 0.0
      %2360 = vmatpush2.msra.mxu0 0.0
      %2361 = vmatprep.subr.mxu0 0.0
      %2362 = vmatpush2.msra.mxu0 0.0
      %2363 = vmatprep.subr.mxu0 0.0
      %2364 = vmatpush2.msra.mxu0 0.0
      %2365 = vmatprep.subr.mxu0 0.0
      %2366 = vmatpush2.msra.mxu0 0.0
      %2367 = vmatprep.subr.mxu0 0.0
      %2368 = vmatpush2.msra.mxu0 0.0
      %2369 = vmatprep.subr.mxu0 0.0
      %2370 = vmatpush2.msra.mxu0 0.0
      %2371 = vmatprep.subr.mxu0 0.0
      %2372 = vmatpush2.msra.mxu0 0.0
      %2373 = vmatprep.subr.mxu0 0.0
      %2374 = vmatpush2.msra.mxu0 0.0
      %2375 = vmatprep.subr.mxu0 0.0
      %2376 = vmatpush2.msra.mxu0 0.0
      %2377 = vmatprep.subr.mxu0 0.0
      %2378 = vmatpush2.msra.mxu0 0.0
      %2379 = vmatprep.mubr.f32.mxu0 0.0
      %2380 = vmatmul.mubr.f32.gmra.mxu0 %v2037
      %v2381 = vpop.f32.mrf.mxu0
      %v2382 = vadd.f32 %v2019, %v2381
      %v2383 = vpop.f32.mrf.mxu0
      %v2384 = vadd.f32 %v2019, %v2383
      %2385 = vmatprep.mubr.f32.mxu0 0.0
      %2386 = vmatmul.mubr.f32.gmra.mxu0 %v2040
      %v2387 = vpop.f32.mrf.mxu0
      %v2388 = vadd.f32 %v2024, %v2387
      %v2389 = vpop.f32.mrf.mxu0
      %v2390 = vadd.f32 %v2024, %v2389
      %2391 = vmatprep.mubr.f32.mxu0 0.0
      %2392 = vmatmul.mubr.f32.gmra.mxu0 %v2043
      %v2393 = vpop.f32.mrf.mxu0
      %v2394 = vadd.f32 %v2029, %v2393
      %v2395 = vpop.f32.mrf.mxu0
      %v2396 = vadd.f32 %v2029, %v2395
      %2397 = vmatprep.mubr.f32.mxu0 0.0
      %2398 = vmatmul.mubr.f32.gmra.mxu0 %v2046
      %v2399 = vpop.f32.mrf.mxu0
      %v2400 = vadd.f32 %v2034, %v2399
      %v2401 = vpop.f32.mrf.mxu0
      %v2402 = vadd.f32 %v2034, %v2401
      %2403 = vdwg.mxu0
      %v2404 = vmax.f32 %v2115, 0.0
      %v2405 = vmax.f32 %v2117, 0.0
      %v2406 = vmax.f32 %v2204, 0.0
      %v2407 = vmax.f32 %v2206, 0.0
      %v2408 = vmax.f32 %v2293, 0.0
      %v2409 = vmax.f32 %v2295, 0.0
      %v2410 = vmax.f32 %v2382, 0.0
      %v2411 = vmax.f32 %v2384, 0.0
      %v2412 = vmax.f32 %v2121, 0.0
      %v2413 = vmax.f32 %v2123, 0.0
      %v2414 = vmax.f32 %v2210, 0.0
      %v2415 = vmax.f32 %v2212, 0.0
      %v2416 = vmax.f32 %v2299, 0.0
      %v2417 = vmax.f32 %v2301, 0.0
      %v2418 = vmax.f32 %v2388, 0.0
      %v2419 = vmax.f32 %v2390, 0.0
      %v2420 = vmax.f32 %v2127, 0.0
      %v2421 = vmax.f32 %v2129, 0.0
      %v2422 = vmax.f32 %v2216, 0.0
      %v2423 = vmax.f32 %v2218, 0.0
      %v2424 = vmax.f32 %v2305, 0.0
      %v2425 = vmax.f32 %v2307, 0.0
      %v2426 = vmax.f32 %v2394, 0.0
      %v2427 = vmax.f32 %v2396, 0.0
      %v2428 = vmax.f32 %v2133, 0.0
      %v2429 = vmax.f32 %v2135, 0.0
      %v2430 = vmax.f32 %v2222, 0.0
      %v2431 = vmax.f32 %v2224, 0.0
      %v2432 = vmax.f32 %v2311, 0.0
      %v2433 = vmax.f32 %v2313, 0.0
      %v2434 = vmax.f32 %v2400, 0.0
      %v2435 = vmax.f32 %v2402, 0.0
      %s2436 = scalar_lea.vmem %s2, 96
      %v2437 = vld [vmem:[%s2436] sm:$0xff]
      %v2438 = vld [vmem:[%s2436 + $0x8] sm:$0xff]
      %v2439 = vld [vmem:[%s2436 + $0x10] sm:$0xff]
      %v2440 = vld [vmem:[%s2436 + $0x18] sm:$0xff]
      %s2441 = scalar_lea.vmem %s3, 128
      %v2442 = vld [vmem:[%s2441] sm:$0xff]
      %v2443 = vld [vmem:[%s2441 + $0x8] sm:$0xff]
      %v2444 = vld [vmem:[%s2441 + $0x10] sm:$0xff]
      %v2445 = vld [vmem:[%s2441 + $0x18] sm:$0xff]
      %2447 = vset.pattern.permute.xlu0 0
      %2448 = vperm.xlu0 %2447, %v2442
      %v2449 = vpop.permute.xlu0 %2448
      %2452 = vset.pattern.permute.xlu0 0
      %2453 = vperm.xlu0 %2452, %v2443
      %v2454 = vpop.permute.xlu0 %2453
      %2457 = vset.pattern.permute.xlu0 0
      %2458 = vperm.xlu0 %2457, %v2444
      %v2459 = vpop.permute.xlu0 %2458
      %2462 = vset.pattern.permute.xlu0 0
      %2463 = vperm.xlu0 %2462, %v2445
      %v2464 = vpop.permute.xlu0 %2463
      %v2467 = vsel %vm1175, %v2437, 0
      %v2470 = vsel %vm1175, %v2438, 0
      %v2473 = vsel %vm1175, %v2439, 0
      %v2476 = vsel %vm1175, %v2440, 0
      %2478 = vmatprep.subr.mxu0 0.0
      %2479 = vmatpush1.msra.mxu0 0.0
      %2480 = vmatprep.subr.mxu0 0.0
      %2481 = vmatpush1.msra.mxu0 0.0
      %2482 = vmatprep.subr.mxu0 0.0
      %2483 = vmatpush1.msra.mxu0 0.0
      %2484 = vmatprep.subr.mxu0 0.0
      %2485 = vmatpush1.msra.mxu0 0.0
      %2486 = vmatprep.subr.mxu0 0.0
      %2487 = vmatpush1.msra.mxu0 0.0
      %2488 = vmatprep.subr.mxu0 0.0
      %2489 = vmatpush1.msra.mxu0 0.0
      %2490 = vmatprep.subr.mxu0 0.0
      %2491 = vmatpush1.msra.mxu0 0.0
      %2492 = vmatprep.subr.mxu0 0.0
      %2493 = vmatpush1.msra.mxu0 0.0
      %2494 = vmatprep.subr.mxu0 0.0
      %2495 = vmatpush1.msra.mxu0 0.0
      %2496 = vmatprep.subr.mxu0 0.0
      %2497 = vmatpush1.msra.mxu0 0.0
      %2498 = vmatprep.subr.mxu0 0.0
      %2499 = vmatpush1.msra.mxu0 0.0
      %2500 = vmatprep.subr.mxu0 0.0
      %2501 = vmatpush1.msra.mxu0 0.0
      %2502 = vmatprep.subr.mxu0 %v2429
      %2503 = vmatpush1.msra.mxu0 %v2428
      %2504 = vmatprep.subr.mxu0 %v2421
      %2505 = vmatpush1.msra.mxu0 %v2420
      %2506 = vmatprep.subr.mxu0 %v2413
      %2507 = vmatpush1.msra.mxu0 %v2412
      %2508 = vmatprep.subr.mxu0 %v2405
      %2509 = vmatpush1.msra.mxu0 %v2404
      %2510 = vmatprep.subr.mxu0 0.0
      %2511 = vmatpush2.msra.mxu0 0.0
      %2512 = vmatprep.subr.mxu0 0.0
      %2513 = vmatpush2.msra.mxu0 0.0
      %2514 = vmatprep.subr.mxu0 0.0
      %2515 = vmatpush2.msra.mxu0 0.0
      %2516 = vmatprep.subr.mxu0 0.0
      %2517 = vmatpush2.msra.mxu0 0.0
      %2518 = vmatprep.subr.mxu0 0.0
      %2519 = vmatpush2.msra.mxu0 0.0
      %2520 = vmatprep.subr.mxu0 0.0
      %2521 = vmatpush2.msra.mxu0 0.0
      %2522 = vmatprep.subr.mxu0 0.0
      %2523 = vmatpush2.msra.mxu0 0.0
      %2524 = vmatprep.subr.mxu0 0.0
      %2525 = vmatpush2.msra.mxu0 0.0
      %2526 = vmatprep.subr.mxu0 0.0
      %2527 = vmatpush2.msra.mxu0 0.0
      %2528 = vmatprep.subr.mxu0 0.0
      %2529 = vmatpush2.msra.mxu0 0.0
      %2530 = vmatprep.subr.mxu0 0.0
      %2531 = vmatpush2.msra.mxu0 0.0
      %2532 = vmatprep.subr.mxu0 0.0
      %2533 = vmatpush2.msra.mxu0 0.0
      %2534 = vmatprep.subr.mxu0 0.0
      %2535 = vmatpush2.msra.mxu0 0.0
      %2536 = vmatprep.subr.mxu0 0.0
      %2537 = vmatpush2.msra.mxu0 0.0
      %2538 = vmatprep.subr.mxu0 0.0
      %2539 = vmatpush2.msra.mxu0 0.0
      %2540 = vmatprep.subr.mxu0 0.0
      %2541 = vmatpush2.msra.mxu0 0.0
      %2542 = vmatprep.mubr.f32.mxu0 0.0
      %2543 = vmatmul.mubr.f32.gmra.mxu0 %v2467
      %v2544 = vpop.f32.mrf.mxu0
      %v2545 = vadd.f32 %v2449, %v2544
      %v2546 = vpop.f32.mrf.mxu0
      %v2547 = vadd.f32 %v2449, %v2546
      %2548 = vmatprep.mubr.f32.mxu0 0.0
      %2549 = vmatmul.mubr.f32.gmra.mxu0 %v2470
      %v2550 = vpop.f32.mrf.mxu0
      %v2551 = vadd.f32 %v2454, %v2550
      %v2552 = vpop.f32.mrf.mxu0
      %v2553 = vadd.f32 %v2454, %v2552
      %2554 = vmatprep.mubr.f32.mxu0 0.0
      %2555 = vmatmul.mubr.f32.gmra.mxu0 %v2473
      %v2556 = vpop.f32.mrf.mxu0
      %v2557 = vadd.f32 %v2459, %v2556
      %v2558 = vpop.f32.mrf.mxu0
      %v2559 = vadd.f32 %v2459, %v2558
      %2560 = vmatprep.mubr.f32.mxu0 0.0
      %2561 = vmatmul.mubr.f32.gmra.mxu0 %v2476
      %v2562 = vpop.f32.mrf.mxu0
      %v2563 = vadd.f32 %v2464, %v2562
      %v2564 = vpop.f32.mrf.mxu0
      %v2565 = vadd.f32 %v2464, %v2564
      %2566 = vdwg.mxu0
      %2567 = vmatprep.subr.mxu0 0.0
      %2568 = vmatpush1.msra.mxu0 0.0
      %2569 = vmatprep.subr.mxu0 0.0
      %2570 = vmatpush1.msra.mxu0 0.0
      %2571 = vmatprep.subr.mxu0 0.0
      %2572 = vmatpush1.msra.mxu0 0.0
      %2573 = vmatprep.subr.mxu0 0.0
      %2574 = vmatpush1.msra.mxu0 0.0
      %2575 = vmatprep.subr.mxu0 0.0
      %2576 = vmatpush1.msra.mxu0 0.0
      %2577 = vmatprep.subr.mxu0 0.0
      %2578 = vmatpush1.msra.mxu0 0.0
      %2579 = vmatprep.subr.mxu0 0.0
      %2580 = vmatpush1.msra.mxu0 0.0
      %2581 = vmatprep.subr.mxu0 0.0
      %2582 = vmatpush1.msra.mxu0 0.0
      %2583 = vmatprep.subr.mxu0 0.0
      %2584 = vmatpush1.msra.mxu0 0.0
      %2585 = vmatprep.subr.mxu0 0.0
      %2586 = vmatpush1.msra.mxu0 0.0
      %2587 = vmatprep.subr.mxu0 0.0
      %2588 = vmatpush1.msra.mxu0 0.0
      %2589 = vmatprep.subr.mxu0 0.0
      %2590 = vmatpush1.msra.mxu0 0.0
      %2591 = vmatprep.subr.mxu0 %v2431
      %2592 = vmatpush1.msra.mxu0 %v2430
      %2593 = vmatprep.subr.mxu0 %v2423
      %2594 = vmatpush1.msra.mxu0 %v2422
      %2595 = vmatprep.subr.mxu0 %v2415
      %2596 = vmatpush1.msra.mxu0 %v2414
      %2597 = vmatprep.subr.mxu0 %v2407
      %2598 = vmatpush1.msra.mxu0 %v2406
      %2599 = vmatprep.subr.mxu0 0.0
      %2600 = vmatpush2.msra.mxu0 0.0
      %2601 = vmatprep.subr.mxu0 0.0
      %2602 = vmatpush2.msra.mxu0 0.0
      %2603 = vmatprep.subr.mxu0 0.0
      %2604 = vmatpush2.msra.mxu0 0.0
      %2605 = vmatprep.subr.mxu0 0.0
      %2606 = vmatpush2.msra.mxu0 0.0
      %2607 = vmatprep.subr.mxu0 0.0
      %2608 = vmatpush2.msra.mxu0 0.0
      %2609 = vmatprep.subr.mxu0 0.0
      %2610 = vmatpush2.msra.mxu0 0.0
      %2611 = vmatprep.subr.mxu0 0.0
      %2612 = vmatpush2.msra.mxu0 0.0
      %2613 = vmatprep.subr.mxu0 0.0
      %2614 = vmatpush2.msra.mxu0 0.0
      %2615 = vmatprep.subr.mxu0 0.0
      %2616 = vmatpush2.msra.mxu0 0.0
      %2617 = vmatprep.subr.mxu0 0.0
      %2618 = vmatpush2.msra.mxu0 0.0
      %2619 = vmatprep.subr.mxu0 0.0
      %2620 = vmatpush2.msra.mxu0 0.0
      %2621 = vmatprep.subr.mxu0 0.0
      %2622 = vmatpush2.msra.mxu0 0.0
      %2623 = vmatprep.subr.mxu0 0.0
      %2624 = vmatpush2.msra.mxu0 0.0
      %2625 = vmatprep.subr.mxu0 0.0
      %2626 = vmatpush2.msra.mxu0 0.0
      %2627 = vmatprep.subr.mxu0 0.0
      %2628 = vmatpush2.msra.mxu0 0.0
      %2629 = vmatprep.subr.mxu0 0.0
      %2630 = vmatpush2.msra.mxu0 0.0
      %2631 = vmatprep.mubr.f32.mxu0 0.0
      %2632 = vmatmul.mubr.f32.gmra.mxu0 %v2467
      %v2633 = vpop.f32.mrf.mxu0
      %v2634 = vadd.f32 %v2449, %v2633
      %v2635 = vpop.f32.mrf.mxu0
      %v2636 = vadd.f32 %v2449, %v2635
      %2637 = vmatprep.mubr.f32.mxu0 0.0
      %2638 = vmatmul.mubr.f32.gmra.mxu0 %v2470
      %v2639 = vpop.f32.mrf.mxu0
      %v2640 = vadd.f32 %v2454, %v2639
      %v2641 = vpop.f32.mrf.mxu0
      %v2642 = vadd.f32 %v2454, %v2641
      %2643 = vmatprep.mubr.f32.mxu0 0.0
      %2644 = vmatmul.mubr.f32.gmra.mxu0 %v2473
      %v2645 = vpop.f32.mrf.mxu0
      %v2646 = vadd.f32 %v2459, %v2645
      %v2647 = vpop.f32.mrf.mxu0
      %v2648 = vadd.f32 %v2459, %v2647
      %2649 = vmatprep.mubr.f32.mxu0 0.0
      %2650 = vmatmul.mubr.f32.gmra.mxu0 %v2476
      %v2651 = vpop.f32.mrf.mxu0
      %v2652 = vadd.f32 %v2464, %v2651
      %v2653 = vpop.f32.mrf.mxu0
      %v2654 = vadd.f32 %v2464, %v2653
      %2655 = vdwg.mxu0
      %2656 = vmatprep.subr.mxu0 0.0
      %2657 = vmatpush1.msra.mxu0 0.0
      %2658 = vmatprep.subr.mxu0 0.0
      %2659 = vmatpush1.msra.mxu0 0.0
      %2660 = vmatprep.subr.mxu0 0.0
      %2661 = vmatpush1.msra.mxu0 0.0
      %2662 = vmatprep.subr.mxu0 0.0
      %2663 = vmatpush1.msra.mxu0 0.0
      %2664 = vmatprep.subr.mxu0 0.0
      %2665 = vmatpush1.msra.mxu0 0.0
      %2666 = vmatprep.subr.mxu0 0.0
      %2667 = vmatpush1.msra.mxu0 0.0
      %2668 = vmatprep.subr.mxu0 0.0
      %2669 = vmatpush1.msra.mxu0 0.0
      %2670 = vmatprep.subr.mxu0 0.0
      %2671 = vmatpush1.msra.mxu0 0.0
      %2672 = vmatprep.subr.mxu0 0.0
      %2673 = vmatpush1.msra.mxu0 0.0
      %2674 = vmatprep.subr.mxu0 0.0
      %2675 = vmatpush1.msra.mxu0 0.0
      %2676 = vmatprep.subr.mxu0 0.0
      %2677 = vmatpush1.msra.mxu0 0.0
      %2678 = vmatprep.subr.mxu0 0.0
      %2679 = vmatpush1.msra.mxu0 0.0
      %2680 = vmatprep.subr.mxu0 %v2433
      %2681 = vmatpush1.msra.mxu0 %v2432
      %2682 = vmatprep.subr.mxu0 %v2425
      %2683 = vmatpush1.msra.mxu0 %v2424
      %2684 = vmatprep.subr.mxu0 %v2417
      %2685 = vmatpush1.msra.mxu0 %v2416
      %2686 = vmatprep.subr.mxu0 %v2409
      %2687 = vmatpush1.msra.mxu0 %v2408
      %2688 = vmatprep.subr.mxu0 0.0
      %2689 = vmatpush2.msra.mxu0 0.0
      %2690 = vmatprep.subr.mxu0 0.0
      %2691 = vmatpush2.msra.mxu0 0.0
      %2692 = vmatprep.subr.mxu0 0.0
      %2693 = vmatpush2.msra.mxu0 0.0
      %2694 = vmatprep.subr.mxu0 0.0
      %2695 = vmatpush2.msra.mxu0 0.0
      %2696 = vmatprep.subr.mxu0 0.0
      %2697 = vmatpush2.msra.mxu0 0.0
      %2698 = vmatprep.subr.mxu0 0.0
      %2699 = vmatpush2.msra.mxu0 0.0
      %2700 = vmatprep.subr.mxu0 0.0
      %2701 = vmatpush2.msra.mxu0 0.0
      %2702 = vmatprep.subr.mxu0 0.0
      %2703 = vmatpush2.msra.mxu0 0.0
      %2704 = vmatprep.subr.mxu0 0.0
      %2705 = vmatpush2.msra.mxu0 0.0
      %2706 = vmatprep.subr.mxu0 0.0
      %2707 = vmatpush2.msra.mxu0 0.0
      %2708 = vmatprep.subr.mxu0 0.0
      %2709 = vmatpush2.msra.mxu0 0.0
      %2710 = vmatprep.subr.mxu0 0.0
      %2711 = vmatpush2.msra.mxu0 0.0
      %2712 = vmatprep.subr.mxu0 0.0
      %2713 = vmatpush2.msra.mxu0 0.0
      %2714 = vmatprep.subr.mxu0 0.0
      %2715 = vmatpush2.msra.mxu0 0.0
      %2716 = vmatprep.subr.mxu0 0.0
      %2717 = vmatpush2.msra.mxu0 0.0
      %2718 = vmatprep.subr.mxu0 0.0
      %2719 = vmatpush2.msra.mxu0 0.0
      %2720 = vmatprep.mubr.f32.mxu0 0.0
      %2721 = vmatmul.mubr.f32.gmra.mxu0 %v2467
      %v2722 = vpop.f32.mrf.mxu0
      %v2723 = vadd.f32 %v2449, %v2722
      %v2724 = vpop.f32.mrf.mxu0
      %v2725 = vadd.f32 %v2449, %v2724
      %2726 = vmatprep.mubr.f32.mxu0 0.0
      %2727 = vmatmul.mubr.f32.gmra.mxu0 %v2470
      %v2728 = vpop.f32.mrf.mxu0
      %v2729 = vadd.f32 %v2454, %v2728
      %v2730 = vpop.f32.mrf.mxu0
      %v2731 = vadd.f32 %v2454, %v2730
      %2732 = vmatprep.mubr.f32.mxu0 0.0
      %2733 = vmatmul.mubr.f32.gmra.mxu0 %v2473
      %v2734 = vpop.f32.mrf.mxu0
      %v2735 = vadd.f32 %v2459, %v2734
      %v2736 = vpop.f32.mrf.mxu0
      %v2737 = vadd.f32 %v2459, %v2736
      %2738 = vmatprep.mubr.f32.mxu0 0.0
      %2739 = vmatmul.mubr.f32.gmra.mxu0 %v2476
      %v2740 = vpop.f32.mrf.mxu0
      %v2741 = vadd.f32 %v2464, %v2740
      %v2742 = vpop.f32.mrf.mxu0
      %v2743 = vadd.f32 %v2464, %v2742
      %2744 = vdwg.mxu0
      %2745 = vmatprep.subr.mxu0 0.0
      %2746 = vmatpush1.msra.mxu0 0.0
      %2747 = vmatprep.subr.mxu0 0.0
      %2748 = vmatpush1.msra.mxu0 0.0
      %2749 = vmatprep.subr.mxu0 0.0
      %2750 = vmatpush1.msra.mxu0 0.0
      %2751 = vmatprep.subr.mxu0 0.0
      %2752 = vmatpush1.msra.mxu0 0.0
      %2753 = vmatprep.subr.mxu0 0.0
      %2754 = vmatpush1.msra.mxu0 0.0
      %2755 = vmatprep.subr.mxu0 0.0
      %2756 = vmatpush1.msra.mxu0 0.0
      %2757 = vmatprep.subr.mxu0 0.0
      %2758 = vmatpush1.msra.mxu0 0.0
      %2759 = vmatprep.subr.mxu0 0.0
      %2760 = vmatpush1.msra.mxu0 0.0
      %2761 = vmatprep.subr.mxu0 0.0
      %2762 = vmatpush1.msra.mxu0 0.0
      %2763 = vmatprep.subr.mxu0 0.0
      %2764 = vmatpush1.msra.mxu0 0.0
      %2765 = vmatprep.subr.mxu0 0.0
      %2766 = vmatpush1.msra.mxu0 0.0
      %2767 = vmatprep.subr.mxu0 0.0
      %2768 = vmatpush1.msra.mxu0 0.0
      %2769 = vmatprep.subr.mxu0 %v2435
      %2770 = vmatpush1.msra.mxu0 %v2434
      %2771 = vmatprep.subr.mxu0 %v2427
      %2772 = vmatpush1.msra.mxu0 %v2426
      %2773 = vmatprep.subr.mxu0 %v2419
      %2774 = vmatpush1.msra.mxu0 %v2418
      %2775 = vmatprep.subr.mxu0 %v2411
      %2776 = vmatpush1.msra.mxu0 %v2410
      %2777 = vmatprep.subr.mxu0 0.0
      %2778 = vmatpush2.msra.mxu0 0.0
      %2779 = vmatprep.subr.mxu0 0.0
      %2780 = vmatpush2.msra.mxu0 0.0
      %2781 = vmatprep.subr.mxu0 0.0
      %2782 = vmatpush2.msra.mxu0 0.0
      %2783 = vmatprep.subr.mxu0 0.0
      %2784 = vmatpush2.msra.mxu0 0.0
      %2785 = vmatprep.subr.mxu0 0.0
      %2786 = vmatpush2.msra.mxu0 0.0
      %2787 = vmatprep.subr.mxu0 0.0
      %2788 = vmatpush2.msra.mxu0 0.0
      %2789 = vmatprep.subr.mxu0 0.0
      %2790 = vmatpush2.msra.mxu0 0.0
      %2791 = vmatprep.subr.mxu0 0.0
      %2792 = vmatpush2.msra.mxu0 0.0
      %2793 = vmatprep.subr.mxu0 0.0
      %2794 = vmatpush2.msra.mxu0 0.0
      %2795 = vmatprep.subr.mxu0 0.0
      %2796 = vmatpush2.msra.mxu0 0.0
      %2797 = vmatprep.subr.mxu0 0.0
      %2798 = vmatpush2.msra.mxu0 0.0
      %2799 = vmatprep.subr.mxu0 0.0
      %2800 = vmatpush2.msra.mxu0 0.0
      %2801 = vmatprep.subr.mxu0 0.0
      %2802 = vmatpush2.msra.mxu0 0.0
      %2803 = vmatprep.subr.mxu0 0.0
      %2804 = vmatpush2.msra.mxu0 0.0
      %2805 = vmatprep.subr.mxu0 0.0
      %2806 = vmatpush2.msra.mxu0 0.0
      %2807 = vmatprep.subr.mxu0 0.0
      %2808 = vmatpush2.msra.mxu0 0.0
      %2809 = vmatprep.mubr.f32.mxu0 0.0
      %2810 = vmatmul.mubr.f32.gmra.mxu0 %v2467
      %v2811 = vpop.f32.mrf.mxu0
      %v2812 = vadd.f32 %v2449, %v2811
      %v2813 = vpop.f32.mrf.mxu0
      %v2814 = vadd.f32 %v2449, %v2813
      %2815 = vmatprep.mubr.f32.mxu0 0.0
      %2816 = vmatmul.mubr.f32.gmra.mxu0 %v2470
      %v2817 = vpop.f32.mrf.mxu0
      %v2818 = vadd.f32 %v2454, %v2817
      %v2819 = vpop.f32.mrf.mxu0
      %v2820 = vadd.f32 %v2454, %v2819
      %2821 = vmatprep.mubr.f32.mxu0 0.0
      %2822 = vmatmul.mubr.f32.gmra.mxu0 %v2473
      %v2823 = vpop.f32.mrf.mxu0
      %v2824 = vadd.f32 %v2459, %v2823
      %v2825 = vpop.f32.mrf.mxu0
      %v2826 = vadd.f32 %v2459, %v2825
      %2827 = vmatprep.mubr.f32.mxu0 0.0
      %2828 = vmatmul.mubr.f32.gmra.mxu0 %v2476
      %v2829 = vpop.f32.mrf.mxu0
      %v2830 = vadd.f32 %v2464, %v2829
      %v2831 = vpop.f32.mrf.mxu0
      %v2832 = vadd.f32 %v2464, %v2831
      %2833 = vdwg.mxu0
      %v2834 = vmax.f32 %v2545, 0.0
      %v2835 = vmax.f32 %v2547, 0.0
      %v2836 = vmax.f32 %v2634, 0.0
      %v2837 = vmax.f32 %v2636, 0.0
      %v2838 = vmax.f32 %v2723, 0.0
      %v2839 = vmax.f32 %v2725, 0.0
      %v2840 = vmax.f32 %v2812, 0.0
      %v2841 = vmax.f32 %v2814, 0.0
      %v2842 = vmax.f32 %v2551, 0.0
      %v2843 = vmax.f32 %v2553, 0.0
      %v2844 = vmax.f32 %v2640, 0.0
      %v2845 = vmax.f32 %v2642, 0.0
      %v2846 = vmax.f32 %v2729, 0.0
      %v2847 = vmax.f32 %v2731, 0.0
      %v2848 = vmax.f32 %v2818, 0.0
      %v2849 = vmax.f32 %v2820, 0.0
      %v2850 = vmax.f32 %v2557, 0.0
      %v2851 = vmax.f32 %v2559, 0.0
      %v2852 = vmax.f32 %v2646, 0.0
      %v2853 = vmax.f32 %v2648, 0.0
      %v2854 = vmax.f32 %v2735, 0.0
      %v2855 = vmax.f32 %v2737, 0.0
      %v2856 = vmax.f32 %v2824, 0.0
      %v2857 = vmax.f32 %v2826, 0.0
      %v2858 = vmax.f32 %v2563, 0.0
      %v2859 = vmax.f32 %v2565, 0.0
      %v2860 = vmax.f32 %v2652, 0.0
      %v2861 = vmax.f32 %v2654, 0.0
      %v2862 = vmax.f32 %v2741, 0.0
      %v2863 = vmax.f32 %v2743, 0.0
      %v2864 = vmax.f32 %v2830, 0.0
      %v2865 = vmax.f32 %v2832, 0.0
      %s2866 = scalar_lea.vmem %s2, 128
      %v2867 = vld [vmem:[%s2866] sm:$0xff]
      %v2868 = vld [vmem:[%s2866 + $0x8] sm:$0xff]
      %v2869 = vld [vmem:[%s2866 + $0x10] sm:$0xff]
      %v2870 = vld [vmem:[%s2866 + $0x18] sm:$0xff]
      %s2871 = scalar_lea.vmem %s3, 160
      %v2872 = vld [vmem:[%s2871] sm:$0xff]
      %v2873 = vld [vmem:[%s2871 + $0x8] sm:$0xff]
      %v2874 = vld [vmem:[%s2871 + $0x10] sm:$0xff]
      %v2875 = vld [vmem:[%s2871 + $0x18] sm:$0xff]
      %2877 = vset.pattern.permute.xlu0 0
      %2878 = vperm.xlu0 %2877, %v2872
      %v2879 = vpop.permute.xlu0 %2878
      %2882 = vset.pattern.permute.xlu0 0
      %2883 = vperm.xlu0 %2882, %v2873
      %v2884 = vpop.permute.xlu0 %2883
      %2887 = vset.pattern.permute.xlu0 0
      %2888 = vperm.xlu0 %2887, %v2874
      %v2889 = vpop.permute.xlu0 %2888
      %2892 = vset.pattern.permute.xlu0 0
      %2893 = vperm.xlu0 %2892, %v2875
      %v2894 = vpop.permute.xlu0 %2893
      %v2897 = vsel %vm1175, %v2867, 0
      %v2900 = vsel %vm1175, %v2868, 0
      %v2903 = vsel %vm1175, %v2869, 0
      %v2906 = vsel %vm1175, %v2870, 0
      %2908 = vmatprep.subr.mxu0 0.0
      %2909 = vmatpush1.msra.mxu0 0.0
      %2910 = vmatprep.subr.mxu0 0.0
      %2911 = vmatpush1.msra.mxu0 0.0
      %2912 = vmatprep.subr.mxu0 0.0
      %2913 = vmatpush1.msra.mxu0 0.0
      %2914 = vmatprep.subr.mxu0 0.0
      %2915 = vmatpush1.msra.mxu0 0.0
      %2916 = vmatprep.subr.mxu0 0.0
      %2917 = vmatpush1.msra.mxu0 0.0
      %2918 = vmatprep.subr.mxu0 0.0
      %2919 = vmatpush1.msra.mxu0 0.0
      %2920 = vmatprep.subr.mxu0 0.0
      %2921 = vmatpush1.msra.mxu0 0.0
      %2922 = vmatprep.subr.mxu0 0.0
      %2923 = vmatpush1.msra.mxu0 0.0
      %2924 = vmatprep.subr.mxu0 0.0
      %2925 = vmatpush1.msra.mxu0 0.0
      %2926 = vmatprep.subr.mxu0 0.0
      %2927 = vmatpush1.msra.mxu0 0.0
      %2928 = vmatprep.subr.mxu0 0.0
      %2929 = vmatpush1.msra.mxu0 0.0
      %2930 = vmatprep.subr.mxu0 0.0
      %2931 = vmatpush1.msra.mxu0 0.0
      %2932 = vmatprep.subr.mxu0 %v2859
      %2933 = vmatpush1.msra.mxu0 %v2858
      %2934 = vmatprep.subr.mxu0 %v2851
      %2935 = vmatpush1.msra.mxu0 %v2850
      %2936 = vmatprep.subr.mxu0 %v2843
      %2937 = vmatpush1.msra.mxu0 %v2842
      %2938 = vmatprep.subr.mxu0 %v2835
      %2939 = vmatpush1.msra.mxu0 %v2834
      %2940 = vmatprep.subr.mxu0 0.0
      %2941 = vmatpush2.msra.mxu0 0.0
      %2942 = vmatprep.subr.mxu0 0.0
      %2943 = vmatpush2.msra.mxu0 0.0
      %2944 = vmatprep.subr.mxu0 0.0
      %2945 = vmatpush2.msra.mxu0 0.0
      %2946 = vmatprep.subr.mxu0 0.0
      %2947 = vmatpush2.msra.mxu0 0.0
      %2948 = vmatprep.subr.mxu0 0.0
      %2949 = vmatpush2.msra.mxu0 0.0
      %2950 = vmatprep.subr.mxu0 0.0
      %2951 = vmatpush2.msra.mxu0 0.0
      %2952 = vmatprep.subr.mxu0 0.0
      %2953 = vmatpush2.msra.mxu0 0.0
      %2954 = vmatprep.subr.mxu0 0.0
      %2955 = vmatpush2.msra.mxu0 0.0
      %2956 = vmatprep.subr.mxu0 0.0
      %2957 = vmatpush2.msra.mxu0 0.0
      %2958 = vmatprep.subr.mxu0 0.0
      %2959 = vmatpush2.msra.mxu0 0.0
      %2960 = vmatprep.subr.mxu0 0.0
      %2961 = vmatpush2.msra.mxu0 0.0
      %2962 = vmatprep.subr.mxu0 0.0
      %2963 = vmatpush2.msra.mxu0 0.0
      %2964 = vmatprep.subr.mxu0 0.0
      %2965 = vmatpush2.msra.mxu0 0.0
      %2966 = vmatprep.subr.mxu0 0.0
      %2967 = vmatpush2.msra.mxu0 0.0
      %2968 = vmatprep.subr.mxu0 0.0
      %2969 = vmatpush2.msra.mxu0 0.0
      %2970 = vmatprep.subr.mxu0 0.0
      %2971 = vmatpush2.msra.mxu0 0.0
      %2972 = vmatprep.mubr.f32.mxu0 0.0
      %2973 = vmatmul.mubr.f32.gmra.mxu0 %v2897
      %v2974 = vpop.f32.mrf.mxu0
      %v2975 = vadd.f32 %v2879, %v2974
      %v2976 = vpop.f32.mrf.mxu0
      %v2977 = vadd.f32 %v2879, %v2976
      %2978 = vmatprep.mubr.f32.mxu0 0.0
      %2979 = vmatmul.mubr.f32.gmra.mxu0 %v2900
      %v2980 = vpop.f32.mrf.mxu0
      %v2981 = vadd.f32 %v2884, %v2980
      %v2982 = vpop.f32.mrf.mxu0
      %v2983 = vadd.f32 %v2884, %v2982
      %2984 = vmatprep.mubr.f32.mxu0 0.0
      %2985 = vmatmul.mubr.f32.gmra.mxu0 %v2903
      %v2986 = vpop.f32.mrf.mxu0
      %v2987 = vadd.f32 %v2889, %v2986
      %v2988 = vpop.f32.mrf.mxu0
      %v2989 = vadd.f32 %v2889, %v2988
      %2990 = vmatprep.mubr.f32.mxu0 0.0
      %2991 = vmatmul.mubr.f32.gmra.mxu0 %v2906
      %v2992 = vpop.f32.mrf.mxu0
      %v2993 = vadd.f32 %v2894, %v2992
      %v2994 = vpop.f32.mrf.mxu0
      %v2995 = vadd.f32 %v2894, %v2994
      %2996 = vdwg.mxu0
      %2997 = vmatprep.subr.mxu0 0.0
      %2998 = vmatpush1.msra.mxu0 0.0
      %2999 = vmatprep.subr.mxu0 0.0
      %3000 = vmatpush1.msra.mxu0 0.0
      %3001 = vmatprep.subr.mxu0 0.0
      %3002 = vmatpush1.msra.mxu0 0.0
      %3003 = vmatprep.subr.mxu0 0.0
      %3004 = vmatpush1.msra.mxu0 0.0
      %3005 = vmatprep.subr.mxu0 0.0
      %3006 = vmatpush1.msra.mxu0 0.0
      %3007 = vmatprep.subr.mxu0 0.0
      %3008 = vmatpush1.msra.mxu0 0.0
      %3009 = vmatprep.subr.mxu0 0.0
      %3010 = vmatpush1.msra.mxu0 0.0
      %3011 = vmatprep.subr.mxu0 0.0
      %3012 = vmatpush1.msra.mxu0 0.0
      %3013 = vmatprep.subr.mxu0 0.0
      %3014 = vmatpush1.msra.mxu0 0.0
      %3015 = vmatprep.subr.mxu0 0.0
      %3016 = vmatpush1.msra.mxu0 0.0
      %3017 = vmatprep.subr.mxu0 0.0
      %3018 = vmatpush1.msra.mxu0 0.0
      %3019 = vmatprep.subr.mxu0 0.0
      %3020 = vmatpush1.msra.mxu0 0.0
      %3021 = vmatprep.subr.mxu0 %v2861
      %3022 = vmatpush1.msra.mxu0 %v2860
      %3023 = vmatprep.subr.mxu0 %v2853
      %3024 = vmatpush1.msra.mxu0 %v2852
      %3025 = vmatprep.subr.mxu0 %v2845
      %3026 = vmatpush1.msra.mxu0 %v2844
      %3027 = vmatprep.subr.mxu0 %v2837
      %3028 = vmatpush1.msra.mxu0 %v2836
      %3029 = vmatprep.subr.mxu0 0.0
      %3030 = vmatpush2.msra.mxu0 0.0
      %3031 = vmatprep.subr.mxu0 0.0
      %3032 = vmatpush2.msra.mxu0 0.0
      %3033 = vmatprep.subr.mxu0 0.0
      %3034 = vmatpush2.msra.mxu0 0.0
      %3035 = vmatprep.subr.mxu0 0.0
      %3036 = vmatpush2.msra.mxu0 0.0
      %3037 = vmatprep.subr.mxu0 0.0
      %3038 = vmatpush2.msra.mxu0 0.0
      %3039 = vmatprep.subr.mxu0 0.0
      %3040 = vmatpush2.msra.mxu0 0.0
      %3041 = vmatprep.subr.mxu0 0.0
      %3042 = vmatpush2.msra.mxu0 0.0
      %3043 = vmatprep.subr.mxu0 0.0
      %3044 = vmatpush2.msra.mxu0 0.0
      %3045 = vmatprep.subr.mxu0 0.0
      %3046 = vmatpush2.msra.mxu0 0.0
      %3047 = vmatprep.subr.mxu0 0.0
      %3048 = vmatpush2.msra.mxu0 0.0
      %3049 = vmatprep.subr.mxu0 0.0
      %3050 = vmatpush2.msra.mxu0 0.0
      %3051 = vmatprep.subr.mxu0 0.0
      %3052 = vmatpush2.msra.mxu0 0.0
      %3053 = vmatprep.subr.mxu0 0.0
      %3054 = vmatpush2.msra.mxu0 0.0
      %3055 = vmatprep.subr.mxu0 0.0
      %3056 = vmatpush2.msra.mxu0 0.0
      %3057 = vmatprep.subr.mxu0 0.0
      %3058 = vmatpush2.msra.mxu0 0.0
      %3059 = vmatprep.subr.mxu0 0.0
      %3060 = vmatpush2.msra.mxu0 0.0
      %3061 = vmatprep.mubr.f32.mxu0 0.0
      %3062 = vmatmul.mubr.f32.gmra.mxu0 %v2897
      %v3063 = vpop.f32.mrf.mxu0
      %v3064 = vadd.f32 %v2879, %v3063
      %v3065 = vpop.f32.mrf.mxu0
      %v3066 = vadd.f32 %v2879, %v3065
      %3067 = vmatprep.mubr.f32.mxu0 0.0
      %3068 = vmatmul.mubr.f32.gmra.mxu0 %v2900
      %v3069 = vpop.f32.mrf.mxu0
      %v3070 = vadd.f32 %v2884, %v3069
      %v3071 = vpop.f32.mrf.mxu0
      %v3072 = vadd.f32 %v2884, %v3071
      %3073 = vmatprep.mubr.f32.mxu0 0.0
      %3074 = vmatmul.mubr.f32.gmra.mxu0 %v2903
      %v3075 = vpop.f32.mrf.mxu0
      %v3076 = vadd.f32 %v2889, %v3075
      %v3077 = vpop.f32.mrf.mxu0
      %v3078 = vadd.f32 %v2889, %v3077
      %3079 = vmatprep.mubr.f32.mxu0 0.0
      %3080 = vmatmul.mubr.f32.gmra.mxu0 %v2906
      %v3081 = vpop.f32.mrf.mxu0
      %v3082 = vadd.f32 %v2894, %v3081
      %v3083 = vpop.f32.mrf.mxu0
      %v3084 = vadd.f32 %v2894, %v3083
      %3085 = vdwg.mxu0
      %3086 = vmatprep.subr.mxu0 0.0
      %3087 = vmatpush1.msra.mxu0 0.0
      %3088 = vmatprep.subr.mxu0 0.0
      %3089 = vmatpush1.msra.mxu0 0.0
      %3090 = vmatprep.subr.mxu0 0.0
      %3091 = vmatpush1.msra.mxu0 0.0
      %3092 = vmatprep.subr.mxu0 0.0
      %3093 = vmatpush1.msra.mxu0 0.0
      %3094 = vmatprep.subr.mxu0 0.0
      %3095 = vmatpush1.msra.mxu0 0.0
      %3096 = vmatprep.subr.mxu0 0.0
      %3097 = vmatpush1.msra.mxu0 0.0
      %3098 = vmatprep.subr.mxu0 0.0
      %3099 = vmatpush1.msra.mxu0 0.0
      %3100 = vmatprep.subr.mxu0 0.0
      %3101 = vmatpush1.msra.mxu0 0.0
      %3102 = vmatprep.subr.mxu0 0.0
      %3103 = vmatpush1.msra.mxu0 0.0
      %3104 = vmatprep.subr.mxu0 0.0
      %3105 = vmatpush1.msra.mxu0 0.0
      %3106 = vmatprep.subr.mxu0 0.0
      %3107 = vmatpush1.msra.mxu0 0.0
      %3108 = vmatprep.subr.mxu0 0.0
      %3109 = vmatpush1.msra.mxu0 0.0
      %3110 = vmatprep.subr.mxu0 %v2863
      %3111 = vmatpush1.msra.mxu0 %v2862
      %3112 = vmatprep.subr.mxu0 %v2855
      %3113 = vmatpush1.msra.mxu0 %v2854
      %3114 = vmatprep.subr.mxu0 %v2847
      %3115 = vmatpush1.msra.mxu0 %v2846
      %3116 = vmatprep.subr.mxu0 %v2839
      %3117 = vmatpush1.msra.mxu0 %v2838
      %3118 = vmatprep.subr.mxu0 0.0
      %3119 = vmatpush2.msra.mxu0 0.0
      %3120 = vmatprep.subr.mxu0 0.0
      %3121 = vmatpush2.msra.mxu0 0.0
      %3122 = vmatprep.subr.mxu0 0.0
      %3123 = vmatpush2.msra.mxu0 0.0
      %3124 = vmatprep.subr.mxu0 0.0
      %3125 = vmatpush2.msra.mxu0 0.0
      %3126 = vmatprep.subr.mxu0 0.0
      %3127 = vmatpush2.msra.mxu0 0.0
      %3128 = vmatprep.subr.mxu0 0.0
      %3129 = vmatpush2.msra.mxu0 0.0
      %3130 = vmatprep.subr.mxu0 0.0
      %3131 = vmatpush2.msra.mxu0 0.0
      %3132 = vmatprep.subr.mxu0 0.0
      %3133 = vmatpush2.msra.mxu0 0.0
      %3134 = vmatprep.subr.mxu0 0.0
      %3135 = vmatpush2.msra.mxu0 0.0
      %3136 = vmatprep.subr.mxu0 0.0
      %3137 = vmatpush2.msra.mxu0 0.0
      %3138 = vmatprep.subr.mxu0 0.0
      %3139 = vmatpush2.msra.mxu0 0.0
      %3140 = vmatprep.subr.mxu0 0.0
      %3141 = vmatpush2.msra.mxu0 0.0
      %3142 = vmatprep.subr.mxu0 0.0
      %3143 = vmatpush2.msra.mxu0 0.0
      %3144 = vmatprep.subr.mxu0 0.0
      %3145 = vmatpush2.msra.mxu0 0.0
      %3146 = vmatprep.subr.mxu0 0.0
      %3147 = vmatpush2.msra.mxu0 0.0
      %3148 = vmatprep.subr.mxu0 0.0
      %3149 = vmatpush2.msra.mxu0 0.0
      %3150 = vmatprep.mubr.f32.mxu0 0.0
      %3151 = vmatmul.mubr.f32.gmra.mxu0 %v2897
      %v3152 = vpop.f32.mrf.mxu0
      %v3153 = vadd.f32 %v2879, %v3152
      %v3154 = vpop.f32.mrf.mxu0
      %v3155 = vadd.f32 %v2879, %v3154
      %3156 = vmatprep.mubr.f32.mxu0 0.0
      %3157 = vmatmul.mubr.f32.gmra.mxu0 %v2900
      %v3158 = vpop.f32.mrf.mxu0
      %v3159 = vadd.f32 %v2884, %v3158
      %v3160 = vpop.f32.mrf.mxu0
      %v3161 = vadd.f32 %v2884, %v3160
      %3162 = vmatprep.mubr.f32.mxu0 0.0
      %3163 = vmatmul.mubr.f32.gmra.mxu0 %v2903
      %v3164 = vpop.f32.mrf.mxu0
      %v3165 = vadd.f32 %v2889, %v3164
      %v3166 = vpop.f32.mrf.mxu0
      %v3167 = vadd.f32 %v2889, %v3166
      %3168 = vmatprep.mubr.f32.mxu0 0.0
      %3169 = vmatmul.mubr.f32.gmra.mxu0 %v2906
      %v3170 = vpop.f32.mrf.mxu0
      %v3171 = vadd.f32 %v2894, %v3170
      %v3172 = vpop.f32.mrf.mxu0
      %v3173 = vadd.f32 %v2894, %v3172
      %3174 = vdwg.mxu0
      %3175 = vmatprep.subr.mxu0 0.0
      %3176 = vmatpush1.msra.mxu0 0.0
      %3177 = vmatprep.subr.mxu0 0.0
      %3178 = vmatpush1.msra.mxu0 0.0
      %3179 = vmatprep.subr.mxu0 0.0
      %3180 = vmatpush1.msra.mxu0 0.0
      %3181 = vmatprep.subr.mxu0 0.0
      %3182 = vmatpush1.msra.mxu0 0.0
      %3183 = vmatprep.subr.mxu0 0.0
      %3184 = vmatpush1.msra.mxu0 0.0
      %3185 = vmatprep.subr.mxu0 0.0
      %3186 = vmatpush1.msra.mxu0 0.0
      %3187 = vmatprep.subr.mxu0 0.0
      %3188 = vmatpush1.msra.mxu0 0.0
      %3189 = vmatprep.subr.mxu0 0.0
      %3190 = vmatpush1.msra.mxu0 0.0
      %3191 = vmatprep.subr.mxu0 0.0
      %3192 = vmatpush1.msra.mxu0 0.0
      %3193 = vmatprep.subr.mxu0 0.0
      %3194 = vmatpush1.msra.mxu0 0.0
      %3195 = vmatprep.subr.mxu0 0.0
      %3196 = vmatpush1.msra.mxu0 0.0
      %3197 = vmatprep.subr.mxu0 0.0
      %3198 = vmatpush1.msra.mxu0 0.0
      %3199 = vmatprep.subr.mxu0 %v2865
      %3200 = vmatpush1.msra.mxu0 %v2864
      %3201 = vmatprep.subr.mxu0 %v2857
      %3202 = vmatpush1.msra.mxu0 %v2856
      %3203 = vmatprep.subr.mxu0 %v2849
      %3204 = vmatpush1.msra.mxu0 %v2848
      %3205 = vmatprep.subr.mxu0 %v2841
      %3206 = vmatpush1.msra.mxu0 %v2840
      %3207 = vmatprep.subr.mxu0 0.0
      %3208 = vmatpush2.msra.mxu0 0.0
      %3209 = vmatprep.subr.mxu0 0.0
      %3210 = vmatpush2.msra.mxu0 0.0
      %3211 = vmatprep.subr.mxu0 0.0
      %3212 = vmatpush2.msra.mxu0 0.0
      %3213 = vmatprep.subr.mxu0 0.0
      %3214 = vmatpush2.msra.mxu0 0.0
      %3215 = vmatprep.subr.mxu0 0.0
      %3216 = vmatpush2.msra.mxu0 0.0
      %3217 = vmatprep.subr.mxu0 0.0
      %3218 = vmatpush2.msra.mxu0 0.0
      %3219 = vmatprep.subr.mxu0 0.0
      %3220 = vmatpush2.msra.mxu0 0.0
      %3221 = vmatprep.subr.mxu0 0.0
      %3222 = vmatpush2.msra.mxu0 0.0
      %3223 = vmatprep.subr.mxu0 0.0
      %3224 = vmatpush2.msra.mxu0 0.0
      %3225 = vmatprep.subr.mxu0 0.0
      %3226 = vmatpush2.msra.mxu0 0.0
      %3227 = vmatprep.subr.mxu0 0.0
      %3228 = vmatpush2.msra.mxu0 0.0
      %3229 = vmatprep.subr.mxu0 0.0
      %3230 = vmatpush2.msra.mxu0 0.0
      %3231 = vmatprep.subr.mxu0 0.0
      %3232 = vmatpush2.msra.mxu0 0.0
      %3233 = vmatprep.subr.mxu0 0.0
      %3234 = vmatpush2.msra.mxu0 0.0
      %3235 = vmatprep.subr.mxu0 0.0
      %3236 = vmatpush2.msra.mxu0 0.0
      %3237 = vmatprep.subr.mxu0 0.0
      %3238 = vmatpush2.msra.mxu0 0.0
      %3239 = vmatprep.mubr.f32.mxu0 0.0
      %3240 = vmatmul.mubr.f32.gmra.mxu0 %v2897
      %v3241 = vpop.f32.mrf.mxu0
      %v3242 = vadd.f32 %v2879, %v3241
      %v3243 = vpop.f32.mrf.mxu0
      %v3244 = vadd.f32 %v2879, %v3243
      %3245 = vmatprep.mubr.f32.mxu0 0.0
      %3246 = vmatmul.mubr.f32.gmra.mxu0 %v2900
      %v3247 = vpop.f32.mrf.mxu0
      %v3248 = vadd.f32 %v2884, %v3247
      %v3249 = vpop.f32.mrf.mxu0
      %v3250 = vadd.f32 %v2884, %v3249
      %3251 = vmatprep.mubr.f32.mxu0 0.0
      %3252 = vmatmul.mubr.f32.gmra.mxu0 %v2903
      %v3253 = vpop.f32.mrf.mxu0
      %v3254 = vadd.f32 %v2889, %v3253
      %v3255 = vpop.f32.mrf.mxu0
      %v3256 = vadd.f32 %v2889, %v3255
      %3257 = vmatprep.mubr.f32.mxu0 0.0
      %3258 = vmatmul.mubr.f32.gmra.mxu0 %v2906
      %v3259 = vpop.f32.mrf.mxu0
      %v3260 = vadd.f32 %v2894, %v3259
      %v3261 = vpop.f32.mrf.mxu0
      %v3262 = vadd.f32 %v2894, %v3261
      %3263 = vdwg.mxu0
      %v3264 = vmax.f32 %v2975, 0.0
      %v3265 = vmax.f32 %v2977, 0.0
      %v3266 = vmax.f32 %v3064, 0.0
      %v3267 = vmax.f32 %v3066, 0.0
      %v3268 = vmax.f32 %v3153, 0.0
      %v3269 = vmax.f32 %v3155, 0.0
      %v3270 = vmax.f32 %v3242, 0.0
      %v3271 = vmax.f32 %v3244, 0.0
      %v3272 = vmax.f32 %v2981, 0.0
      %v3273 = vmax.f32 %v2983, 0.0
      %v3274 = vmax.f32 %v3070, 0.0
      %v3275 = vmax.f32 %v3072, 0.0
      %v3276 = vmax.f32 %v3159, 0.0
      %v3277 = vmax.f32 %v3161, 0.0
      %v3278 = vmax.f32 %v3248, 0.0
      %v3279 = vmax.f32 %v3250, 0.0
      %v3280 = vmax.f32 %v2987, 0.0
      %v3281 = vmax.f32 %v2989, 0.0
      %v3282 = vmax.f32 %v3076, 0.0
      %v3283 = vmax.f32 %v3078, 0.0
      %v3284 = vmax.f32 %v3165, 0.0
      %v3285 = vmax.f32 %v3167, 0.0
      %v3286 = vmax.f32 %v3254, 0.0
      %v3287 = vmax.f32 %v3256, 0.0
      %v3288 = vmax.f32 %v2993, 0.0
      %v3289 = vmax.f32 %v2995, 0.0
      %v3290 = vmax.f32 %v3082, 0.0
      %v3291 = vmax.f32 %v3084, 0.0
      %v3292 = vmax.f32 %v3171, 0.0
      %v3293 = vmax.f32 %v3173, 0.0
      %v3294 = vmax.f32 %v3260, 0.0
      %v3295 = vmax.f32 %v3262, 0.0
      %s3296 = scalar_lea.vmem %s2, 160
      %v3297 = vld [vmem:[%s3296] sm:$0xff]
      %v3298 = vld [vmem:[%s3296 + $0x8] sm:$0xff]
      %v3299 = vld [vmem:[%s3296 + $0x10] sm:$0xff]
      %v3300 = vld [vmem:[%s3296 + $0x18] sm:$0xff]
      %s3301 = scalar_lea.vmem %s3, 192
      %v3302 = vld [vmem:[%s3301] sm:$0xff]
      %v3303 = vld [vmem:[%s3301 + $0x8] sm:$0xff]
      %v3304 = vld [vmem:[%s3301 + $0x10] sm:$0xff]
      %v3305 = vld [vmem:[%s3301 + $0x18] sm:$0xff]
      %3307 = vset.pattern.permute.xlu0 0
      %3308 = vperm.xlu0 %3307, %v3302
      %v3309 = vpop.permute.xlu0 %3308
      %3312 = vset.pattern.permute.xlu0 0
      %3313 = vperm.xlu0 %3312, %v3303
      %v3314 = vpop.permute.xlu0 %3313
      %3316 = vset.pattern.permute.xlu0 0
      %3317 = vperm.xlu0 %3316, %v3304
      %v3318 = vpop.permute.xlu0 %3317
      %3320 = vset.pattern.permute.xlu0 0
      %3321 = vperm.xlu0 %3320, %v3305
      %v3322 = vpop.permute.xlu0 %3321
      %v3324 = vsel %vm1175, %v3297, 0
      %v3327 = vsel %vm1175, %v3298, 0
      %v3330 = vsel %vm1175, %v3299, 0
      %v3333 = vsel %vm1175, %v3300, 0
      %3335 = vmatprep.subr.mxu0 0.0
      %3336 = vmatpush1.msra.mxu0 0.0
      %3337 = vmatprep.subr.mxu0 0.0
      %3338 = vmatpush1.msra.mxu0 0.0
      %3339 = vmatprep.subr.mxu0 0.0
      %3340 = vmatpush1.msra.mxu0 0.0
      %3341 = vmatprep.subr.mxu0 0.0
      %3342 = vmatpush1.msra.mxu0 0.0
      %3343 = vmatprep.subr.mxu0 0.0
      %3344 = vmatpush1.msra.mxu0 0.0
      %3345 = vmatprep.subr.mxu0 0.0
      %3346 = vmatpush1.msra.mxu0 0.0
      %3347 = vmatprep.subr.mxu0 0.0
      %3348 = vmatpush1.msra.mxu0 0.0
      %3349 = vmatprep.subr.mxu0 0.0
      %3350 = vmatpush1.msra.mxu0 0.0
      %3351 = vmatprep.subr.mxu0 0.0
      %3352 = vmatpush1.msra.mxu0 0.0
      %3353 = vmatprep.subr.mxu0 0.0
      %3354 = vmatpush1.msra.mxu0 0.0
      %3355 = vmatprep.subr.mxu0 0.0
      %3356 = vmatpush1.msra.mxu0 0.0
      %3357 = vmatprep.subr.mxu0 0.0
      %3358 = vmatpush1.msra.mxu0 0.0
      %3359 = vmatprep.subr.mxu0 %v3289
      %3360 = vmatpush1.msra.mxu0 %v3288
      %3361 = vmatprep.subr.mxu0 %v3281
      %3362 = vmatpush1.msra.mxu0 %v3280
      %3363 = vmatprep.subr.mxu0 %v3273
      %3364 = vmatpush1.msra.mxu0 %v3272
      %3365 = vmatprep.subr.mxu0 %v3265
      %3366 = vmatpush1.msra.mxu0 %v3264
      %3367 = vmatprep.subr.mxu0 0.0
      %3368 = vmatpush2.msra.mxu0 0.0
      %3369 = vmatprep.subr.mxu0 0.0
      %3370 = vmatpush2.msra.mxu0 0.0
      %3371 = vmatprep.subr.mxu0 0.0
      %3372 = vmatpush2.msra.mxu0 0.0
      %3373 = vmatprep.subr.mxu0 0.0
      %3374 = vmatpush2.msra.mxu0 0.0
      %3375 = vmatprep.subr.mxu0 0.0
      %3376 = vmatpush2.msra.mxu0 0.0
      %3377 = vmatprep.subr.mxu0 0.0
      %3378 = vmatpush2.msra.mxu0 0.0
      %3379 = vmatprep.subr.mxu0 0.0
      %3380 = vmatpush2.msra.mxu0 0.0
      %3381 = vmatprep.subr.mxu0 0.0
      %3382 = vmatpush2.msra.mxu0 0.0
      %3383 = vmatprep.subr.mxu0 0.0
      %3384 = vmatpush2.msra.mxu0 0.0
      %3385 = vmatprep.subr.mxu0 0.0
      %3386 = vmatpush2.msra.mxu0 0.0
      %3387 = vmatprep.subr.mxu0 0.0
      %3388 = vmatpush2.msra.mxu0 0.0
      %3389 = vmatprep.subr.mxu0 0.0
      %3390 = vmatpush2.msra.mxu0 0.0
      %3391 = vmatprep.subr.mxu0 0.0
      %3392 = vmatpush2.msra.mxu0 0.0
      %3393 = vmatprep.subr.mxu0 0.0
      %3394 = vmatpush2.msra.mxu0 0.0
      %3395 = vmatprep.subr.mxu0 0.0
      %3396 = vmatpush2.msra.mxu0 0.0
      %3397 = vmatprep.subr.mxu0 0.0
      %3398 = vmatpush2.msra.mxu0 0.0
      %3399 = vmatprep.mubr.f32.mxu0 0.0
      %3400 = vmatmul.mubr.f32.gmra.mxu0 %v3324
      %v3401 = vpop.f32.mrf.mxu0
      %v3402 = vadd.f32 %v3309, %v3401
      %v3403 = vpop.f32.mrf.mxu0
      %v3404 = vadd.f32 %v3309, %v3403
      %3405 = vmatprep.mubr.f32.mxu0 0.0
      %3406 = vmatmul.mubr.f32.gmra.mxu0 %v3327
      %v3407 = vpop.f32.mrf.mxu0
      %v3408 = vpop.f32.mrf.mxu0
      %3409 = vmatprep.mubr.f32.mxu0 0.0
      %3410 = vmatmul.mubr.f32.gmra.mxu0 %v3330
      %v3411 = vpop.f32.mrf.mxu0
      %v3412 = vpop.f32.mrf.mxu0
      %3413 = vmatprep.mubr.f32.mxu0 0.0
      %3414 = vmatmul.mubr.f32.gmra.mxu0 %v3333
      %v3415 = vpop.f32.mrf.mxu0
      %v3416 = vpop.f32.mrf.mxu0
      %3417 = vdwg.mxu0
      %3418 = vmatprep.subr.mxu0 0.0
      %3419 = vmatpush1.msra.mxu0 0.0
      %3420 = vmatprep.subr.mxu0 0.0
      %3421 = vmatpush1.msra.mxu0 0.0
      %3422 = vmatprep.subr.mxu0 0.0
      %3423 = vmatpush1.msra.mxu0 0.0
      %3424 = vmatprep.subr.mxu0 0.0
      %3425 = vmatpush1.msra.mxu0 0.0
      %3426 = vmatprep.subr.mxu0 0.0
      %3427 = vmatpush1.msra.mxu0 0.0
      %3428 = vmatprep.subr.mxu0 0.0
      %3429 = vmatpush1.msra.mxu0 0.0
      %3430 = vmatprep.subr.mxu0 0.0
      %3431 = vmatpush1.msra.mxu0 0.0
      %3432 = vmatprep.subr.mxu0 0.0
      %3433 = vmatpush1.msra.mxu0 0.0
      %3434 = vmatprep.subr.mxu0 0.0
      %3435 = vmatpush1.msra.mxu0 0.0
      %3436 = vmatprep.subr.mxu0 0.0
      %3437 = vmatpush1.msra.mxu0 0.0
      %3438 = vmatprep.subr.mxu0 0.0
      %3439 = vmatpush1.msra.mxu0 0.0
      %3440 = vmatprep.subr.mxu0 0.0
      %3441 = vmatpush1.msra.mxu0 0.0
      %3442 = vmatprep.subr.mxu0 %v3291
      %3443 = vmatpush1.msra.mxu0 %v3290
      %3444 = vmatprep.subr.mxu0 %v3283
      %3445 = vmatpush1.msra.mxu0 %v3282
      %3446 = vmatprep.subr.mxu0 %v3275
      %3447 = vmatpush1.msra.mxu0 %v3274
      %3448 = vmatprep.subr.mxu0 %v3267
      %3449 = vmatpush1.msra.mxu0 %v3266
      %3450 = vmatprep.subr.mxu0 0.0
      %3451 = vmatpush2.msra.mxu0 0.0
      %3452 = vmatprep.subr.mxu0 0.0
      %3453 = vmatpush2.msra.mxu0 0.0
      %3454 = vmatprep.subr.mxu0 0.0
      %3455 = vmatpush2.msra.mxu0 0.0
      %3456 = vmatprep.subr.mxu0 0.0
      %3457 = vmatpush2.msra.mxu0 0.0
      %3458 = vmatprep.subr.mxu0 0.0
      %3459 = vmatpush2.msra.mxu0 0.0
      %3460 = vmatprep.subr.mxu0 0.0
      %3461 = vmatpush2.msra.mxu0 0.0
      %3462 = vmatprep.subr.mxu0 0.0
      %3463 = vmatpush2.msra.mxu0 0.0
      %3464 = vmatprep.subr.mxu0 0.0
      %3465 = vmatpush2.msra.mxu0 0.0
      %3466 = vmatprep.subr.mxu0 0.0
      %3467 = vmatpush2.msra.mxu0 0.0
      %3468 = vmatprep.subr.mxu0 0.0
      %3469 = vmatpush2.msra.mxu0 0.0
      %3470 = vmatprep.subr.mxu0 0.0
      %3471 = vmatpush2.msra.mxu0 0.0
      %3472 = vmatprep.subr.mxu0 0.0
      %3473 = vmatpush2.msra.mxu0 0.0
      %3474 = vmatprep.subr.mxu0 0.0
      %3475 = vmatpush2.msra.mxu0 0.0
      %3476 = vmatprep.subr.mxu0 0.0
      %3477 = vmatpush2.msra.mxu0 0.0
      %3478 = vmatprep.subr.mxu0 0.0
      %3479 = vmatpush2.msra.mxu0 0.0
      %3480 = vmatprep.subr.mxu0 0.0
      %3481 = vmatpush2.msra.mxu0 0.0
      %3482 = vmatprep.mubr.f32.mxu0 0.0
      %3483 = vmatmul.mubr.f32.gmra.mxu0 %v3324
      %v3484 = vpop.f32.mrf.mxu0
      %v3485 = vadd.f32 %v3309, %v3484
      %v3486 = vpop.f32.mrf.mxu0
      %v3487 = vadd.f32 %v3309, %v3486
      %3488 = vmatprep.mubr.f32.mxu0 0.0
      %3489 = vmatmul.mubr.f32.gmra.mxu0 %v3327
      %v3490 = vpop.f32.mrf.mxu0
      %v3491 = vpop.f32.mrf.mxu0
      %3492 = vmatprep.mubr.f32.mxu0 0.0
      %3493 = vmatmul.mubr.f32.gmra.mxu0 %v3330
      %v3494 = vpop.f32.mrf.mxu0
      %v3495 = vpop.f32.mrf.mxu0
      %3496 = vmatprep.mubr.f32.mxu0 0.0
      %3497 = vmatmul.mubr.f32.gmra.mxu0 %v3333
      %v3498 = vpop.f32.mrf.mxu0
      %v3499 = vpop.f32.mrf.mxu0
      %3500 = vdwg.mxu0
      %3501 = vmatprep.subr.mxu0 0.0
      %3502 = vmatpush1.msra.mxu0 0.0
      %3503 = vmatprep.subr.mxu0 0.0
      %3504 = vmatpush1.msra.mxu0 0.0
      %3505 = vmatprep.subr.mxu0 0.0
      %3506 = vmatpush1.msra.mxu0 0.0
      %3507 = vmatprep.subr.mxu0 0.0
      %3508 = vmatpush1.msra.mxu0 0.0
      %3509 = vmatprep.subr.mxu0 0.0
      %3510 = vmatpush1.msra.mxu0 0.0
      %3511 = vmatprep.subr.mxu0 0.0
      %3512 = vmatpush1.msra.mxu0 0.0
      %3513 = vmatprep.subr.mxu0 0.0
      %3514 = vmatpush1.msra.mxu0 0.0
      %3515 = vmatprep.subr.mxu0 0.0
      %3516 = vmatpush1.msra.mxu0 0.0
      %3517 = vmatprep.subr.mxu0 0.0
      %3518 = vmatpush1.msra.mxu0 0.0
      %3519 = vmatprep.subr.mxu0 0.0
      %3520 = vmatpush1.msra.mxu0 0.0
      %3521 = vmatprep.subr.mxu0 0.0
      %3522 = vmatpush1.msra.mxu0 0.0
      %3523 = vmatprep.subr.mxu0 0.0
      %3524 = vmatpush1.msra.mxu0 0.0
      %3525 = vmatprep.subr.mxu0 %v3293
      %3526 = vmatpush1.msra.mxu0 %v3292
      %3527 = vmatprep.subr.mxu0 %v3285
      %3528 = vmatpush1.msra.mxu0 %v3284
      %3529 = vmatprep.subr.mxu0 %v3277
      %3530 = vmatpush1.msra.mxu0 %v3276
      %3531 = vmatprep.subr.mxu0 %v3269
      %3532 = vmatpush1.msra.mxu0 %v3268
      %3533 = vmatprep.subr.mxu0 0.0
      %3534 = vmatpush2.msra.mxu0 0.0
      %3535 = vmatprep.subr.mxu0 0.0
      %3536 = vmatpush2.msra.mxu0 0.0
      %3537 = vmatprep.subr.mxu0 0.0
      %3538 = vmatpush2.msra.mxu0 0.0
      %3539 = vmatprep.subr.mxu0 0.0
      %3540 = vmatpush2.msra.mxu0 0.0
      %3541 = vmatprep.subr.mxu0 0.0
      %3542 = vmatpush2.msra.mxu0 0.0
      %3543 = vmatprep.subr.mxu0 0.0
      %3544 = vmatpush2.msra.mxu0 0.0
      %3545 = vmatprep.subr.mxu0 0.0
      %3546 = vmatpush2.msra.mxu0 0.0
      %3547 = vmatprep.subr.mxu0 0.0
      %3548 = vmatpush2.msra.mxu0 0.0
      %3549 = vmatprep.subr.mxu0 0.0
      %3550 = vmatpush2.msra.mxu0 0.0
      %3551 = vmatprep.subr.mxu0 0.0
      %3552 = vmatpush2.msra.mxu0 0.0
      %3553 = vmatprep.subr.mxu0 0.0
      %3554 = vmatpush2.msra.mxu0 0.0
      %3555 = vmatprep.subr.mxu0 0.0
      %3556 = vmatpush2.msra.mxu0 0.0
      %3557 = vmatprep.subr.mxu0 0.0
      %3558 = vmatpush2.msra.mxu0 0.0
      %3559 = vmatprep.subr.mxu0 0.0
      %3560 = vmatpush2.msra.mxu0 0.0
      %3561 = vmatprep.subr.mxu0 0.0
      %3562 = vmatpush2.msra.mxu0 0.0
      %3563 = vmatprep.subr.mxu0 0.0
      %3564 = vmatpush2.msra.mxu0 0.0
      %3565 = vmatprep.mubr.f32.mxu0 0.0
      %3566 = vmatmul.mubr.f32.gmra.mxu0 %v3324
      %v3567 = vpop.f32.mrf.mxu0
      %v3568 = vadd.f32 %v3309, %v3567
      %v3569 = vpop.f32.mrf.mxu0
      %v3570 = vadd.f32 %v3309, %v3569
      %3571 = vmatprep.mubr.f32.mxu0 0.0
      %3572 = vmatmul.mubr.f32.gmra.mxu0 %v3327
      %v3573 = vpop.f32.mrf.mxu0
      %v3574 = vpop.f32.mrf.mxu0
      %3575 = vmatprep.mubr.f32.mxu0 0.0
      %3576 = vmatmul.mubr.f32.gmra.mxu0 %v3330
      %v3577 = vpop.f32.mrf.mxu0
      %v3578 = vpop.f32.mrf.mxu0
      %3579 = vmatprep.mubr.f32.mxu0 0.0
      %3580 = vmatmul.mubr.f32.gmra.mxu0 %v3333
      %v3581 = vpop.f32.mrf.mxu0
      %v3582 = vpop.f32.mrf.mxu0
      %3583 = vdwg.mxu0
      %3584 = vmatprep.subr.mxu0 0.0
      %3585 = vmatpush1.msra.mxu0 0.0
      %3586 = vmatprep.subr.mxu0 0.0
      %3587 = vmatpush1.msra.mxu0 0.0
      %3588 = vmatprep.subr.mxu0 0.0
      %3589 = vmatpush1.msra.mxu0 0.0
      %3590 = vmatprep.subr.mxu0 0.0
      %3591 = vmatpush1.msra.mxu0 0.0
      %3592 = vmatprep.subr.mxu0 0.0
      %3593 = vmatpush1.msra.mxu0 0.0
      %3594 = vmatprep.subr.mxu0 0.0
      %3595 = vmatpush1.msra.mxu0 0.0
      %3596 = vmatprep.subr.mxu0 0.0
      %3597 = vmatpush1.msra.mxu0 0.0
      %3598 = vmatprep.subr.mxu0 0.0
      %3599 = vmatpush1.msra.mxu0 0.0
      %3600 = vmatprep.subr.mxu0 0.0
      %3601 = vmatpush1.msra.mxu0 0.0
      %3602 = vmatprep.subr.mxu0 0.0
      %3603 = vmatpush1.msra.mxu0 0.0
      %3604 = vmatprep.subr.mxu0 0.0
      %3605 = vmatpush1.msra.mxu0 0.0
      %3606 = vmatprep.subr.mxu0 0.0
      %3607 = vmatpush1.msra.mxu0 0.0
      %3608 = vmatprep.subr.mxu0 %v3295
      %3609 = vmatpush1.msra.mxu0 %v3294
      %3610 = vmatprep.subr.mxu0 %v3287
      %3611 = vmatpush1.msra.mxu0 %v3286
      %3612 = vmatprep.subr.mxu0 %v3279
      %3613 = vmatpush1.msra.mxu0 %v3278
      %3614 = vmatprep.subr.mxu0 %v3271
      %3615 = vmatpush1.msra.mxu0 %v3270
      %3616 = vmatprep.subr.mxu0 0.0
      %3617 = vmatpush2.msra.mxu0 0.0
      %3618 = vmatprep.subr.mxu0 0.0
      %3619 = vmatpush2.msra.mxu0 0.0
      %3620 = vmatprep.subr.mxu0 0.0
      %3621 = vmatpush2.msra.mxu0 0.0
      %3622 = vmatprep.subr.mxu0 0.0
      %3623 = vmatpush2.msra.mxu0 0.0
      %3624 = vmatprep.subr.mxu0 0.0
      %3625 = vmatpush2.msra.mxu0 0.0
      %3626 = vmatprep.subr.mxu0 0.0
      %3627 = vmatpush2.msra.mxu0 0.0
      %3628 = vmatprep.subr.mxu0 0.0
      %3629 = vmatpush2.msra.mxu0 0.0
      %3630 = vmatprep.subr.mxu0 0.0
      %3631 = vmatpush2.msra.mxu0 0.0
      %3632 = vmatprep.subr.mxu0 0.0
      %3633 = vmatpush2.msra.mxu0 0.0
      %3634 = vmatprep.subr.mxu0 0.0
      %3635 = vmatpush2.msra.mxu0 0.0
      %3636 = vmatprep.subr.mxu0 0.0
      %3637 = vmatpush2.msra.mxu0 0.0
      %3638 = vmatprep.subr.mxu0 0.0
      %3639 = vmatpush2.msra.mxu0 0.0
      %3640 = vmatprep.subr.mxu0 0.0
      %3641 = vmatpush2.msra.mxu0 0.0
      %3642 = vmatprep.subr.mxu0 0.0
      %3643 = vmatpush2.msra.mxu0 0.0
      %3644 = vmatprep.subr.mxu0 0.0
      %3645 = vmatpush2.msra.mxu0 0.0
      %3646 = vmatprep.subr.mxu0 0.0
      %3647 = vmatpush2.msra.mxu0 0.0
      %3648 = vmatprep.mubr.f32.mxu0 0.0
      %3649 = vmatmul.mubr.f32.gmra.mxu0 %v3324
      %v3650 = vpop.f32.mrf.mxu0
      %v3651 = vadd.f32 %v3309, %v3650
      %v3652 = vpop.f32.mrf.mxu0
      %v3653 = vadd.f32 %v3309, %v3652
      %3654 = vmatprep.mubr.f32.mxu0 0.0
      %3655 = vmatmul.mubr.f32.gmra.mxu0 %v3327
      %v3656 = vpop.f32.mrf.mxu0
      %v3657 = vpop.f32.mrf.mxu0
      %3658 = vmatprep.mubr.f32.mxu0 0.0
      %3659 = vmatmul.mubr.f32.gmra.mxu0 %v3330
      %v3660 = vpop.f32.mrf.mxu0
      %v3661 = vpop.f32.mrf.mxu0
      %3662 = vmatprep.mubr.f32.mxu0 0.0
      %3663 = vmatmul.mubr.f32.gmra.mxu0 %v3333
      %v3664 = vpop.f32.mrf.mxu0
      %v3665 = vpop.f32.mrf.mxu0
      %3666 = vdwg.mxu0
      %3667 = vst [vmem:[%s242] sm:$0x1f] %v3402
      %3668 = vst [vmem:[%s242 + $0x8] sm:$0x1f] %v3404
      %s3669 = scalar_lea.vmem %s242, 16
      %3670 = vst [vmem:[%s3669] sm:$0x1f] %v3485
      %3671 = vst [vmem:[%s3669 + $0x8] sm:$0x1f] %v3487
      %s3672 = scalar_lea.vmem %s242, 32
      %3673 = vst [vmem:[%s3672] sm:$0x1f] %v3568
      %3674 = vst [vmem:[%s3672 + $0x8] sm:$0x1f] %v3570
      %s3675 = scalar_lea.vmem %s242, 48
      %3676 = vst [vmem:[%s3675] sm:$0x1f] %v3651
      %3677 = vst [vmem:[%s3675 + $0x8] sm:$0x1f] %v3653
      %s3678 = smul.u32 4, %s19
      %s3679 = smul.u32 2, %s20
      %p3680 = scmp.lt.s32.totalorder %s3678, 7
      %s3681 = scalar_select %p3680, %s3678, 7
      %p3682 = scmp.lt.s32.totalorder %s3679, 1
      %s3683 = scalar_select %p3682, %s3679, 1
      %s3684 = smul.addr %s3681, 2
      %s3685 = sadd.s32 %s3683, %s3684
      %s3686 = smul.addr %s3685, 8
      %s3687 = scalar_lea.vmem %s4, %s3686
      // Predicated region
      $region37: #{tpu_custom_call.1} parent=35 // pred_check
        %p3688 = pneg %p138
      $region38: #{tpu_custom_call.1} parent=35 // pred_check_branch
        %3690 = sbr.rel (%p3688) target = $region40
      $region39: #{tpu_custom_call.1} parent=35 // pred_region
        %s3691 = smul.u32 4, %s19
        %s3692 = smul.u32 2, %s20
      $region40: #{tpu_custom_call.1} parent=35 // pred_fallthru
        _
    $region36: #{tpu_custom_call.1} parent=5 // pred_fallthru
      _
    %p3693 = scmp.le.s32.totalorder 2, %s10
    // Predicated region
    $region41: #{tpu_custom_call.1} parent=5 // pred_check
      %p3694 = pneg %p3693
    $region42: #{tpu_custom_call.1} parent=5 // pred_check_branch
      %3696 = sbr.rel (%p3694) target = $region44
    $region43: #{tpu_custom_call.1} parent=5 // pred_region
      %s3697 = ssub.s32 %s10, 2
      // Predicated region
      $region45: #{tpu_custom_call.1} parent=43 // pred_check
        %p3698 = pneg %p144
      $region46: #{tpu_custom_call.1} parent=43 // pred_check_branch
        %3700 = sbr.rel (%p3698) target = $region48
      $region47: #{tpu_custom_call.1} parent=43 // pred_region
        %s3701 = smul.u32 4, %s21
        %s3702 = smul.u32 2, %s22
        %p3703 = scmp.lt.s32.totalorder %s3701, 7
        %s3704 = scalar_select %p3703, %s3701, 7
        %p3705 = scmp.lt.s32.totalorder %s3702, 1
        %s3706 = scalar_select %p3705, %s3702, 1
        %s3707 = smul.addr %s3704, 2
        %s3708 = sadd.s32 %s3706, %s3707
        %s3709 = smul.addr %s3708, 8
        %s3710 = scalar_lea.vmem %s4, %s3709
      $region48: #{tpu_custom_call.1} parent=43 // pred_fallthru
        _
    $region44: #{tpu_custom_call.1} parent=5 // pred_fallthru
      _
  $region6: #{tpu_custom_call.1} parent=0 // loop_footer
    %s14 = sadd.s32 1, %s10
  $region7: #{tpu_custom_call.1} parent=0 // loop_footer_branch
    %9 = sbr.rel target = $region3
  $region8: #{tpu_custom_call.1} parent=0 // loop_exit
    _

</llo_original>
